<compile_context>
chip_gen: v6e
topology: v6e:2x2x1
jax: 0.10.0
libtpu: 0.0.40
codegen_flags: <defaults>
</compile_context>

<pallas_src>
import functools
import math

import jax
import jax.numpy as jnp
from jax.experimental import pallas as pl
from jax.experimental.pallas import tpu as pltpu


def _round_up(x, m):
    return -(-x // m) * m


# ----------------------------------- kernel ----------------------------------------

def _headv2_body(Hp, Wp, G,
                 xc_ref, xr_ref, mask_ref,
                 wc_ref, sc_ref, bc_ref,
                 wr_ref, sr_ref, br_ref,
                 wp_ref, bp_ref,
                 o_ref, cbuf_ref, rbuf_ref):
    """One batch element (grid axis = batch).

    xc_ref / xr_ref : (2G + Hp*Wp, C) bf16 guard-padded, spatially padded, flattened
                      NHWC inputs for the cls / reg stacks (same ref when shared).
    mask_ref        : (Hp*Wp, 1) f32, 1.0 at interior positions, 0.0 on the pad border.
    wc_ref / wr_ref : (L, 9*C, C) bf16 K-packed conv weights (tap-major, HWIO order).
    sc/bc, sr/br    : (L, 1, C) f32 folded eval-mode BN scale / shift.
    wp_ref / bp_ref : (2C, 5+nc) bf16 block-diag fused prediction weight, (1, 5+nc) f32 bias.
    o_ref           : (Hp*Wp, 5+nc) f32 output -> columns [conf, reg(4), cls(nc)].
    cbuf/rbuf       : (2G + Hp*Wp, C) bf16 guarded activation scratch (layers >= 1).
    """
    HW = Hp * Wp
    C = cbuf_ref.shape[1]
    # tap flat offsets in padded coordinates, (ky, kx) row-major (matches weight packing)
    offs = [(ky - 1) * Wp + (kx - 1) for ky in range(3) for kx in range(3)]

    interior = mask_ref[...] > 0.5                        # (HW, 1) bool, loaded once

    def zero_guards(buf_ref):
        zg = jnp.zeros((G, C), buf_ref.dtype)
        buf_ref[pl.ds(0, G), :] = zg
        buf_ref[pl.ds(G + HW, G), :] = zg

    def conv_layer(src, wl):
        if C <= 128:
            # K-pack all 9 taps: one (HW, 9C) x (9C, C) MXU contraction.
            col = jnp.concatenate(
                [src[pl.ds(G + offs[k], HW), :] for k in range(9)], axis=-1)
            return jnp.dot(col, wl, preferred_element_type=jnp.float32)
        # C already fills the MXU K dim; per-tap dots avoid the big lane concat.
        acc = jnp.dot(src[pl.ds(G + offs[0], HW), :], wl[0:C, :],
                      preferred_element_type=jnp.float32)
        for k in range(1, 9):
            acc = acc + jnp.dot(src[pl.ds(G + offs[k], HW), :],
                                wl[k * C:(k + 1) * C, :],
                                preferred_element_type=jnp.float32)
        return acc

    def run_stack(x_ref, buf_ref, w_ref, s_ref, b_ref):
        n_layers = s_ref.shape[0]
        if n_layers >= 2:
            zero_guards(buf_ref)                          # only the guards; HW region
        src = x_ref                                       # is fully overwritten below
        h_bf16 = None
        for l in range(n_layers):
            acc = conv_layer(src, w_ref[l])               # (HW, C) f32
            h = acc * s_ref[l] + b_ref[l]                 # folded BN (eval mode)
            h = h * pl.reciprocal(1.0 + jnp.exp(-h), approx=True)   # SiLU on EUP
            h = jnp.where(interior, h, 0.0)               # zero pad border (NaN-safe)
            h_bf16 = h.astype(jnp.bfloat16)
            if l < n_layers - 1:
                buf_ref[pl.ds(G, HW), :] = h_bf16         # aligned slab store
                src = buf_ref
        return h_bf16                                     # last layer stays in regs

    cls_feat = run_stack(xc_ref, cbuf_ref, wc_ref, sc_ref, bc_ref)
    reg_feat = run_stack(xr_ref, rbuf_ref, wr_ref, sr_ref, br_ref)

    # fused [conf | reg | cls] prediction: one block-diag dot, one output store
    feat = jnp.concatenate([reg_feat, cls_feat], axis=-1)            # (HW, 2C) bf16
    o_ref[...] = (jnp.dot(feat, wp_ref[...], preferred_element_type=jnp.float32)
                  + bp_ref[...])


def _kernel_shared(Hp, Wp, G, x_ref, mask_ref,
                   wc, sc, bc, wr, sr, br, wp, bp, o_ref, cbuf, rbuf):
    _headv2_body(Hp, Wp, G, x_ref, x_ref, mask_ref,
                 wc, sc, bc, wr, sr, br, wp, bp, o_ref, cbuf, rbuf)


def _kernel_decoupled(Hp, Wp, G, xc_ref, xr_ref, mask_ref,
                      wc, sc, bc, wr, sr, br, wp, bp, o_ref, cbuf, rbuf):
    _headv2_body(Hp, Wp, G, xc_ref, xr_ref, mask_ref,
                 wc, sc, bc, wr, sr, br, wp, bp, o_ref, cbuf, rbuf)


# ---------------------------------- level driver -----------------------------------

def _run_level(x_cls_nchw, x_reg_nchw, params):
    """Runs one pyramid level (both stacks + all predictions fused).

    x_reg_nchw=None means the input is shared (decoupled_in=False): only one input
    operand is passed, so it is DMA'd HBM->VMEM exactly once.
    """
    wc, sc, bc, wr, sr, br, wp, bp = params
    shared = x_reg_nchw is None
    N, C, H, W = x_cls_nchw.shape
    Hp, Wp = H + 2, W + 2
    HW = Hp * Wp
    G = _round_up(Wp + 1, 8)          # guard rows; multiple of 8 -> aligned stores
    R = 2 * G + HW
    no = wp.shape[1]

    def prep(x_nchw):
        x = jnp.transpose(x_nchw, (0, 2, 3, 1))               # NHWC
        x = jnp.pad(x, ((0, 0), (1, 1), (1, 1), (0, 0)))      # spatial pad=1 (once)
        x = x.reshape(N, HW, C)
        x = jnp.pad(x, ((0, 0), (G, G), (0, 0)))              # pre-padded guard rows
        return x.astype(jnp.bfloat16)

    inputs = [prep(x_cls_nchw)]
    if not shared:
        inputs.append(prep(x_reg_nchw))

    rows = jnp.arange(HW, dtype=jnp.int32)
    hp, wp_ = rows // Wp, rows % Wp
    mask = (((hp >= 1) & (hp < Hp - 1) & (wp_ >= 1) & (wp_ < Wp - 1))
            .astype(jnp.float32).reshape(HW, 1))

    x_spec = pl.BlockSpec((None, R, C), lambda n: (n, 0, 0))
    in_specs = ([x_spec] * len(inputs) + [
        pl.BlockSpec((HW, 1), lambda n: (0, 0)),              # interior mask
        pl.BlockSpec(wc.shape, lambda n: (0, 0, 0)),          # cls conv taps (K-packed)
        pl.BlockSpec(sc.shape, lambda n: (0, 0, 0)),          # cls BN scale
        pl.BlockSpec(bc.shape, lambda n: (0, 0, 0)),          # cls BN shift
        pl.BlockSpec(wr.shape, lambda n: (0, 0, 0)),          # reg conv taps (K-packed)
        pl.BlockSpec(sr.shape, lambda n: (0, 0, 0)),          # reg BN scale
        pl.BlockSpec(br.shape, lambda n: (0, 0, 0)),          # reg BN shift
        pl.BlockSpec(wp.shape, lambda n: (0, 0)),             # fused pred weight
        pl.BlockSpec(bp.shape, lambda n: (0, 0)),             # fused pred bias
    ])

    kernel = functools.partial(_kernel_shared if shared else _kernel_decoupled,
                               Hp, Wp, G)

    # explicit VMEM budget (important once shapes grow; v7x has 64 MiB physical)
    est = (len(inputs) * 2 * R * C * 2                         # double-buffered inputs
           + 2 * HW * 4                                        # mask
           + 2 * (wc.size + wr.size + wp.size) * 2             # bf16 weights (x2 bufs)
           + 2 * (sc.size + bc.size + sr.size + br.size + bp.size) * 4
           + 2 * HW * no * 4                                   # double-buffered output
           + 2 * R * C * 2                                     # cbuf + rbuf scratch
           + HW * 9 * C * 2 + 3 * HW * C * 4)                  # im2col + f32 temps
    vmem_limit = int(min(64 * 1024 * 1024, max(32 * 1024 * 1024, 2 * est)))

    out = pl.pallas_call(
        kernel,
        out_shape=jax.ShapeDtypeStruct((N, HW, no), jnp.float32),
        grid=(N,),
        in_specs=in_specs,
        out_specs=pl.BlockSpec((None, HW, no), lambda n: (n, 0, 0)),
        scratch_shapes=[pltpu.VMEM((R, C), jnp.bfloat16),
                        pltpu.VMEM((R, C), jnp.bfloat16)],
        compiler_params=pltpu.CompilerParams(
            dimension_semantics=("parallel",),                 # megacore-shard batches
            vmem_limit_bytes=vmem_limit),
    )(*inputs, mask, wc, sc, bc, wr, sr, br, wp, bp)

    out = out.reshape(N, Hp, Wp, no)[:, 1:1 + H, 1:1 + W, :]   # drop pad border
    out = jnp.transpose(out, (0, 3, 1, 2))                     # back to NCHW
    return out[:, 0:1], out[:, 5:], out[:, 1:5]                # conf, cls, reg


# ----------------------------- parameter construction ------------------------------

def _init_conv_bn(key, cin, cout):
    kw, kg, kb, km, kv = jax.random.split(key, 5)
    w = jax.random.normal(kw, (3, 3, cin, cout), jnp.float32) / math.sqrt(9 * cin)
    gamma = jax.random.uniform(kg, (cout,), jnp.float32, 0.5, 1.5)
    beta = jax.random.normal(kb, (cout,), jnp.float32) * 0.1
    mean = jax.random.normal(km, (cout,), jnp.float32) * 0.1
    var = jax.random.uniform(kv, (cout,), jnp.float32, 0.5, 1.5)
    eps = 1e-5
    scale = gamma / jnp.sqrt(var + eps)           # eval-mode BN folded to scale/shift
    shift = beta - mean * scale
    return w, scale, shift


def _init_stack(key, c, n_layers):
    ws, ss, bs = [], [], []
    for l in range(n_layers):
        w, s, b = _init_conv_bn(jax.random.fold_in(key, l), c, c)
        ws.append(w.reshape(9 * c, c))            # K-packed: tap-major (ky,kx,cin)
        ss.append(s.reshape(1, c))
        bs.append(b.reshape(1, c))
    return (jnp.stack(ws).astype(jnp.bfloat16),   # (L, 9c, c) bf16
            jnp.stack(ss), jnp.stack(bs))         # (L, 1, c) f32 x2


def _init_pred(key, cin, cout, bias_value=None):
    kw, kb = jax.random.split(key)
    w = jax.random.normal(kw, (cin, cout), jnp.float32) / math.sqrt(cin)
    if bias_value is None:
        b = jax.random.normal(kb, (1, cout), jnp.float32) * 0.01
    else:
        b = jnp.full((1, cout), bias_value, jnp.float32)
    return w, b


class Headv2Pallas:
    """JAX/Pallas equivalent of Headv2.forward (inference: BN folded, SiLU act)."""

    def __init__(self, m_cfg, nc=24, decoupled_in=False, ch=(), key=None):
        self.decoupled_in = decoupled_in
        self.nc = nc
        self.nl = len(ch)
        self.num_cls_heads = int(m_cfg['num_cls_heads'])
        self.num_reg_heads = int(m_cfg['num_reg_heads'])
        self.head_dim = int(m_cfg['head_dim'])
        self.act_type = m_cfg.get('head_act', 'silu')
        self.depthwise = bool(m_cfg.get('head_depthwise', False))
        # TODO(synk): only head_act='silu', eval-mode BN ('BN') and depthwise=False are
        # implemented in the Pallas kernel.
        assert self.act_type == 'silu' and not self.depthwise
        assert self.num_cls_heads >= 1 and self.num_reg_heads >= 1

        bias_value = -math.log((1.0 - 0.01) / 0.01)     # Headv2.bias_init()
        C, no = self.head_dim, 5 + nc
        self.params = []
        for i in range(self.nl):
            k = jax.random.fold_in(key, i)
            kc, kr, kp1, kp2, kp3 = jax.random.split(k, 5)
            wc, sc, bc = _init_stack(kc, C, self.num_cls_heads)
            wr, sr, br = _init_stack(kr, C, self.num_reg_heads)
            wconf, bconf = _init_pred(kp1, C, 1, bias_value)    # conf_preds
            wreg, breg = _init_pred(kp2, C, 4, None)            # reg_preds
            wcls, bcls = _init_pred(kp3, C, nc, bias_value)     # cls_preds
            # fused block-diagonal prediction weight: rows 0:C act on reg_feat
            # (-> conf|reg cols), rows C:2C act on cls_feat (-> cls cols)
            wp = jnp.zeros((2 * C, no), jnp.float32)
            wp = wp.at[:C, 0:1].set(wconf).at[:C, 1:5].set(wreg).at[C:, 5:].set(wcls)
            bp = jnp.concatenate([bconf, breg, bcls], axis=1)   # (1, 5+nc)
            self.params.append((wc, sc, bc, wr, sr, br,
                                wp.astype(jnp.bfloat16), bp))

    def __call__(self, x):
        assert isinstance(x, list)
        conf_preds, cls_preds, reg_preds = [], [], []
        for i in range(self.nl):
            if self.decoupled_in:
                xc_i, xr_i = x[0][i], x[1][i]
            else:
                xc_i, xr_i = x[i], None              # shared -> single input DMA
            conf, cls, reg = _run_level(xc_i, xr_i, self.params[i])
            conf_preds.append(conf)
            cls_preds.append(cls)
            reg_preds.append(reg)
        return conf_preds, cls_preds, reg_preds


# ------------------------------- pure-JAX reference --------------------------------

def _stack_ref(x_nhwc, w, s, b):
    L, C = w.shape[0], x_nhwc.shape[-1]
    h = x_nhwc.astype(jnp.bfloat16)
    for l in range(L):
        wl = w[l].reshape(3, 3, C, C)
        y = jax.lax.conv_general_dilated(
            h, wl, (1, 1), 'SAME',
            dimension_numbers=('NHWC', 'HWIO', 'NHWC'),
            preferred_element_type=jnp.float32)
        y = y * s[l].reshape(1, 1, 1, C) + b[l].reshape(1, 1, 1, C)
        y = y * (1.0 / (1.0 + jnp.exp(-y)))
        h = y.astype(jnp.bfloat16)
    return h


def _level_ref(x_cls_nchw, x_reg_nchw, params):
    wc, sc, bc, wr, sr, br, wp, bp = params
    C = sc.shape[-1]
    xc = jnp.transpose(x_cls_nchw, (0, 2, 3, 1))
    xr = jnp.transpose(x_reg_nchw, (0, 2, 3, 1))
    cls_feat = _stack_ref(xc, wc, sc, bc)
    reg_feat = _stack_ref(xr, wr, sr, br)
    wcr, bcr = wp[:C, :5], bp[:, :5]
    wcls, bcls = wp[C:, 5:], bp[:, 5:]
    cr = jnp.einsum('nhwc,cd->nhwd', reg_feat, wcr,
                    preferred_element_type=jnp.float32) + bcr.reshape(1, 1, 1, -1)
    cl = jnp.einsum('nhwc,cd->nhwd', cls_feat, wcls,
                    preferred_element_type=jnp.float32) + bcls.reshape(1, 1, 1, -1)
    conf = jnp.transpose(cr[..., 0:1], (0, 3, 1, 2))
    reg = jnp.transpose(cr[..., 1:5], (0, 3, 1, 2))
    cls = jnp.transpose(cl, (0, 3, 1, 2))
    return conf, cls, reg


def _check(got, ref, name):
    if not jnp.allclose(got, ref, atol=1e-2, rtol=1e-2):
        err = float(jnp.max(jnp.abs(got - ref)))
        raise AssertionError(f"{name} mismatch, max abs err = {err}")


if __name__ == "__main__":
    key = jax.random.PRNGKey(0)

    m_cfg = {'num_cls_heads': 2, 'num_reg_heads': 2, 'head_act': 'silu',
             'head_norm': 'BN', 'head_dim': 32, 'head_depthwise': False}
    nc = 24
    ch = (32, 32)                                   # two pyramid levels, C == head_dim
    head = Headv2Pallas(m_cfg, nc=nc, decoupled_in=False, ch=ch,
                        key=jax.random.fold_in(key, 123))

    kx0, kx1, kx2 = jax.random.split(jax.random.fold_in(key, 7), 3)
    x = [jax.random.normal(kx0, (2, 32, 8, 8), jnp.float32),    # NCHW, like torch
         jax.random.normal(kx1, (2, 32, 4, 4), jnp.float32)]

    conf_preds, cls_preds, reg_preds = head(x)
    jax.block_until_ready((conf_preds, cls_preds, reg_preds))

    # cross-check against a pure-JAX (XLA conv) reference with matching bf16 rounding
    for i in range(len(ch)):
        conf_r, cls_r, reg_r = _level_ref(x[i], x[i], head.params[i])
        N, _, H, W = x[i].shape
        assert conf_preds[i].shape == (N, 1, H, W)
        assert cls_preds[i].shape == (N, nc, H, W)
        assert reg_preds[i].shape == (N, 4, H, W)
        _check(conf_preds[i], conf_r, f"level {i} conf")
        _check(cls_preds[i], cls_r, f"level {i} cls")
        _check(reg_preds[i], reg_r, f"level {i} reg")

    # also exercise the decoupled-input (two-operand) kernel variant on level 0
    x_reg0 = jax.random.normal(kx2, (2, 32, 8, 8), jnp.float32)
    conf_d, cls_d, reg_d = _run_level(x[0], x_reg0, head.params[0])
    jax.block_until_ready((conf_d, cls_d, reg_d))
    conf_r, cls_r, reg_r = _level_ref(x[0], x_reg0, head.params[0])
    _check(conf_d, conf_r, "decoupled conf")
    _check(cls_d, cls_r, "decoupled cls")
    _check(reg_d, reg_r, "decoupled reg")

    print("KERNEL_OK")
</pallas_src>

<mosaic_0001>
module attributes {stable_mosaic.version = 11 : i64} {
  func.func @_kernel_shared(%arg0: i32, %arg1: memref<1x132x32xbf16, #tpu.memory_space<vmem>>, %arg2: memref<100x1xf32, #tpu.memory_space<vmem>>, %arg3: memref<2x288x32xbf16, #tpu.memory_space<vmem>>, %arg4: memref<2x1x32xf32, #tpu.memory_space<vmem>>, %arg5: memref<2x1x32xf32, #tpu.memory_space<vmem>>, %arg6: memref<2x288x32xbf16, #tpu.memory_space<vmem>>, %arg7: memref<2x1x32xf32, #tpu.memory_space<vmem>>, %arg8: memref<2x1x32xf32, #tpu.memory_space<vmem>>, %arg9: memref<64x29xbf16, #tpu.memory_space<vmem>>, %arg10: memref<1x29xf32, #tpu.memory_space<vmem>>, %arg11: memref<1x100x29xf32, #tpu.memory_space<vmem>>, %arg12: memref<132x32xbf16, #tpu.memory_space<vmem>>, %arg13: memref<132x32xbf16, #tpu.memory_space<vmem>>) attributes {dimension_semantics = [#tpu.dimension_semantics<parallel>], iteration_bounds = array<i64: 2>, scalar_prefetch = 0 : i64, scratch_operands = 2 : i64, tpu.core_type = #tpu.core_type<tc>, window_params = [{transform_indices = @transform_0, window_bounds = array<i64: 1, 132, 32>}, {pipeline_mode = #tpu.pipeline_mode<synchronous>, transform_indices = @transform_1, window_bounds = array<i64: 100, 1>}, {pipeline_mode = #tpu.pipeline_mode<synchronous>, transform_indices = @transform_2, window_bounds = array<i64: 2, 288, 32>}, {pipeline_mode = #tpu.pipeline_mode<synchronous>, transform_indices = @transform_3, window_bounds = array<i64: 2, 1, 32>}, {pipeline_mode = #tpu.pipeline_mode<synchronous>, transform_indices = @transform_4, window_bounds = array<i64: 2, 1, 32>}, {pipeline_mode = #tpu.pipeline_mode<synchronous>, transform_indices = @transform_5, window_bounds = array<i64: 2, 288, 32>}, {pipeline_mode = #tpu.pipeline_mode<synchronous>, transform_indices = @transform_6, window_bounds = array<i64: 2, 1, 32>}, {pipeline_mode = #tpu.pipeline_mode<synchronous>, transform_indices = @transform_7, window_bounds = array<i64: 2, 1, 32>}, {pipeline_mode = #tpu.pipeline_mode<synchronous>, transform_indices = @transform_8, window_bounds = array<i64: 64, 29>}, {pipeline_mode = #tpu.pipeline_mode<synchronous>, transform_indices = @transform_9, window_bounds = array<i64: 1, 29>}, {transform_indices = @transform_10, window_bounds = array<i64: 1, 100, 29>}]} {
    %c0 = arith.constant 0 : index
    %c0_0 = arith.constant 0 : index
    %0 = vector.load %arg2[%c0, %c0_0] : memref<100x1xf32, #tpu.memory_space<vmem>>, vector<100x1xf32>
    %cst = arith.constant 5.000000e-01 : f32
    %1 = vector.broadcast %cst : f32 to vector<100x1xf32>
    %2 = arith.cmpf ogt, %0, %1 : vector<100x1xf32>
    %cst_1 = arith.constant 0.000000e+00 : bf16
    %3 = vector.broadcast %cst_1 : bf16 to vector<16x32xbf16>
    %c0_2 = arith.constant 0 : index
    %c0_3 = arith.constant 0 : index
    %4 = vector.load %arg12[%c0_2, %c0_3] : memref<132x32xbf16, #tpu.memory_space<vmem>>, vector<16x32xbf16>
    tpu.vector_store %arg12[%c0_2, %c0_3], %3 {strides = array<i32>} : memref<132x32xbf16, #tpu.memory_space<vmem>>, vector<16x32xbf16>,
    %c116 = arith.constant 116 : index
    %c0_4 = arith.constant 0 : index
    %5 = vector.load %arg12[%c116, %c0_4] : memref<132x32xbf16, #tpu.memory_space<vmem>>, vector<16x32xbf16>
    tpu.vector_store %arg12[%c116, %c0_4], %3 {strides = array<i32>} : memref<132x32xbf16, #tpu.memory_space<vmem>>, vector<16x32xbf16>,
    %c0_5 = arith.constant 0 : index
    %c0_6 = arith.constant 0 : index
    %c0_7 = arith.constant 0 : index
    %6 = vector.load %arg3[%c0_5, %c0_6, %c0_7] : memref<2x288x32xbf16, #tpu.memory_space<vmem>>, vector<1x288x32xbf16>
    %7 = vector.shape_cast %6 : vector<1x288x32xbf16> to vector<288x32xbf16>
    %c0_8 = arith.constant 0 : index
    %c5 = arith.constant 5 : index
    %c0_9 = arith.constant 0 : index
    %8 = vector.load %arg1[%c0_8, %c5, %c0_9] : memref<1x132x32xbf16, #tpu.memory_space<vmem>>, vector<1x100x32xbf16>
    %9 = vector.shape_cast %8 : vector<1x100x32xbf16> to vector<100x32xbf16>
    %c0_10 = arith.constant 0 : index
    %c6 = arith.constant 6 : index
    %c0_11 = arith.constant 0 : index
    %10 = vector.load %arg1[%c0_10, %c6, %c0_11] : memref<1x132x32xbf16, #tpu.memory_space<vmem>>, vector<1x100x32xbf16>
    %11 = vector.shape_cast %10 : vector<1x100x32xbf16> to vector<100x32xbf16>
    %c0_12 = arith.constant 0 : index
    %c7 = arith.constant 7 : index
    %c0_13 = arith.constant 0 : index
    %12 = vector.load %arg1[%c0_12, %c7, %c0_13] : memref<1x132x32xbf16, #tpu.memory_space<vmem>>, vector<1x100x32xbf16>
    %13 = vector.shape_cast %12 : vector<1x100x32xbf16> to vector<100x32xbf16>
    %c0_14 = arith.constant 0 : index
    %c15 = arith.constant 15 : index
    %c0_15 = arith.constant 0 : index
    %14 = vector.load %arg1[%c0_14, %c15, %c0_15] : memref<1x132x32xbf16, #tpu.memory_space<vmem>>, vector<1x100x32xbf16>
    %15 = vector.shape_cast %14 : vector<1x100x32xbf16> to vector<100x32xbf16>
    %c0_16 = arith.constant 0 : index
    %c16 = arith.constant 16 : index
    %c0_17 = arith.constant 0 : index
    %16 = vector.load %arg1[%c0_16, %c16, %c0_17] : memref<1x132x32xbf16, #tpu.memory_space<vmem>>, vector<1x100x32xbf16>
    %17 = vector.shape_cast %16 : vector<1x100x32xbf16> to vector<100x32xbf16>
    %c0_18 = arith.constant 0 : index
    %c17 = arith.constant 17 : index
    %c0_19 = arith.constant 0 : index
    %18 = vector.load %arg1[%c0_18, %c17, %c0_19] : memref<1x132x32xbf16, #tpu.memory_space<vmem>>, vector<1x100x32xbf16>
    %19 = vector.shape_cast %18 : vector<1x100x32xbf16> to vector<100x32xbf16>
    %c0_20 = arith.constant 0 : index
    %c25 = arith.constant 25 : index
    %c0_21 = arith.constant 0 : index
    %20 = vector.load %arg1[%c0_20, %c25, %c0_21] : memref<1x132x32xbf16, #tpu.memory_space<vmem>>, vector<1x100x32xbf16>
    %21 = vector.shape_cast %20 : vector<1x100x32xbf16> to vector<100x32xbf16>
    %c0_22 = arith.constant 0 : index
    %c26 = arith.constant 26 : index
    %c0_23 = arith.constant 0 : index
    %22 = vector.load %arg1[%c0_22, %c26, %c0_23] : memref<1x132x32xbf16, #tpu.memory_space<vmem>>, vector<1x100x32xbf16>
    %23 = vector.shape_cast %22 : vector<1x100x32xbf16> to vector<100x32xbf16>
    %c0_24 = arith.constant 0 : index
    %c27 = arith.constant 27 : index
    %c0_25 = arith.constant 0 : index
    %24 = vector.load %arg1[%c0_24, %c27, %c0_25] : memref<1x132x32xbf16, #tpu.memory_space<vmem>>, vector<1x100x32xbf16>
    %25 = vector.shape_cast %24 : vector<1x100x32xbf16> to vector<100x32xbf16>
    %26 = tpu.concatenate %9, %11, %13, %15, %17, %19, %21, %23, %25 in 1 : vector<100x32xbf16>, vector<100x32xbf16>, vector<100x32xbf16>, vector<100x32xbf16>, vector<100x32xbf16>, vector<100x32xbf16>, vector<100x32xbf16>, vector<100x32xbf16>, vector<100x32xbf16> -> vector<100x288xbf16>
    %cst_26 = arith.constant dense<0.000000e+00> : vector<100x32xf32>
    %27 = tpu.matmul %26, %7, %cst_26 {dimension_numbers = #tpu.dot_dimension_numbers<[1], [0], [0], [1], [0, 0, 1, 1], [], []>} : vector<100x288xbf16>, vector<288x32xbf16>, vector<100x32xf32> -> vector<100x32xf32>
    %c0_27 = arith.constant 0 : index
    %c0_28 = arith.constant 0 : index
    %c0_29 = arith.constant 0 : index
    %28 = vector.load %arg4[%c0_27, %c0_28, %c0_29] : memref<2x1x32xf32, #tpu.memory_space<vmem>>, vector<1x1x32xf32>
    %29 = vector.shape_cast %28 : vector<1x1x32xf32> to vector<1x32xf32>
    %30 = vector.broadcast %29 : vector<1x32xf32> to vector<100x32xf32>
    %31 = arith.mulf %27, %30 : vector<100x32xf32>
    %c0_30 = arith.constant 0 : index
    %c0_31 = arith.constant 0 : index
    %c0_32 = arith.constant 0 : index
    %32 = vector.load %arg5[%c0_30, %c0_31, %c0_32] : memref<2x1x32xf32, #tpu.memory_space<vmem>>, vector<1x1x32xf32>
    %33 = vector.shape_cast %32 : vector<1x1x32xf32> to vector<1x32xf32>
    %34 = vector.broadcast %33 : vector<1x32xf32> to vector<100x32xf32>
    %35 = arith.addf %31, %34 : vector<100x32xf32>
    %cst_33 = arith.constant 0.000000e+00 : f32
    %36 = vector.broadcast %cst_33 : f32 to vector<100x32xf32>
    %37 = arith.subf %36, %35 : vector<100x32xf32>
    %38 = math.exp %37 : vector<100x32xf32>
    %cst_34 = arith.constant 1.000000e+00 : f32
    %39 = vector.broadcast %cst_34 : f32 to vector<100x32xf32>
    %40 = arith.addf %39, %38 : vector<100x32xf32>
    %41 = tpu.reciprocal %40 {approx = true} : vector<100x32xf32> -> vector<100x32xf32>
    %42 = arith.mulf %35, %41 : vector<100x32xf32>
    %cst_35 = arith.constant 0.000000e+00 : f32
    %43 = vector.shape_cast %2 : vector<100x1xi1> to vector<100x1xi1>
    %44 = vector.broadcast %43 : vector<100x1xi1> to vector<100x32xi1>
    %45 = vector.broadcast %cst_35 : f32 to vector<100x32xf32>
    %46 = arith.select %44, %42, %45 : vector<100x32xi1>, vector<100x32xf32>
    %47 = arith.truncf %46 : vector<100x32xf32> to vector<100x32xbf16>
    %c16_36 = arith.constant 16 : index
    %c0_37 = arith.constant 0 : index
    %48 = vector.load %arg12[%c16_36, %c0_37] : memref<132x32xbf16, #tpu.memory_space<vmem>>, vector<100x32xbf16>
    tpu.vector_store %arg12[%c16_36, %c0_37], %47 {strides = array<i32>} : memref<132x32xbf16, #tpu.memory_space<vmem>>, vector<100x32xbf16>,
    %c1 = arith.constant 1 : index
    %c0_38 = arith.constant 0 : index
    %c0_39 = arith.constant 0 : index
    %49 = vector.load %arg3[%c1, %c0_38, %c0_39] : memref<2x288x32xbf16, #tpu.memory_space<vmem>>, vector<1x288x32xbf16>
    %50 = vector.shape_cast %49 : vector<1x288x32xbf16> to vector<288x32xbf16>
    %c5_40 = arith.constant 5 : index
    %c0_41 = arith.constant 0 : index
    %51 = vector.load %arg12[%c5_40, %c0_41] : memref<132x32xbf16, #tpu.memory_space<vmem>>, vector<100x32xbf16>
    %c6_42 = arith.constant 6 : index
    %c0_43 = arith.constant 0 : index
    %52 = vector.load %arg12[%c6_42, %c0_43] : memref<132x32xbf16, #tpu.memory_space<vmem>>, vector<100x32xbf16>
    %c7_44 = arith.constant 7 : index
    %c0_45 = arith.constant 0 : index
    %53 = vector.load %arg12[%c7_44, %c0_45] : memref<132x32xbf16, #tpu.memory_space<vmem>>, vector<100x32xbf16>
    %c15_46 = arith.constant 15 : index
    %c0_47 = arith.constant 0 : index
    %54 = vector.load %arg12[%c15_46, %c0_47] : memref<132x32xbf16, #tpu.memory_space<vmem>>, vector<100x32xbf16>
    %c16_48 = arith.constant 16 : index
    %c0_49 = arith.constant 0 : index
    %55 = vector.load %arg12[%c16_48, %c0_49] : memref<132x32xbf16, #tpu.memory_space<vmem>>, vector<100x32xbf16>
    %c17_50 = arith.constant 17 : index
    %c0_51 = arith.constant 0 : index
    %56 = vector.load %arg12[%c17_50, %c0_51] : memref<132x32xbf16, #tpu.memory_space<vmem>>, vector<100x32xbf16>
    %c25_52 = arith.constant 25 : index
    %c0_53 = arith.constant 0 : index
    %57 = vector.load %arg12[%c25_52, %c0_53] : memref<132x32xbf16, #tpu.memory_space<vmem>>, vector<100x32xbf16>
    %c26_54 = arith.constant 26 : index
    %c0_55 = arith.constant 0 : index
    %58 = vector.load %arg12[%c26_54, %c0_55] : memref<132x32xbf16, #tpu.memory_space<vmem>>, vector<100x32xbf16>
    %c27_56 = arith.constant 27 : index
    %c0_57 = arith.constant 0 : index
    %59 = vector.load %arg12[%c27_56, %c0_57] : memref<132x32xbf16, #tpu.memory_space<vmem>>, vector<100x32xbf16>
    %60 = tpu.concatenate %51, %52, %53, %54, %55, %56, %57, %58, %59 in 1 : vector<100x32xbf16>, vector<100x32xbf16>, vector<100x32xbf16>, vector<100x32xbf16>, vector<100x32xbf16>, vector<100x32xbf16>, vector<100x32xbf16>, vector<100x32xbf16>, vector<100x32xbf16> -> vector<100x288xbf16>
    %cst_58 = arith.constant dense<0.000000e+00> : vector<100x32xf32>
    %61 = tpu.matmul %60, %50, %cst_58 {dimension_numbers = #tpu.dot_dimension_numbers<[1], [0], [0], [1], [0, 0, 1, 1], [], []>} : vector<100x288xbf16>, vector<288x32xbf16>, vector<100x32xf32> -> vector<100x32xf32>
    %c1_59 = arith.constant 1 : index
    %c0_60 = arith.constant 0 : index
    %c0_61 = arith.constant 0 : index
    %62 = vector.load %arg4[%c1_59, %c0_60, %c0_61] : memref<2x1x32xf32, #tpu.memory_space<vmem>>, vector<1x1x32xf32>
    %63 = vector.shape_cast %62 : vector<1x1x32xf32> to vector<1x32xf32>
    %64 = vector.broadcast %63 : vector<1x32xf32> to vector<100x32xf32>
    %65 = arith.mulf %61, %64 : vector<100x32xf32>
    %c1_62 = arith.constant 1 : index
    %c0_63 = arith.constant 0 : index
    %c0_64 = arith.constant 0 : index
    %66 = vector.load %arg5[%c1_62, %c0_63, %c0_64] : memref<2x1x32xf32, #tpu.memory_space<vmem>>, vector<1x1x32xf32>
    %67 = vector.shape_cast %66 : vector<1x1x32xf32> to vector<1x32xf32>
    %68 = vector.broadcast %67 : vector<1x32xf32> to vector<100x32xf32>
    %69 = arith.addf %65, %68 : vector<100x32xf32>
    %cst_65 = arith.constant 0.000000e+00 : f32
    %70 = vector.broadcast %cst_65 : f32 to vector<100x32xf32>
    %71 = arith.subf %70, %69 : vector<100x32xf32>
    %72 = math.exp %71 : vector<100x32xf32>
    %cst_66 = arith.constant 1.000000e+00 : f32
    %73 = vector.broadcast %cst_66 : f32 to vector<100x32xf32>
    %74 = arith.addf %73, %72 : vector<100x32xf32>
    %75 = tpu.reciprocal %74 {approx = true} : vector<100x32xf32> -> vector<100x32xf32>
    %76 = arith.mulf %69, %75 : vector<100x32xf32>
    %cst_67 = arith.constant 0.000000e+00 : f32
    %77 = vector.shape_cast %2 : vector<100x1xi1> to vector<100x1xi1>
    %78 = vector.broadcast %77 : vector<100x1xi1> to vector<100x32xi1>
    %79 = vector.broadcast %cst_67 : f32 to vector<100x32xf32>
    %80 = arith.select %78, %76, %79 : vector<100x32xi1>, vector<100x32xf32>
    %81 = arith.truncf %80 : vector<100x32xf32> to vector<100x32xbf16>
    %cst_68 = arith.constant 0.000000e+00 : bf16
    %82 = vector.broadcast %cst_68 : bf16 to vector<16x32xbf16>
    %c0_69 = arith.constant 0 : index
    %c0_70 = arith.constant 0 : index
    %83 = vector.load %arg13[%c0_69, %c0_70] : memref<132x32xbf16, #tpu.memory_space<vmem>>, vector<16x32xbf16>
    tpu.vector_store %arg13[%c0_69, %c0_70], %82 {strides = array<i32>} : memref<132x32xbf16, #tpu.memory_space<vmem>>, vector<16x32xbf16>,
    %c116_71 = arith.constant 116 : index
    %c0_72 = arith.constant 0 : index
    %84 = vector.load %arg13[%c116_71, %c0_72] : memref<132x32xbf16, #tpu.memory_space<vmem>>, vector<16x32xbf16>
    tpu.vector_store %arg13[%c116_71, %c0_72], %82 {strides = array<i32>} : memref<132x32xbf16, #tpu.memory_space<vmem>>, vector<16x32xbf16>,
    %c0_73 = arith.constant 0 : index
    %c0_74 = arith.constant 0 : index
    %c0_75 = arith.constant 0 : index
    %85 = vector.load %arg6[%c0_73, %c0_74, %c0_75] : memref<2x288x32xbf16, #tpu.memory_space<vmem>>, vector<1x288x32xbf16>
    %86 = vector.shape_cast %85 : vector<1x288x32xbf16> to vector<288x32xbf16>
    %c0_76 = arith.constant 0 : index
    %c5_77 = arith.constant 5 : index
    %c0_78 = arith.constant 0 : index
    %87 = vector.load %arg1[%c0_76, %c5_77, %c0_78] : memref<1x132x32xbf16, #tpu.memory_space<vmem>>, vector<1x100x32xbf16>
    %88 = vector.shape_cast %87 : vector<1x100x32xbf16> to vector<100x32xbf16>
    %c0_79 = arith.constant 0 : index
    %c6_80 = arith.constant 6 : index
    %c0_81 = arith.constant 0 : index
    %89 = vector.load %arg1[%c0_79, %c6_80, %c0_81] : memref<1x132x32xbf16, #tpu.memory_space<vmem>>, vector<1x100x32xbf16>
    %90 = vector.shape_cast %89 : vector<1x100x32xbf16> to vector<100x32xbf16>
    %c0_82 = arith.constant 0 : index
    %c7_83 = arith.constant 7 : index
    %c0_84 = arith.constant 0 : index
    %91 = vector.load %arg1[%c0_82, %c7_83, %c0_84] : memref<1x132x32xbf16, #tpu.memory_space<vmem>>, vector<1x100x32xbf16>
    %92 = vector.shape_cast %91 : vector<1x100x32xbf16> to vector<100x32xbf16>
    %c0_85 = arith.constant 0 : index
    %c15_86 = arith.constant 15 : index
    %c0_87 = arith.constant 0 : index
    %93 = vector.load %arg1[%c0_85, %c15_86, %c0_87] : memref<1x132x32xbf16, #tpu.memory_space<vmem>>, vector<1x100x32xbf16>
    %94 = vector.shape_cast %93 : vector<1x100x32xbf16> to vector<100x32xbf16>
    %c0_88 = arith.constant 0 : index
    %c16_89 = arith.constant 16 : index
    %c0_90 = arith.constant 0 : index
    %95 = vector.load %arg1[%c0_88, %c16_89, %c0_90] : memref<1x132x32xbf16, #tpu.memory_space<vmem>>, vector<1x100x32xbf16>
    %96 = vector.shape_cast %95 : vector<1x100x32xbf16> to vector<100x32xbf16>
    %c0_91 = arith.constant 0 : index
    %c17_92 = arith.constant 17 : index
    %c0_93 = arith.constant 0 : index
    %97 = vector.load %arg1[%c0_91, %c17_92, %c0_93] : memref<1x132x32xbf16, #tpu.memory_space<vmem>>, vector<1x100x32xbf16>
    %98 = vector.shape_cast %97 : vector<1x100x32xbf16> to vector<100x32xbf16>
    %c0_94 = arith.constant 0 : index
    %c25_95 = arith.constant 25 : index
    %c0_96 = arith.constant 0 : index
    %99 = vector.load %arg1[%c0_94, %c25_95, %c0_96] : memref<1x132x32xbf16, #tpu.memory_space<vmem>>, vector<1x100x32xbf16>
    %100 = vector.shape_cast %99 : vector<1x100x32xbf16> to vector<100x32xbf16>
    %c0_97 = arith.constant 0 : index
    %c26_98 = arith.constant 26 : index
    %c0_99 = arith.constant 0 : index
    %101 = vector.load %arg1[%c0_97, %c26_98, %c0_99] : memref<1x132x32xbf16, #tpu.memory_space<vmem>>, vector<1x100x32xbf16>
    %102 = vector.shape_cast %101 : vector<1x100x32xbf16> to vector<100x32xbf16>
    %c0_100 = arith.constant 0 : index
    %c27_101 = arith.constant 27 : index
    %c0_102 = arith.constant 0 : index
    %103 = vector.load %arg1[%c0_100, %c27_101, %c0_102] : memref<1x132x32xbf16, #tpu.memory_space<vmem>>, vector<1x100x32xbf16>
    %104 = vector.shape_cast %103 : vector<1x100x32xbf16> to vector<100x32xbf16>
    %105 = tpu.concatenate %88, %90, %92, %94, %96, %98, %100, %102, %104 in 1 : vector<100x32xbf16>, vector<100x32xbf16>, vector<100x32xbf16>, vector<100x32xbf16>, vector<100x32xbf16>, vector<100x32xbf16>, vector<100x32xbf16>, vector<100x32xbf16>, vector<100x32xbf16> -> vector<100x288xbf16>
    %cst_103 = arith.constant dense<0.000000e+00> : vector<100x32xf32>
    %106 = tpu.matmul %105, %86, %cst_103 {dimension_numbers = #tpu.dot_dimension_numbers<[1], [0], [0], [1], [0, 0, 1, 1], [], []>} : vector<100x288xbf16>, vector<288x32xbf16>, vector<100x32xf32> -> vector<100x32xf32>
    %c0_104 = arith.constant 0 : index
    %c0_105 = arith.constant 0 : index
    %c0_106 = arith.constant 0 : index
    %107 = vector.load %arg7[%c0_104, %c0_105, %c0_106] : memref<2x1x32xf32, #tpu.memory_space<vmem>>, vector<1x1x32xf32>
    %108 = vector.shape_cast %107 : vector<1x1x32xf32> to vector<1x32xf32>
    %109 = vector.broadcast %108 : vector<1x32xf32> to vector<100x32xf32>
    %110 = arith.mulf %106, %109 : vector<100x32xf32>
    %c0_107 = arith.constant 0 : index
    %c0_108 = arith.constant 0 : index
    %c0_109 = arith.constant 0 : index
    %111 = vector.load %arg8[%c0_107, %c0_108, %c0_109] : memref<2x1x32xf32, #tpu.memory_space<vmem>>, vector<1x1x32xf32>
    %112 = vector.shape_cast %111 : vector<1x1x32xf32> to vector<1x32xf32>
    %113 = vector.broadcast %112 : vector<1x32xf32> to vector<100x32xf32>
    %114 = arith.addf %110, %113 : vector<100x32xf32>
    %cst_110 = arith.constant 0.000000e+00 : f32
    %115 = vector.broadcast %cst_110 : f32 to vector<100x32xf32>
    %116 = arith.subf %115, %114 : vector<100x32xf32>
    %117 = math.exp %116 : vector<100x32xf32>
    %cst_111 = arith.constant 1.000000e+00 : f32
    %118 = vector.broadcast %cst_111 : f32 to vector<100x32xf32>
    %119 = arith.addf %118, %117 : vector<100x32xf32>
    %120 = tpu.reciprocal %119 {approx = true} : vector<100x32xf32> -> vector<100x32xf32>
    %121 = arith.mulf %114, %120 : vector<100x32xf32>
    %cst_112 = arith.constant 0.000000e+00 : f32
    %122 = vector.shape_cast %2 : vector<100x1xi1> to vector<100x1xi1>
    %123 = vector.broadcast %122 : vector<100x1xi1> to vector<100x32xi1>
    %124 = vector.broadcast %cst_112 : f32 to vector<100x32xf32>
    %125 = arith.select %123, %121, %124 : vector<100x32xi1>, vector<100x32xf32>
    %126 = arith.truncf %125 : vector<100x32xf32> to vector<100x32xbf16>
    %c16_113 = arith.constant 16 : index
    %c0_114 = arith.constant 0 : index
    %127 = vector.load %arg13[%c16_113, %c0_114] : memref<132x32xbf16, #tpu.memory_space<vmem>>, vector<100x32xbf16>
    tpu.vector_store %arg13[%c16_113, %c0_114], %126 {strides = array<i32>} : memref<132x32xbf16, #tpu.memory_space<vmem>>, vector<100x32xbf16>,
    %c1_115 = arith.constant 1 : index
    %c0_116 = arith.constant 0 : index
    %c0_117 = arith.constant 0 : index
    %128 = vector.load %arg6[%c1_115, %c0_116, %c0_117] : memref<2x288x32xbf16, #tpu.memory_space<vmem>>, vector<1x288x32xbf16>
    %129 = vector.shape_cast %128 : vector<1x288x32xbf16> to vector<288x32xbf16>
    %c5_118 = arith.constant 5 : index
    %c0_119 = arith.constant 0 : index
    %130 = vector.load %arg13[%c5_118, %c0_119] : memref<132x32xbf16, #tpu.memory_space<vmem>>, vector<100x32xbf16>
    %c6_120 = arith.constant 6 : index
    %c0_121 = arith.constant 0 : index
    %131 = vector.load %arg13[%c6_120, %c0_121] : memref<132x32xbf16, #tpu.memory_space<vmem>>, vector<100x32xbf16>
    %c7_122 = arith.constant 7 : index
    %c0_123 = arith.constant 0 : index
    %132 = vector.load %arg13[%c7_122, %c0_123] : memref<132x32xbf16, #tpu.memory_space<vmem>>, vector<100x32xbf16>
    %c15_124 = arith.constant 15 : index
    %c0_125 = arith.constant 0 : index
    %133 = vector.load %arg13[%c15_124, %c0_125] : memref<132x32xbf16, #tpu.memory_space<vmem>>, vector<100x32xbf16>
    %c16_126 = arith.constant 16 : index
    %c0_127 = arith.constant 0 : index
    %134 = vector.load %arg13[%c16_126, %c0_127] : memref<132x32xbf16, #tpu.memory_space<vmem>>, vector<100x32xbf16>
    %c17_128 = arith.constant 17 : index
    %c0_129 = arith.constant 0 : index
    %135 = vector.load %arg13[%c17_128, %c0_129] : memref<132x32xbf16, #tpu.memory_space<vmem>>, vector<100x32xbf16>
    %c25_130 = arith.constant 25 : index
    %c0_131 = arith.constant 0 : index
    %136 = vector.load %arg13[%c25_130, %c0_131] : memref<132x32xbf16, #tpu.memory_space<vmem>>, vector<100x32xbf16>
    %c26_132 = arith.constant 26 : index
    %c0_133 = arith.constant 0 : index
    %137 = vector.load %arg13[%c26_132, %c0_133] : memref<132x32xbf16, #tpu.memory_space<vmem>>, vector<100x32xbf16>
    %c27_134 = arith.constant 27 : index
    %c0_135 = arith.constant 0 : index
    %138 = vector.load %arg13[%c27_134, %c0_135] : memref<132x32xbf16, #tpu.memory_space<vmem>>, vector<100x32xbf16>
    %139 = tpu.concatenate %130, %131, %132, %133, %134, %135, %136, %137, %138 in 1 : vector<100x32xbf16>, vector<100x32xbf16>, vector<100x32xbf16>, vector<100x32xbf16>, vector<100x32xbf16>, vector<100x32xbf16>, vector<100x32xbf16>, vector<100x32xbf16>, vector<100x32xbf16> -> vector<100x288xbf16>
    %cst_136 = arith.constant dense<0.000000e+00> : vector<100x32xf32>
    %140 = tpu.matmul %139, %129, %cst_136 {dimension_numbers = #tpu.dot_dimension_numbers<[1], [0], [0], [1], [0, 0, 1, 1], [], []>} : vector<100x288xbf16>, vector<288x32xbf16>, vector<100x32xf32> -> vector<100x32xf32>
    %c1_137 = arith.constant 1 : index
    %c0_138 = arith.constant 0 : index
    %c0_139 = arith.constant 0 : index
    %141 = vector.load %arg7[%c1_137, %c0_138, %c0_139] : memref<2x1x32xf32, #tpu.memory_space<vmem>>, vector<1x1x32xf32>
    %142 = vector.shape_cast %141 : vector<1x1x32xf32> to vector<1x32xf32>
    %143 = vector.broadcast %142 : vector<1x32xf32> to vector<100x32xf32>
    %144 = arith.mulf %140, %143 : vector<100x32xf32>
    %c1_140 = arith.constant 1 : index
    %c0_141 = arith.constant 0 : index
    %c0_142 = arith.constant 0 : index
    %145 = vector.load %arg8[%c1_140, %c0_141, %c0_142] : memref<2x1x32xf32, #tpu.memory_space<vmem>>, vector<1x1x32xf32>
    %146 = vector.shape_cast %145 : vector<1x1x32xf32> to vector<1x32xf32>
    %147 = vector.broadcast %146 : vector<1x32xf32> to vector<100x32xf32>
    %148 = arith.addf %144, %147 : vector<100x32xf32>
    %cst_143 = arith.constant 0.000000e+00 : f32
    %149 = vector.broadcast %cst_143 : f32 to vector<100x32xf32>
    %150 = arith.subf %149, %148 : vector<100x32xf32>
    %151 = math.exp %150 : vector<100x32xf32>
    %cst_144 = arith.constant 1.000000e+00 : f32
    %152 = vector.broadcast %cst_144 : f32 to vector<100x32xf32>
    %153 = arith.addf %152, %151 : vector<100x32xf32>
    %154 = tpu.reciprocal %153 {approx = true} : vector<100x32xf32> -> vector<100x32xf32>
    %155 = arith.mulf %148, %154 : vector<100x32xf32>
    %cst_145 = arith.constant 0.000000e+00 : f32
    %156 = vector.shape_cast %2 : vector<100x1xi1> to vector<100x1xi1>
    %157 = vector.broadcast %156 : vector<100x1xi1> to vector<100x32xi1>
    %158 = vector.broadcast %cst_145 : f32 to vector<100x32xf32>
    %159 = arith.select %157, %155, %158 : vector<100x32xi1>, vector<100x32xf32>
    %160 = arith.truncf %159 : vector<100x32xf32> to vector<100x32xbf16>
    %161 = tpu.concatenate %160, %81 in 1 : vector<100x32xbf16>, vector<100x32xbf16> -> vector<100x64xbf16>
    %c0_146 = arith.constant 0 : index
    %c0_147 = arith.constant 0 : index
    %162 = vector.load %arg9[%c0_146, %c0_147] : memref<64x29xbf16, #tpu.memory_space<vmem>>, vector<64x29xbf16>
    %cst_148 = arith.constant dense<0.000000e+00> : vector<100x29xf32>
    %163 = tpu.matmul %161, %162, %cst_148 {dimension_numbers = #tpu.dot_dimension_numbers<[1], [0], [0], [1], [0, 0, 1, 1], [], []>} : vector<100x64xbf16>, vector<64x29xbf16>, vector<100x29xf32> -> vector<100x29xf32>
    %c0_149 = arith.constant 0 : index
    %c0_150 = arith.constant 0 : index
    %164 = vector.load %arg10[%c0_149, %c0_150] : memref<1x29xf32, #tpu.memory_space<vmem>>, vector<1x29xf32>
    %165 = vector.broadcast %164 : vector<1x29xf32> to vector<100x29xf32>
    %166 = arith.addf %163, %165 : vector<100x29xf32>
    %c0_151 = arith.constant 0 : index
    %c0_152 = arith.constant 0 : index
    %c0_153 = arith.constant 0 : index
    %167 = vector.load %arg11[%c0_151, %c0_152, %c0_153] : memref<1x100x29xf32, #tpu.memory_space<vmem>>, vector<1x100x29xf32>
    %168 = vector.shape_cast %167 : vector<1x100x29xf32> to vector<100x29xf32>
    %169 = vector.shape_cast %166 : vector<100x29xf32> to vector<1x100x29xf32>
    tpu.vector_store %arg11[%c0_151, %c0_152, %c0_153], %169 {strides = array<i32>} : memref<1x100x29xf32, #tpu.memory_space<vmem>>, vector<1x100x29xf32>,
    return
  }
  func.func @transform_0(%arg0: i32) -> (i32, i32, i32) {
    %c0_i32 = arith.constant 0 : i32
    %c0_i32_0 = arith.constant 0 : i32
    %c0_i32_1 = arith.constant 0 : i32
    return %arg0, %c0_i32, %c0_i32_0 : i32, i32, i32
  }
  func.func @transform_1(%arg0: i32) -> (i32, i32) {
    %c0_i32 = arith.constant 0 : i32
    %c0_i32_0 = arith.constant 0 : i32
    %c0_i32_1 = arith.constant 0 : i32
    return %c0_i32, %c0_i32_0 : i32, i32
  }
  func.func @transform_2(%arg0: i32) -> (i32, i32, i32) {
    %c0_i32 = arith.constant 0 : i32
    %c0_i32_0 = arith.constant 0 : i32
    %c0_i32_1 = arith.constant 0 : i32
    %c0_i32_2 = arith.constant 0 : i32
    return %c0_i32, %c0_i32_0, %c0_i32_1 : i32, i32, i32
  }
  func.func @transform_3(%arg0: i32) -> (i32, i32, i32) {
    %c0_i32 = arith.constant 0 : i32
    %c0_i32_0 = arith.constant 0 : i32
    %c0_i32_1 = arith.constant 0 : i32
    %c0_i32_2 = arith.constant 0 : i32
    return %c0_i32, %c0_i32_0, %c0_i32_1 : i32, i32, i32
  }
  func.func @transform_4(%arg0: i32) -> (i32, i32, i32) {
    %c0_i32 = arith.constant 0 : i32
    %c0_i32_0 = arith.constant 0 : i32
    %c0_i32_1 = arith.constant 0 : i32
    %c0_i32_2 = arith.constant 0 : i32
    return %c0_i32, %c0_i32_0, %c0_i32_1 : i32, i32, i32
  }
  func.func @transform_5(%arg0: i32) -> (i32, i32, i32) {
    %c0_i32 = arith.constant 0 : i32
    %c0_i32_0 = arith.constant 0 : i32
    %c0_i32_1 = arith.constant 0 : i32
    %c0_i32_2 = arith.constant 0 : i32
    return %c0_i32, %c0_i32_0, %c0_i32_1 : i32, i32, i32
  }
  func.func @transform_6(%arg0: i32) -> (i32, i32, i32) {
    %c0_i32 = arith.constant 0 : i32
    %c0_i32_0 = arith.constant 0 : i32
    %c0_i32_1 = arith.constant 0 : i32
    %c0_i32_2 = arith.constant 0 : i32
    return %c0_i32, %c0_i32_0, %c0_i32_1 : i32, i32, i32
  }
  func.func @transform_7(%arg0: i32) -> (i32, i32, i32) {
    %c0_i32 = arith.constant 0 : i32
    %c0_i32_0 = arith.constant 0 : i32
    %c0_i32_1 = arith.constant 0 : i32
    %c0_i32_2 = arith.constant 0 : i32
    return %c0_i32, %c0_i32_0, %c0_i32_1 : i32, i32, i32
  }
  func.func @transform_8(%arg0: i32) -> (i32, i32) {
    %c0_i32 = arith.constant 0 : i32
    %c0_i32_0 = arith.constant 0 : i32
    %c0_i32_1 = arith.constant 0 : i32
    return %c0_i32, %c0_i32_0 : i32, i32
  }
  func.func @transform_9(%arg0: i32) -> (i32, i32) {
    %c0_i32 = arith.constant 0 : i32
    %c0_i32_0 = arith.constant 0 : i32
    %c0_i32_1 = arith.constant 0 : i32
    return %c0_i32, %c0_i32_0 : i32, i32
  }
  func.func @transform_10(%arg0: i32) -> (i32, i32, i32) {
    %c0_i32 = arith.constant 0 : i32
    %c0_i32_0 = arith.constant 0 : i32
    %c0_i32_1 = arith.constant 0 : i32
    return %arg0, %c0_i32, %c0_i32_0 : i32, i32, i32
  }
}

</mosaic_0001>

<llo_original>
// kernel: tpu_custom_call.1
$region0: #{tpu_custom_call.1}
  #allocation0 [shape = 'u32[]', space=smem, size = 0x4, offset = 0x4, fixed_abs, tag = 'smem constant byte address 0x4 - core index']
  #allocation1 [shape = 'u32[144,128]{1,0:T(1,128)}', space=vmem, size = 0x12000, scoped, tag = 'internal scratch']
  #allocation2 [shape = 'bf16[132,32]{1,0:T(8,128)(2,1)}', space=vmem, size = 0x8800, scoped, tag = 'scratch operand']
  #allocation3 [shape = 'bf16[132,32]{1,0:T(8,128)(2,1)}', space=vmem, size = 0x8800, scoped, tag = 'scratch operand']
  %s0 = inlined_call_operand.vmem [shape: bf16[2,132,32], index: 0, kind: input, shape index: {}]
  %s1 = inlined_call_operand.vmem [shape: f32[100,1], index: 1, kind: input, shape index: {}]
  %s2 = inlined_call_operand.vmem [shape: bf16[2,288,32], index: 2, kind: input, shape index: {}]
  %s3 = inlined_call_operand.vmem [shape: f32[2,1,32], index: 3, kind: input, shape index: {}]
  %s4 = inlined_call_operand.vmem [shape: f32[2,1,32], index: 4, kind: input, shape index: {}]
  %s5 = inlined_call_operand.vmem [shape: bf16[2,288,32], index: 5, kind: input, shape index: {}]
  %s6 = inlined_call_operand.vmem [shape: f32[2,1,32], index: 6, kind: input, shape index: {}]
  %s7 = inlined_call_operand.vmem [shape: f32[2,1,32], index: 7, kind: input, shape index: {}]
  %s8 = inlined_call_operand.vmem [shape: bf16[64,29], index: 8, kind: input, shape index: {}]
  %s9 = inlined_call_operand.vmem [shape: f32[1,29], index: 9, kind: input, shape index: {}]
  %s10 = inlined_call_operand.vmem [shape: f32[2,100,29], index: 10, kind: output, shape index: {}]
  %s11 = sld [smem:[#allocation0]]
  $region73: #{tpu_custom_call.1} parent=0
    _
  %s13 = ssub.s32 1, %s11
  %s14 = scalar_select 0, %s13, %s11
  loop: start=0, step=1, limit=4
  $region2: #{tpu_custom_call.1} parent=0 // loop_pre_header
    _
  $region3: #{tpu_custom_call.1} parent=0 // loop_header
    %s16 = sphi 0, %s20
    %p17 = scmp.ge.s32.totalorder %s16, 4
    %s26 = sphi 0, %s28
    %s29 = sphi 0, %s26
    %s30 = sphi 0, %s29
    %s46 = sphi 0, %s30
    %s50 = sphi 0, %s50
    %s52 = sphi 0, %s50
    %s53 = sphi 0, %s52
    %s67 = sphi 0, %s53
    %s71 = sphi 0, %s71
    %s73 = sphi 0, %s71
    %s74 = sphi 0, %s73
    %s88 = sphi 0, %s74
    %s92 = sphi 0, %s92
    %s94 = sphi 0, %s92
    %s95 = sphi 0, %s94
    %s109 = sphi 0, %s95
    %s113 = sphi 0, %s113
    %s115 = sphi 0, %s113
    %s116 = sphi 0, %s115
    %s130 = sphi 0, %s116
    %s134 = sphi 0, %s134
    %s136 = sphi 0, %s134
    %s137 = sphi 0, %s136
    %s151 = sphi 0, %s137
    %s155 = sphi 0, %s155
    %s157 = sphi 0, %s155
    %s158 = sphi 0, %s157
    %s172 = sphi 0, %s158
    %s176 = sphi 0, %s176
    %s178 = sphi 0, %s176
    %s179 = sphi 0, %s178
    %s193 = sphi 0, %s179
    %s197 = sphi 0, %s197
    %s199 = sphi 0, %s197
    %s200 = sphi 0, %s199
    %s214 = sphi 0, %s200
    %s218 = sphi 0, %s218
    %s220 = sphi 0, %s218
    %s221 = sphi 0, %s220
    %s235 = sphi 0, %s221
    %s241 = sphi 0, %s243
    %s244 = sphi 0, %s241
    %s245 = sphi 0, %s244
    %s261 = sphi 0, %s245
  $region4: #{tpu_custom_call.1} parent=0 // loop_header_branch
    %19 = sbr.rel (%p17) target = $region8
  $region5: #{tpu_custom_call.1} parent=0 // loop_body
    %s21 = ssub.s32 %s16, 1
    %s22 = ssub.s32 %s16, 2
    %s23 = sadd.s32 %s16, 1
    %s24 = ssub.s32 %s16, %s23
    %p25 = scmp.eq.s32.totalorder %s24, 0
    %s27 = sadd.s32 %s26, 1
    %s28 = scalar_select %p25, %s26, %s27
    %p31 = pneg %p25
    %p32 = scmp.eq.s32.totalorder %s16, 1
    %p33 = por %p31, %p32
    %p34 = scmp.ne.s32.totalorder %s26, %s29
    %p35 = scmp.eq.s32.totalorder %s16, 0
    %p36 = por %p34, %p35
    %p37 = scmp.ne.s32.totalorder %s26, %s29
    %p38 = scmp.eq.s32.totalorder %s21, 1
    %p39 = por %p37, %p38
    %p40 = scmp.ne.s32.totalorder %s29, %s30
    %p41 = scmp.eq.s32.totalorder %s21, 0
    %p42 = por %p40, %p41
    %p43 = scmp.ne.s32.totalorder %s29, %s30
    %p44 = scmp.eq.s32.totalorder %s22, 1
    %p45 = por %p43, %p44
    %p47 = scmp.ne.s32.totalorder %s30, %s46
    %p48 = scmp.eq.s32.totalorder %s22, 0
    %p49 = por %p47, %p48
    %s51 = sadd.s32 %s50, 1
    %p54 = scmp.eq.s32.totalorder %s16, 1
    %p55 = scmp.ne.s32.totalorder %s50, %s52
    %p56 = scmp.eq.s32.totalorder %s16, 0
    %p57 = por %p55, %p56
    %p58 = scmp.ne.s32.totalorder %s50, %s52
    %p59 = scmp.eq.s32.totalorder %s21, 1
    %p60 = por %p58, %p59
    %p61 = scmp.ne.s32.totalorder %s52, %s53
    %p62 = scmp.eq.s32.totalorder %s21, 0
    %p63 = por %p61, %p62
    %p64 = scmp.ne.s32.totalorder %s52, %s53
    %p65 = scmp.eq.s32.totalorder %s22, 1
    %p66 = por %p64, %p65
    %p68 = scmp.ne.s32.totalorder %s53, %s67
    %p69 = scmp.eq.s32.totalorder %s22, 0
    %p70 = por %p68, %p69
    %s72 = sadd.s32 %s71, 1
    %p75 = scmp.eq.s32.totalorder %s16, 1
    %p76 = scmp.ne.s32.totalorder %s71, %s73
    %p77 = scmp.eq.s32.totalorder %s16, 0
    %p78 = por %p76, %p77
    %p79 = scmp.ne.s32.totalorder %s71, %s73
    %p80 = scmp.eq.s32.totalorder %s21, 1
    %p81 = por %p79, %p80
    %p82 = scmp.ne.s32.totalorder %s73, %s74
    %p83 = scmp.eq.s32.totalorder %s21, 0
    %p84 = por %p82, %p83
    %p85 = scmp.ne.s32.totalorder %s73, %s74
    %p86 = scmp.eq.s32.totalorder %s22, 1
    %p87 = por %p85, %p86
    %p89 = scmp.ne.s32.totalorder %s74, %s88
    %p90 = scmp.eq.s32.totalorder %s22, 0
    %p91 = por %p89, %p90
    %s93 = sadd.s32 %s92, 1
    %p96 = scmp.eq.s32.totalorder %s16, 1
    %p97 = scmp.ne.s32.totalorder %s92, %s94
    %p98 = scmp.eq.s32.totalorder %s16, 0
    %p99 = por %p97, %p98
    %p100 = scmp.ne.s32.totalorder %s92, %s94
    %p101 = scmp.eq.s32.totalorder %s21, 1
    %p102 = por %p100, %p101
    %p103 = scmp.ne.s32.totalorder %s94, %s95
    %p104 = scmp.eq.s32.totalorder %s21, 0
    %p105 = por %p103, %p104
    %p106 = scmp.ne.s32.totalorder %s94, %s95
    %p107 = scmp.eq.s32.totalorder %s22, 1
    %p108 = por %p106, %p107
    %p110 = scmp.ne.s32.totalorder %s95, %s109
    %p111 = scmp.eq.s32.totalorder %s22, 0
    %p112 = por %p110, %p111
    %s114 = sadd.s32 %s113, 1
    %p117 = scmp.eq.s32.totalorder %s16, 1
    %p118 = scmp.ne.s32.totalorder %s113, %s115
    %p119 = scmp.eq.s32.totalorder %s16, 0
    %p120 = por %p118, %p119
    %p121 = scmp.ne.s32.totalorder %s113, %s115
    %p122 = scmp.eq.s32.totalorder %s21, 1
    %p123 = por %p121, %p122
    %p124 = scmp.ne.s32.totalorder %s115, %s116
    %p125 = scmp.eq.s32.totalorder %s21, 0
    %p126 = por %p124, %p125
    %p127 = scmp.ne.s32.totalorder %s115, %s116
    %p128 = scmp.eq.s32.totalorder %s22, 1
    %p129 = por %p127, %p128
    %p131 = scmp.ne.s32.totalorder %s116, %s130
    %p132 = scmp.eq.s32.totalorder %s22, 0
    %p133 = por %p131, %p132
    %s135 = sadd.s32 %s134, 1
    %p138 = scmp.eq.s32.totalorder %s16, 1
    %p139 = scmp.ne.s32.totalorder %s134, %s136
    %p140 = scmp.eq.s32.totalorder %s16, 0
    %p141 = por %p139, %p140
    %p142 = scmp.ne.s32.totalorder %s134, %s136
    %p143 = scmp.eq.s32.totalorder %s21, 1
    %p144 = por %p142, %p143
    %p145 = scmp.ne.s32.totalorder %s136, %s137
    %p146 = scmp.eq.s32.totalorder %s21, 0
    %p147 = por %p145, %p146
    %p148 = scmp.ne.s32.totalorder %s136, %s137
    %p149 = scmp.eq.s32.totalorder %s22, 1
    %p150 = por %p148, %p149
    %p152 = scmp.ne.s32.totalorder %s137, %s151
    %p153 = scmp.eq.s32.totalorder %s22, 0
    %p154 = por %p152, %p153
    %s156 = sadd.s32 %s155, 1
    %p159 = scmp.eq.s32.totalorder %s16, 1
    %p160 = scmp.ne.s32.totalorder %s155, %s157
    %p161 = scmp.eq.s32.totalorder %s16, 0
    %p162 = por %p160, %p161
    %p163 = scmp.ne.s32.totalorder %s155, %s157
    %p164 = scmp.eq.s32.totalorder %s21, 1
    %p165 = por %p163, %p164
    %p166 = scmp.ne.s32.totalorder %s157, %s158
    %p167 = scmp.eq.s32.totalorder %s21, 0
    %p168 = por %p166, %p167
    %p169 = scmp.ne.s32.totalorder %s157, %s158
    %p170 = scmp.eq.s32.totalorder %s22, 1
    %p171 = por %p169, %p170
    %p173 = scmp.ne.s32.totalorder %s158, %s172
    %p174 = scmp.eq.s32.totalorder %s22, 0
    %p175 = por %p173, %p174
    %s177 = sadd.s32 %s176, 1
    %p180 = scmp.eq.s32.totalorder %s16, 1
    %p181 = scmp.ne.s32.totalorder %s176, %s178
    %p182 = scmp.eq.s32.totalorder %s16, 0
    %p183 = por %p181, %p182
    %p184 = scmp.ne.s32.totalorder %s176, %s178
    %p185 = scmp.eq.s32.totalorder %s21, 1
    %p186 = por %p184, %p185
    %p187 = scmp.ne.s32.totalorder %s178, %s179
    %p188 = scmp.eq.s32.totalorder %s21, 0
    %p189 = por %p187, %p188
    %p190 = scmp.ne.s32.totalorder %s178, %s179
    %p191 = scmp.eq.s32.totalorder %s22, 1
    %p192 = por %p190, %p191
    %p194 = scmp.ne.s32.totalorder %s179, %s193
    %p195 = scmp.eq.s32.totalorder %s22, 0
    %p196 = por %p194, %p195
    %s198 = sadd.s32 %s197, 1
    %p201 = scmp.eq.s32.totalorder %s16, 1
    %p202 = scmp.ne.s32.totalorder %s197, %s199
    %p203 = scmp.eq.s32.totalorder %s16, 0
    %p204 = por %p202, %p203
    %p205 = scmp.ne.s32.totalorder %s197, %s199
    %p206 = scmp.eq.s32.totalorder %s21, 1
    %p207 = por %p205, %p206
    %p208 = scmp.ne.s32.totalorder %s199, %s200
    %p209 = scmp.eq.s32.totalorder %s21, 0
    %p210 = por %p208, %p209
    %p211 = scmp.ne.s32.totalorder %s199, %s200
    %p212 = scmp.eq.s32.totalorder %s22, 1
    %p213 = por %p211, %p212
    %p215 = scmp.ne.s32.totalorder %s200, %s214
    %p216 = scmp.eq.s32.totalorder %s22, 0
    %p217 = por %p215, %p216
    %s219 = sadd.s32 %s218, 1
    %p222 = scmp.eq.s32.totalorder %s16, 1
    %p223 = scmp.ne.s32.totalorder %s218, %s220
    %p224 = scmp.eq.s32.totalorder %s16, 0
    %p225 = por %p223, %p224
    %p226 = scmp.ne.s32.totalorder %s218, %s220
    %p227 = scmp.eq.s32.totalorder %s21, 1
    %p228 = por %p226, %p227
    %p229 = scmp.ne.s32.totalorder %s220, %s221
    %p230 = scmp.eq.s32.totalorder %s21, 0
    %p231 = por %p229, %p230
    %p232 = scmp.ne.s32.totalorder %s220, %s221
    %p233 = scmp.eq.s32.totalorder %s22, 1
    %p234 = por %p232, %p233
    %p236 = scmp.ne.s32.totalorder %s221, %s235
    %p237 = scmp.eq.s32.totalorder %s22, 0
    %p238 = por %p236, %p237
    %s239 = ssub.s32 %s16, %s23
    %p240 = scmp.eq.s32.totalorder %s239, 0
    %s242 = sadd.s32 %s241, 1
    %s243 = scalar_select %p240, %s241, %s242
    %p246 = pneg %p240
    %p247 = scmp.eq.s32.totalorder %s16, 1
    %p248 = por %p246, %p247
    %p249 = scmp.ne.s32.totalorder %s241, %s244
    %p250 = scmp.eq.s32.totalorder %s16, 0
    %p251 = por %p249, %p250
    %p252 = scmp.ne.s32.totalorder %s241, %s244
    %p253 = scmp.eq.s32.totalorder %s21, 1
    %p254 = por %p252, %p253
    %p255 = scmp.ne.s32.totalorder %s244, %s245
    %p256 = scmp.eq.s32.totalorder %s21, 0
    %p257 = por %p255, %p256
    %p258 = scmp.ne.s32.totalorder %s244, %s245
    %p259 = scmp.eq.s32.totalorder %s22, 1
    %p260 = por %p258, %p259
    %p262 = scmp.ne.s32.totalorder %s245, %s261
    %p263 = scmp.eq.s32.totalorder %s22, 0
    %p264 = por %p262, %p263
    %p265 = scmp.le.s32.totalorder 1, %s16
    %p266 = scmp.lt.s32.totalorder %s16, 3
    %p267 = pnand %p265, %p266
    %p268 = pneg %p267
    // Predicated region
    $region9: #{tpu_custom_call.1} parent=5 // pred_check
      _
    $region10: #{tpu_custom_call.1} parent=5 // pred_check_branch
      %270 = sbr.rel (%p267) target = $region12
    $region11: #{tpu_custom_call.1} parent=5 // pred_region
      %s271 = ssub.s32 %s16, 1
      // Predicated region
      $region13: #{tpu_custom_call.1} parent=11 // pred_check
        %p272 = pneg %p63
      $region14: #{tpu_custom_call.1} parent=11 // pred_check_branch
        %274 = sbr.rel (%p272) target = $region16
      $region15: #{tpu_custom_call.1} parent=11 // pred_region
        _
      $region16: #{tpu_custom_call.1} parent=11 // pred_fallthru
        _
      // Predicated region
      $region17: #{tpu_custom_call.1} parent=11 // pred_check
        %p275 = pneg %p84
      $region18: #{tpu_custom_call.1} parent=11 // pred_check_branch
        %277 = sbr.rel (%p275) target = $region20
      $region19: #{tpu_custom_call.1} parent=11 // pred_region
        _
      $region20: #{tpu_custom_call.1} parent=11 // pred_fallthru
        _
      // Predicated region
      $region21: #{tpu_custom_call.1} parent=11 // pred_check
        %p278 = pneg %p105
      $region22: #{tpu_custom_call.1} parent=11 // pred_check_branch
        %280 = sbr.rel (%p278) target = $region24
      $region23: #{tpu_custom_call.1} parent=11 // pred_region
        _
      $region24: #{tpu_custom_call.1} parent=11 // pred_fallthru
        _
      // Predicated region
      $region25: #{tpu_custom_call.1} parent=11 // pred_check
        %p281 = pneg %p126
      $region26: #{tpu_custom_call.1} parent=11 // pred_check_branch
        %283 = sbr.rel (%p281) target = $region28
      $region27: #{tpu_custom_call.1} parent=11 // pred_region
        _
      $region28: #{tpu_custom_call.1} parent=11 // pred_fallthru
        _
      // Predicated region
      $region29: #{tpu_custom_call.1} parent=11 // pred_check
        %p284 = pneg %p147
      $region30: #{tpu_custom_call.1} parent=11 // pred_check_branch
        %286 = sbr.rel (%p284) target = $region32
      $region31: #{tpu_custom_call.1} parent=11 // pred_region
        _
      $region32: #{tpu_custom_call.1} parent=11 // pred_fallthru
        _
      // Predicated region
      $region33: #{tpu_custom_call.1} parent=11 // pred_check
        %p287 = pneg %p168
      $region34: #{tpu_custom_call.1} parent=11 // pred_check_branch
        %289 = sbr.rel (%p287) target = $region36
      $region35: #{tpu_custom_call.1} parent=11 // pred_region
        _
      $region36: #{tpu_custom_call.1} parent=11 // pred_fallthru
        _
      // Predicated region
      $region37: #{tpu_custom_call.1} parent=11 // pred_check
        %p290 = pneg %p189
      $region38: #{tpu_custom_call.1} parent=11 // pred_check_branch
        %292 = sbr.rel (%p290) target = $region40
      $region39: #{tpu_custom_call.1} parent=11 // pred_region
        _
      $region40: #{tpu_custom_call.1} parent=11 // pred_fallthru
        _
      // Predicated region
      $region41: #{tpu_custom_call.1} parent=11 // pred_check
        %p293 = pneg %p210
      $region42: #{tpu_custom_call.1} parent=11 // pred_check_branch
        %295 = sbr.rel (%p293) target = $region44
      $region43: #{tpu_custom_call.1} parent=11 // pred_region
        _
      $region44: #{tpu_custom_call.1} parent=11 // pred_fallthru
        _
      // Predicated region
      $region45: #{tpu_custom_call.1} parent=11 // pred_check
        %p296 = pneg %p231
      $region46: #{tpu_custom_call.1} parent=11 // pred_check_branch
        %298 = sbr.rel (%p296) target = $region48
      $region47: #{tpu_custom_call.1} parent=11 // pred_region
        _
      $region48: #{tpu_custom_call.1} parent=11 // pred_fallthru
        _
    $region12: #{tpu_custom_call.1} parent=5 // pred_fallthru
      _
    %p299 = scmp.lt.s32.totalorder %s16, 2
    // Predicated region
    $region49: #{tpu_custom_call.1} parent=5 // pred_check
      %p300 = pneg %p299
    $region50: #{tpu_custom_call.1} parent=5 // pred_check_branch
      %302 = sbr.rel (%p300) target = $region52
    $region51: #{tpu_custom_call.1} parent=5 // pred_region
      // Predicated region
      $region53: #{tpu_custom_call.1} parent=51 // pred_check
        %p303 = pneg %p36
      $region54: #{tpu_custom_call.1} parent=51 // pred_check_branch
        %305 = sbr.rel (%p303) target = $region56
      $region55: #{tpu_custom_call.1} parent=51 // pred_region
        %p306 = scmp.lt.s32.totalorder %s16, 1
        %s307 = scalar_select %p306, %s16, 1
        %s308 = smul.addr %s307, 17
        %s309 = smul.addr %s308, 4
        %s310 = scalar_lea.vmem %s0, %s309
      $region56: #{tpu_custom_call.1} parent=51 // pred_fallthru
        _
    $region52: #{tpu_custom_call.1} parent=5 // pred_fallthru
      _
    %p311 = scmp.le.s32.totalorder 1, %s16
    %p312 = scmp.lt.s32.totalorder %s16, 3
    %p313 = pnand %p311, %p312
    %p314 = pneg %p313
    // Predicated region
    $region57: #{tpu_custom_call.1} parent=5 // pred_check
      _
    $region58: #{tpu_custom_call.1} parent=5 // pred_check_branch
      %316 = sbr.rel (%p313) target = $region60
    $region59: #{tpu_custom_call.1} parent=5 // pred_region
      %s317 = ssub.s32 %s16, 1
      %p318 = scmp.lt.s32.totalorder %s21, 1
      %s319 = scalar_select %p318, %s21, 1
      %s320 = smul.addr %s319, 17
      %s321 = smul.addr %s320, 4
      %s322 = scalar_lea.vmem %s0, %s321
      %p323 = pneg %p42
      %p324 = pneg %p39
      %p325 = pneg %p63
      %p326 = pneg %p60
      %p327 = pneg %p84
      %p328 = pneg %p81
      %p329 = pneg %p105
      %p330 = pneg %p102
      %p331 = pneg %p126
      %p332 = pneg %p123
      %p333 = pneg %p147
      %p334 = pneg %p144
      %p335 = pneg %p168
      %p336 = pneg %p165
      %p337 = pneg %p189
      %p338 = pneg %p186
      %p339 = pneg %p210
      %p340 = pneg %p207
      %p341 = pneg %p231
      %p342 = pneg %p228
      %p343 = pneg %p257
      %p344 = pneg %p254
      %p345 = scmp.lt.s32.totalorder %s21, 1
      %s346 = scalar_select %p345, %s21, 1
      %s347 = smul.addr %s346, 13
      %s348 = smul.addr %s347, 8
      %s349 = scalar_lea.vmem %s10, %s348
      %p350 = scmp.lt.s32.totalorder %s21, 1
      %s351 = scalar_select %p350, %s21, 1
      %s352 = smul.addr %s351, 17
      %s353 = smul.addr %s352, 4
      %s354 = scalar_lea.vmem %s0, %s353
      %p355 = scmp.lt.s32.totalorder %s21, 1
      %s356 = scalar_select %p355, %s21, 1
      %s357 = smul.addr %s356, 13
      %s358 = smul.addr %s357, 8
      %s359 = scalar_lea.vmem %s10, %s358
      %v361 = vld [vmem:[%s1] sm:$0xff]
      %v362 = vld [vmem:[%s1 + $0x8] sm:$0xff]
      %v363 = vld [vmem:[%s1 + $0x10] sm:$0xff]
      %v364 = vld [vmem:[%s1 + $0x18] sm:$0xff]
      %v365 = vld [vmem:[%s1 + $0x20] sm:$0xff]
      %v366 = vld [vmem:[%s1 + $0x28] sm:$0xff]
      %v367 = vld [vmem:[%s1 + $0x30] sm:$0xff]
      %v368 = vld [vmem:[%s1 + $0x38] sm:$0xff]
      %v369 = vld [vmem:[%s1 + $0x40] sm:$0xff]
      %v370 = vld [vmem:[%s1 + $0x48] sm:$0xff]
      %v371 = vld [vmem:[%s1 + $0x50] sm:$0xff]
      %v372 = vld [vmem:[%s1 + $0x58] sm:$0xff]
      %v373 = vld [vmem:[%s1 + $0x60] sm:$0xf]
      %vm374 = vcmp.gt.f32.partialorder %v361, 0.5
      %vm375 = vcmp.gt.f32.partialorder %v362, 0.5
      %vm376 = vcmp.gt.f32.partialorder %v363, 0.5
      %vm377 = vcmp.gt.f32.partialorder %v364, 0.5
      %vm378 = vcmp.gt.f32.partialorder %v365, 0.5
      %vm379 = vcmp.gt.f32.partialorder %v366, 0.5
      %vm380 = vcmp.gt.f32.partialorder %v367, 0.5
      %vm381 = vcmp.gt.f32.partialorder %v368, 0.5
      %vm382 = vcmp.gt.f32.partialorder %v369, 0.5
      %vm383 = vcmp.gt.f32.partialorder %v370, 0.5
      %vm384 = vcmp.gt.f32.partialorder %v371, 0.5
      %vm385 = vcmp.gt.f32.partialorder %v372, 0.5
      %vm386 = vcmp.gt.f32.partialorder %v373, 0.5
      %vm387 = vcmask 257024
      %388 = vst.msk [vmem:[#allocation2] sm:$0xf] %vm387, 0
      %389 = vst.msk [vmem:[#allocation2 + $0x4] sm:$0xf] %vm387, 0
      %vm390 = vcmask 257026
      %391 = vst.msk [vmem:[#allocation2 + $0x38] sm:$0xc] %vm390, 0
      %392 = vst.msk [vmem:[#allocation2 + $0x3c] sm:$0xf] %vm387, 0
      %vm393 = vcmask 254976
      %394 = vst.msk [vmem:[#allocation2 + $0x40] sm:$0x3] %vm393, 0
      %v395 = vld [vmem:[%s2] sm:$0xf]
      %v396 = vld [vmem:[%s2 + $0x4] sm:$0xf]
      %v397 = vld [vmem:[%s2 + $0x8] sm:$0xf]
      %v398 = vld [vmem:[%s2 + $0xc] sm:$0xf]
      %v399 = vld [vmem:[%s2 + $0x10] sm:$0xf]
      %v400 = vld [vmem:[%s2 + $0x14] sm:$0xf]
      %v401 = vld [vmem:[%s2 + $0x18] sm:$0xf]
      %v402 = vld [vmem:[%s2 + $0x1c] sm:$0xf]
      %v403 = vld [vmem:[%s2 + $0x20] sm:$0xf]
      %v404 = vld [vmem:[%s2 + $0x24] sm:$0xf]
      %v405 = vld [vmem:[%s2 + $0x28] sm:$0xf]
      %v406 = vld [vmem:[%s2 + $0x2c] sm:$0xf]
      %v407 = vld [vmem:[%s2 + $0x30] sm:$0xf]
      %v408 = vld [vmem:[%s2 + $0x34] sm:$0xf]
      %v409 = vld [vmem:[%s2 + $0x38] sm:$0xf]
      %v410 = vld [vmem:[%s2 + $0x3c] sm:$0xf]
      %v411 = vld [vmem:[%s2 + $0x40] sm:$0xf]
      %v412 = vld [vmem:[%s2 + $0x44] sm:$0xf]
      %v413 = vld [vmem:[%s2 + $0x48] sm:$0xf]
      %v414 = vld [vmem:[%s2 + $0x4c] sm:$0xf]
      %v415 = vld [vmem:[%s2 + $0x50] sm:$0xf]
      %v416 = vld [vmem:[%s2 + $0x54] sm:$0xf]
      %v417 = vld [vmem:[%s2 + $0x58] sm:$0xf]
      %v418 = vld [vmem:[%s2 + $0x5c] sm:$0xf]
      %v419 = vld [vmem:[%s2 + $0x60] sm:$0xf]
      %v420 = vld [vmem:[%s2 + $0x64] sm:$0xf]
      %v421 = vld [vmem:[%s2 + $0x68] sm:$0xf]
      %v422 = vld [vmem:[%s2 + $0x6c] sm:$0xf]
      %v423 = vld [vmem:[%s2 + $0x70] sm:$0xf]
      %v424 = vld [vmem:[%s2 + $0x74] sm:$0xf]
      %v425 = vld [vmem:[%s2 + $0x78] sm:$0xf]
      %v426 = vld [vmem:[%s2 + $0x7c] sm:$0xf]
      %v427 = vld [vmem:[%s2 + $0x80] sm:$0xf]
      %v428 = vld [vmem:[%s2 + $0x84] sm:$0xf]
      %v429 = vld [vmem:[%s2 + $0x88] sm:$0xf]
      %v430 = vld [vmem:[%s2 + $0x8c] sm:$0xf]
      %v431 = vld [vmem:[%s354] sm:$0xc]
      %v432 = vld [vmem:[%s354 + $0x4] sm:$0xf]
      %v433 = vld [vmem:[%s354 + $0x8] sm:$0xf]
      %v434 = vld [vmem:[%s354 + $0xc] sm:$0xf]
      %v435 = vld [vmem:[%s354 + $0x10] sm:$0xf]
      %v436 = vld [vmem:[%s354 + $0x14] sm:$0xf]
      %v437 = vld [vmem:[%s354 + $0x18] sm:$0xf]
      %v438 = vld [vmem:[%s354 + $0x1c] sm:$0xf]
      %v439 = vld [vmem:[%s354 + $0x20] sm:$0xf]
      %v440 = vld [vmem:[%s354 + $0x24] sm:$0xf]
      %v441 = vld [vmem:[%s354 + $0x28] sm:$0xf]
      %v442 = vld [vmem:[%s354 + $0x2c] sm:$0xf]
      %v443 = vld [vmem:[%s354 + $0x30] sm:$0xf]
      %v444 = vld [vmem:[%s354 + $0x34] sm:$0x1]
      %v445 = vld [vmem:[%s354] sm:$0x8]
      %v446 = vld [vmem:[%s354 + $0x34] sm:$0x3]
      %v447 = vld [vmem:[%s354 + $0x4] sm:$0x8]
      %v448 = vld [vmem:[%s354 + $0x34] sm:$0xf]
      %v449 = vld [vmem:[%s354 + $0x38] sm:$0x3]
      %v450 = vld [vmem:[%s354 + $0x38] sm:$0x7]
      %v451 = vld [vmem:[%s354 + $0x38] sm:$0xf]
      %v452 = vld [vmem:[%s354 + $0x3c] sm:$0x7]
      %v453 = vld [vmem:[%s354 + $0xc] sm:$0xe]
      %v454 = vld [vmem:[%s354 + $0x3c] sm:$0xf]
      %v469 = vunpack.c.l.b16 %v431
      %v470 = vunpack.c.l.b16 %v432
      %v471 = vunpack.c.l.b16 %v433
      %v472 = vunpack.c.l.b16 %v434
      %v473 = vunpack.c.l.b16 %v435
      %v474 = vunpack.c.l.b16 %v436
      %v475 = vunpack.c.l.b16 %v437
      %v476 = vunpack.c.l.b16 %v438
      %v477 = vunpack.c.l.b16 %v439
      %v478 = vunpack.c.l.b16 %v440
      %v479 = vunpack.c.l.b16 %v441
      %v480 = vunpack.c.l.b16 %v442
      %v481 = vunpack.c.l.b16 %v443
      %v482 = vunpack.c.l.b16 %v444
      %v483 = vpack.c.b16 %v470, %v469
      %v484 = vpack.c.b16 %v472, %v471
      %v485 = vpack.c.b16 %v474, %v473
      %v486 = vpack.c.b16 %v476, %v475
      %v487 = vpack.c.b16 %v478, %v477
      %v488 = vpack.c.b16 %v480, %v479
      %v489 = vpack.c.b16 %v482, %v481
      %v491 = vunpack.c.l.b16 %v445
      %v492 = vpack.c.b16 %v470, %v491
      %vm493 = vsmask.f32 7424
      %v495 = vshrl.u32 %v492, 16
      %v497 = vshll.u32 %v492, 16
      %v499 = vrot.slane %v497, 1
      %v500 = vor.u32 %v495, %v499
      %v502 = vshll.u32 %v484, 16
      %v504 = vrot.slane %v502, 1
      %v505 = vsel %vm493, %v500, %v504
      %v506 = vshrl.u32 %v484, 16
      %v508 = vor.u32 %v506, %v504
      %v510 = vshll.u32 %v485, 16
      %v512 = vrot.slane %v510, 1
      %v513 = vsel %vm493, %v508, %v512
      %v514 = vshrl.u32 %v485, 16
      %v516 = vor.u32 %v514, %v512
      %v518 = vshll.u32 %v486, 16
      %v520 = vrot.slane %v518, 1
      %v521 = vsel %vm493, %v516, %v520
      %v522 = vshrl.u32 %v486, 16
      %v524 = vor.u32 %v522, %v520
      %v526 = vshll.u32 %v487, 16
      %v528 = vrot.slane %v526, 1
      %v529 = vsel %vm493, %v524, %v528
      %v530 = vshrl.u32 %v487, 16
      %v532 = vor.u32 %v530, %v528
      %v534 = vshll.u32 %v488, 16
      %v536 = vrot.slane %v534, 1
      %v537 = vsel %vm493, %v532, %v536
      %v538 = vshrl.u32 %v488, 16
      %v540 = vor.u32 %v538, %v536
      %v542 = vshll.u32 %v489, 16
      %v544 = vrot.slane %v542, 1
      %v545 = vsel %vm493, %v540, %v544
      %v546 = vshrl.u32 %v489, 16
      %v548 = vor.u32 %v546, %v544
      %549 = vrot.lane.b32.xlu0 %v505, 32
      %v550 = vpop.permute.xlu0 %549
      %551 = vrot.lane.b32.xlu0 %v513, 32
      %v552 = vpop.permute.xlu0 %551
      %553 = vrot.lane.b32.xlu0 %v521, 32
      %v554 = vpop.permute.xlu0 %553
      %555 = vrot.lane.b32.xlu0 %v529, 32
      %v556 = vpop.permute.xlu0 %555
      %557 = vrot.lane.b32.xlu0 %v537, 32
      %v558 = vpop.permute.xlu0 %557
      %559 = vrot.lane.b32.xlu0 %v545, 32
      %v560 = vpop.permute.xlu0 %559
      %561 = vrot.lane.b32.xlu0 %v548, 32
      %v562 = vpop.permute.xlu0 %561
      %v564 = vunpack.c.l.b16 %v446
      %v565 = vpack.c.b16 %v564, %v481
      %vm566 = vcmask 1046528
      %v567 = vrot.slane %v492, 1
      %v568 = vrot.slane %v484, 1
      %v569 = vsel %vm566, %v567, %v568
      %v570 = vrot.slane %v485, 1
      %v571 = vsel %vm566, %v568, %v570
      %v572 = vrot.slane %v486, 1
      %v573 = vsel %vm566, %v570, %v572
      %v574 = vrot.slane %v487, 1
      %v575 = vsel %vm566, %v572, %v574
      %v576 = vrot.slane %v488, 1
      %v577 = vsel %vm566, %v574, %v576
      %v578 = vrot.slane %v565, 1
      %v579 = vsel %vm566, %v576, %v578
      %580 = vrot.lane.b32.xlu0 %v569, 64
      %v581 = vpop.permute.xlu0 %580
      %582 = vrot.lane.b32.xlu0 %v571, 64
      %v583 = vpop.permute.xlu0 %582
      %584 = vrot.lane.b32.xlu0 %v573, 64
      %v585 = vpop.permute.xlu0 %584
      %586 = vrot.lane.b32.xlu0 %v575, 64
      %v587 = vpop.permute.xlu0 %586
      %588 = vrot.lane.b32.xlu0 %v577, 64
      %v589 = vpop.permute.xlu0 %588
      %590 = vrot.lane.b32.xlu0 %v579, 64
      %v591 = vpop.permute.xlu0 %590
      %592 = vrot.lane.b32.xlu0 %v578, 64
      %v593 = vpop.permute.xlu0 %592
      %v597 = vunpack.c.l.b16 %v447
      %v598 = vunpack.c.l.b16 %v448
      %v599 = vunpack.c.l.b16 %v449
      %v600 = vpack.c.b16 %v471, %v597
      %v601 = vpack.c.b16 %v473, %v472
      %v602 = vpack.c.b16 %v475, %v474
      %v603 = vpack.c.b16 %v477, %v476
      %v604 = vpack.c.b16 %v479, %v478
      %v605 = vpack.c.b16 %v481, %v480
      %v606 = vpack.c.b16 %v599, %v598
      %v607 = vrot.slane %v600, 1
      %v608 = vrot.slane %v601, 1
      %v609 = vsel %vm566, %v607, %v608
      %v610 = vrot.slane %v602, 1
      %v611 = vsel %vm566, %v608, %v610
      %v612 = vrot.slane %v603, 1
      %v613 = vsel %vm566, %v610, %v612
      %v614 = vrot.slane %v604, 1
      %v615 = vsel %vm566, %v612, %v614
      %v616 = vrot.slane %v605, 1
      %v617 = vsel %vm566, %v614, %v616
      %v618 = vrot.slane %v606, 1
      %v619 = vsel %vm566, %v616, %v618
      %620 = vrot.lane.b32.xlu0 %v609, 96
      %v621 = vpop.permute.xlu0 %620
      %622 = vrot.lane.b32.xlu0 %v611, 96
      %v623 = vpop.permute.xlu0 %622
      %624 = vrot.lane.b32.xlu0 %v613, 96
      %v625 = vpop.permute.xlu0 %624
      %626 = vrot.lane.b32.xlu0 %v615, 96
      %v627 = vpop.permute.xlu0 %626
      %628 = vrot.lane.b32.xlu0 %v617, 96
      %v629 = vpop.permute.xlu0 %628
      %630 = vrot.lane.b32.xlu0 %v619, 96
      %v631 = vpop.permute.xlu0 %630
      %632 = vrot.lane.b32.xlu0 %v618, 96
      %v633 = vpop.permute.xlu0 %632
      %v634 = vpack.c.b16 %v598, %v481
      %v635 = vpack.c.b16 %v599, %v599
      %vm636 = vsmask.f32 2304
      %v637 = vrot.slane %v506, 5
      %v638 = vrot.slane %v502, 6
      %v639 = vor.u32 %v637, %v638
      %v640 = vrot.slane %v514, 5
      %v641 = vrot.slane %v510, 6
      %v642 = vor.u32 %v640, %v641
      %v643 = vsel %vm636, %v639, %v642
      %v644 = vrot.slane %v522, 5
      %v645 = vrot.slane %v518, 6
      %v646 = vor.u32 %v644, %v645
      %v647 = vsel %vm636, %v642, %v646
      %v648 = vrot.slane %v530, 5
      %v649 = vrot.slane %v526, 6
      %v650 = vor.u32 %v648, %v649
      %v651 = vsel %vm636, %v646, %v650
      %v652 = vrot.slane %v538, 5
      %v653 = vrot.slane %v534, 6
      %v654 = vor.u32 %v652, %v653
      %v655 = vsel %vm636, %v650, %v654
      %v657 = vshrl.u32 %v634, 16
      %v659 = vrot.slane %v657, 5
      %v660 = vshll.u32 %v634, 16
      %v662 = vrot.slane %v660, 6
      %v663 = vor.u32 %v659, %v662
      %v664 = vsel %vm636, %v654, %v663
      %v666 = vshrl.u32 %v635, 16
      %v668 = vrot.slane %v666, 5
      %v669 = vshll.u32 %v635, 16
      %v671 = vrot.slane %v669, 6
      %v672 = vor.u32 %v668, %v671
      %v673 = vsel %vm636, %v663, %v672
      %v675 = vunpack.c.l.b16 %v450
      %v676 = vpack.c.b16 %v675, %v675
      %vm677 = vcmask 1041408
      %v678 = vrot.slane %v484, 6
      %v679 = vrot.slane %v485, 6
      %v680 = vsel %vm677, %v678, %v679
      %v681 = vrot.slane %v486, 6
      %v682 = vsel %vm677, %v679, %v681
      %v683 = vrot.slane %v487, 6
      %v684 = vsel %vm677, %v681, %v683
      %v685 = vrot.slane %v488, 6
      %v686 = vsel %vm677, %v683, %v685
      %v687 = vrot.slane %v634, 6
      %v688 = vsel %vm677, %v685, %v687
      %v689 = vrot.slane %v676, 6
      %v690 = vsel %vm677, %v687, %v689
      %691 = vrot.lane.b32.xlu0 %v678, 32
      %v692 = vpop.permute.xlu0 %691
      %693 = vrot.lane.b32.xlu0 %v680, 32
      %v694 = vpop.permute.xlu0 %693
      %695 = vrot.lane.b32.xlu0 %v682, 32
      %v696 = vpop.permute.xlu0 %695
      %697 = vrot.lane.b32.xlu0 %v684, 32
      %v698 = vpop.permute.xlu0 %697
      %699 = vrot.lane.b32.xlu0 %v686, 32
      %v700 = vpop.permute.xlu0 %699
      %701 = vrot.lane.b32.xlu0 %v688, 32
      %v702 = vpop.permute.xlu0 %701
      %703 = vrot.lane.b32.xlu0 %v690, 32
      %v704 = vpop.permute.xlu0 %703
      %v707 = vunpack.c.l.b16 %v451
      %v708 = vunpack.c.l.b16 %v452
      %v709 = vpack.c.b16 %v707, %v598
      %v710 = vpack.c.b16 %v708, %v708
      %v711 = vrot.slane %v601, 6
      %v712 = vrot.slane %v602, 6
      %v713 = vsel %vm677, %v711, %v712
      %v714 = vrot.slane %v603, 6
      %v715 = vsel %vm677, %v712, %v714
      %v716 = vrot.slane %v604, 6
      %v717 = vsel %vm677, %v714, %v716
      %v718 = vrot.slane %v605, 6
      %v719 = vsel %vm677, %v716, %v718
      %v720 = vrot.slane %v709, 6
      %v721 = vsel %vm677, %v718, %v720
      %v722 = vrot.slane %v710, 6
      %v723 = vsel %vm677, %v720, %v722
      %724 = vrot.lane.b32.xlu0 %v711, 64
      %v725 = vpop.permute.xlu0 %724
      %726 = vrot.lane.b32.xlu0 %v713, 64
      %v727 = vpop.permute.xlu0 %726
      %728 = vrot.lane.b32.xlu0 %v715, 64
      %v729 = vpop.permute.xlu0 %728
      %730 = vrot.lane.b32.xlu0 %v717, 64
      %v731 = vpop.permute.xlu0 %730
      %732 = vrot.lane.b32.xlu0 %v719, 64
      %v733 = vpop.permute.xlu0 %732
      %734 = vrot.lane.b32.xlu0 %v721, 64
      %v735 = vpop.permute.xlu0 %734
      %736 = vrot.lane.b32.xlu0 %v723, 64
      %v737 = vpop.permute.xlu0 %736
      %v739 = vunpack.c.l.b16 %v453
      %v740 = vpack.c.b16 %v473, %v739
      %vm741 = vsmask.f32 1280
      %v743 = vshrl.u32 %v740, 16
      %v745 = vrot.slane %v743, 6
      %v746 = vshll.u32 %v740, 16
      %v748 = vrot.slane %v746, 7
      %v749 = vor.u32 %v745, %v748
      %v751 = vshrl.u32 %v602, 16
      %v753 = vrot.slane %v751, 6
      %v754 = vshll.u32 %v602, 16
      %v756 = vrot.slane %v754, 7
      %v757 = vor.u32 %v753, %v756
      %v758 = vsel %vm741, %v749, %v757
      %v760 = vshrl.u32 %v603, 16
      %v762 = vrot.slane %v760, 6
      %v763 = vshll.u32 %v603, 16
      %v765 = vrot.slane %v763, 7
      %v766 = vor.u32 %v762, %v765
      %v767 = vsel %vm741, %v757, %v766
      %v769 = vshrl.u32 %v604, 16
      %v771 = vrot.slane %v769, 6
      %v772 = vshll.u32 %v604, 16
      %v774 = vrot.slane %v772, 7
      %v775 = vor.u32 %v771, %v774
      %v776 = vsel %vm741, %v766, %v775
      %v778 = vshrl.u32 %v605, 16
      %v780 = vrot.slane %v778, 6
      %v781 = vshll.u32 %v605, 16
      %v783 = vrot.slane %v781, 7
      %v784 = vor.u32 %v780, %v783
      %v785 = vsel %vm741, %v775, %v784
      %v787 = vshrl.u32 %v709, 16
      %v789 = vrot.slane %v787, 6
      %v790 = vshll.u32 %v709, 16
      %v792 = vrot.slane %v790, 7
      %v793 = vor.u32 %v789, %v792
      %v794 = vsel %vm741, %v784, %v793
      %v796 = vshrl.u32 %v710, 16
      %v798 = vrot.slane %v796, 6
      %v799 = vshll.u32 %v710, 16
      %v801 = vrot.slane %v799, 7
      %v802 = vor.u32 %v798, %v801
      %v803 = vsel %vm741, %v793, %v802
      %804 = vrot.lane.b32.xlu0 %v749, 96
      %v805 = vpop.permute.xlu0 %804
      %806 = vrot.lane.b32.xlu0 %v758, 96
      %v807 = vpop.permute.xlu0 %806
      %808 = vrot.lane.b32.xlu0 %v767, 96
      %v809 = vpop.permute.xlu0 %808
      %810 = vrot.lane.b32.xlu0 %v776, 96
      %v811 = vpop.permute.xlu0 %810
      %812 = vrot.lane.b32.xlu0 %v785, 96
      %v813 = vpop.permute.xlu0 %812
      %814 = vrot.lane.b32.xlu0 %v794, 96
      %v815 = vpop.permute.xlu0 %814
      %816 = vrot.lane.b32.xlu0 %v803, 96
      %v817 = vpop.permute.xlu0 %816
      %v819 = vunpack.c.l.b16 %v454
      %v820 = vpack.c.b16 %v819, %v819
      %vm821 = vcmask 1040384
      %v822 = vrot.slane %v740, 7
      %v823 = vrot.slane %v602, 7
      %v824 = vsel %vm821, %v822, %v823
      %v825 = vrot.slane %v603, 7
      %v826 = vsel %vm821, %v823, %v825
      %v827 = vrot.slane %v604, 7
      %v828 = vsel %vm821, %v825, %v827
      %v829 = vrot.slane %v605, 7
      %v830 = vsel %vm821, %v827, %v829
      %v831 = vrot.slane %v709, 7
      %v832 = vsel %vm821, %v829, %v831
      %v833 = vrot.slane %v820, 7
      %v834 = vsel %vm821, %v831, %v833
      %vm835 = vcmask 261120
      %v838 = vsel %vm835, %v483, %v550
      %v840 = vsel %vm835, %v484, %v552
      %v842 = vsel %vm835, %v485, %v554
      %v844 = vsel %vm835, %v486, %v556
      %v846 = vsel %vm835, %v487, %v558
      %v848 = vsel %vm835, %v488, %v560
      %v850 = vsel %vm835, %v489, %v562
      %vm851 = vcmask 523264
      %v853 = vsel %vm851, %v838, %v581
      %v855 = vsel %vm851, %v840, %v583
      %v857 = vsel %vm851, %v842, %v585
      %v859 = vsel %vm851, %v844, %v587
      %v861 = vsel %vm851, %v846, %v589
      %v863 = vsel %vm851, %v848, %v591
      %v865 = vsel %vm851, %v850, %v593
      %vm866 = vcmask 785408
      %v868 = vsel %vm866, %v853, %v621
      %v870 = vsel %vm866, %v855, %v623
      %v872 = vsel %vm866, %v857, %v625
      %v874 = vsel %vm866, %v859, %v627
      %v876 = vsel %vm866, %v861, %v629
      %v878 = vsel %vm866, %v863, %v631
      %v880 = vsel %vm866, %v865, %v633
      %v883 = vsel %vm835, %v639, %v692
      %v886 = vsel %vm835, %v643, %v694
      %v889 = vsel %vm835, %v647, %v696
      %v892 = vsel %vm835, %v651, %v698
      %v895 = vsel %vm835, %v655, %v700
      %v898 = vsel %vm835, %v664, %v702
      %v901 = vsel %vm835, %v673, %v704
      %v903 = vsel %vm851, %v883, %v725
      %v905 = vsel %vm851, %v886, %v727
      %v907 = vsel %vm851, %v889, %v729
      %v909 = vsel %vm851, %v892, %v731
      %v911 = vsel %vm851, %v895, %v733
      %v913 = vsel %vm851, %v898, %v735
      %v915 = vsel %vm851, %v901, %v737
      %v917 = vsel %vm866, %v903, %v805
      %v919 = vsel %vm866, %v905, %v807
      %v921 = vsel %vm866, %v907, %v809
      %v923 = vsel %vm866, %v909, %v811
      %v925 = vsel %vm866, %v911, %v813
      %v927 = vsel %vm866, %v913, %v815
      %v929 = vsel %vm866, %v915, %v817
      %vm930 = vsmask.f32 5376
      %v931 = vshrl.u32 %v868, 16
      %v933 = vrot.slane %v931, 2
      %v934 = vshll.u32 %v868, 16
      %v936 = vrot.slane %v934, 3
      %v937 = vor.u32 %v933, %v936
      %v938 = vshrl.u32 %v870, 16
      %v940 = vrot.slane %v938, 2
      %v941 = vshll.u32 %v870, 16
      %v943 = vrot.slane %v941, 3
      %v944 = vor.u32 %v940, %v943
      %v945 = vsel %vm930, %v937, %v944
      %v946 = vshrl.u32 %v917, 16
      %v948 = vrot.slane %v946, 2
      %v949 = vshll.u32 %v917, 16
      %v951 = vrot.slane %v949, 3
      %v952 = vor.u32 %v948, %v951
      %v953 = vshrl.u32 %v919, 16
      %v955 = vrot.slane %v953, 2
      %v956 = vshll.u32 %v919, 16
      %v958 = vrot.slane %v956, 3
      %v959 = vor.u32 %v955, %v958
      %v960 = vsel %vm930, %v952, %v959
      %v962 = vshrl.u32 %v822, 16
      %v964 = vrot.slane %v962, 2
      %v965 = vshll.u32 %v822, 16
      %v967 = vrot.slane %v965, 3
      %v968 = vor.u32 %v964, %v967
      %v970 = vshrl.u32 %v824, 16
      %v972 = vrot.slane %v970, 2
      %v973 = vshll.u32 %v824, 16
      %v975 = vrot.slane %v973, 3
      %v976 = vor.u32 %v972, %v975
      %v977 = vsel %vm930, %v968, %v976
      %v978 = vshrl.u32 %v872, 16
      %v980 = vrot.slane %v978, 2
      %v981 = vshll.u32 %v872, 16
      %v983 = vrot.slane %v981, 3
      %v984 = vor.u32 %v980, %v983
      %v985 = vsel %vm930, %v944, %v984
      %v986 = vshrl.u32 %v921, 16
      %v988 = vrot.slane %v986, 2
      %v989 = vshll.u32 %v921, 16
      %v991 = vrot.slane %v989, 3
      %v992 = vor.u32 %v988, %v991
      %v993 = vsel %vm930, %v959, %v992
      %v995 = vshrl.u32 %v826, 16
      %v997 = vrot.slane %v995, 2
      %v998 = vshll.u32 %v826, 16
      %v1000 = vrot.slane %v998, 3
      %v1001 = vor.u32 %v997, %v1000
      %v1002 = vsel %vm930, %v976, %v1001
      %v1003 = vshrl.u32 %v874, 16
      %v1005 = vrot.slane %v1003, 2
      %v1006 = vshll.u32 %v874, 16
      %v1008 = vrot.slane %v1006, 3
      %v1009 = vor.u32 %v1005, %v1008
      %v1010 = vsel %vm930, %v984, %v1009
      %v1011 = vshrl.u32 %v923, 16
      %v1013 = vrot.slane %v1011, 2
      %v1014 = vshll.u32 %v923, 16
      %v1016 = vrot.slane %v1014, 3
      %v1017 = vor.u32 %v1013, %v1016
      %v1018 = vsel %vm930, %v992, %v1017
      %v1020 = vshrl.u32 %v828, 16
      %v1022 = vrot.slane %v1020, 2
      %v1023 = vshll.u32 %v828, 16
      %v1025 = vrot.slane %v1023, 3
      %v1026 = vor.u32 %v1022, %v1025
      %v1027 = vsel %vm930, %v1001, %v1026
      %v1028 = vshrl.u32 %v876, 16
      %v1030 = vrot.slane %v1028, 2
      %v1031 = vshll.u32 %v876, 16
      %v1033 = vrot.slane %v1031, 3
      %v1034 = vor.u32 %v1030, %v1033
      %v1035 = vsel %vm930, %v1009, %v1034
      %v1036 = vshrl.u32 %v925, 16
      %v1038 = vrot.slane %v1036, 2
      %v1039 = vshll.u32 %v925, 16
      %v1041 = vrot.slane %v1039, 3
      %v1042 = vor.u32 %v1038, %v1041
      %v1043 = vsel %vm930, %v1017, %v1042
      %v1045 = vshrl.u32 %v830, 16
      %v1047 = vrot.slane %v1045, 2
      %v1048 = vshll.u32 %v830, 16
      %v1050 = vrot.slane %v1048, 3
      %v1051 = vor.u32 %v1047, %v1050
      %v1052 = vsel %vm930, %v1026, %v1051
      %v1053 = vshrl.u32 %v878, 16
      %v1055 = vrot.slane %v1053, 2
      %v1056 = vshll.u32 %v878, 16
      %v1058 = vrot.slane %v1056, 3
      %v1059 = vor.u32 %v1055, %v1058
      %v1060 = vsel %vm930, %v1034, %v1059
      %v1061 = vshrl.u32 %v927, 16
      %v1063 = vrot.slane %v1061, 2
      %v1064 = vshll.u32 %v927, 16
      %v1066 = vrot.slane %v1064, 3
      %v1067 = vor.u32 %v1063, %v1066
      %v1068 = vsel %vm930, %v1042, %v1067
      %v1070 = vshrl.u32 %v832, 16
      %v1072 = vrot.slane %v1070, 2
      %v1073 = vshll.u32 %v832, 16
      %v1075 = vrot.slane %v1073, 3
      %v1076 = vor.u32 %v1072, %v1075
      %v1077 = vsel %vm930, %v1051, %v1076
      %v1078 = vshrl.u32 %v880, 16
      %v1080 = vrot.slane %v1078, 2
      %v1081 = vshll.u32 %v880, 16
      %v1083 = vrot.slane %v1081, 3
      %v1084 = vor.u32 %v1080, %v1083
      %v1085 = vsel %vm930, %v1059, %v1084
      %v1086 = vshrl.u32 %v929, 16
      %v1088 = vrot.slane %v1086, 2
      %v1089 = vshll.u32 %v929, 16
      %v1091 = vrot.slane %v1089, 3
      %v1092 = vor.u32 %v1088, %v1091
      %v1093 = vsel %vm930, %v1067, %v1092
      %v1095 = vshrl.u32 %v834, 16
      %v1097 = vrot.slane %v1095, 2
      %v1098 = vshll.u32 %v834, 16
      %v1100 = vrot.slane %v1098, 3
      %v1101 = vor.u32 %v1097, %v1100
      %v1102 = vsel %vm930, %v1076, %v1101
      %v1153 = vunpack.c.l.b16 %v395
      %v1154 = vunpack.c.l.b16 %v396
      %v1155 = vunpack.c.l.b16 %v397
      %v1156 = vunpack.c.l.b16 %v398
      %v1157 = vunpack.c.l.b16 %v399
      %v1158 = vunpack.c.l.b16 %v400
      %v1159 = vunpack.c.l.b16 %v401
      %v1160 = vunpack.c.l.b16 %v402
      %v1161 = vunpack.c.l.b16 %v403
      %v1162 = vunpack.c.l.b16 %v404
      %v1163 = vunpack.c.l.b16 %v405
      %v1164 = vunpack.c.l.b16 %v406
      %v1165 = vunpack.c.l.b16 %v407
      %v1166 = vunpack.c.l.b16 %v408
      %v1167 = vunpack.c.l.b16 %v409
      %v1168 = vunpack.c.l.b16 %v410
      %v1169 = vunpack.c.l.b16 %v411
      %v1170 = vunpack.c.l.b16 %v412
      %v1171 = vunpack.c.l.b16 %v413
      %v1172 = vunpack.c.l.b16 %v414
      %v1173 = vunpack.c.l.b16 %v415
      %v1174 = vunpack.c.l.b16 %v416
      %v1175 = vunpack.c.l.b16 %v417
      %v1176 = vunpack.c.l.b16 %v418
      %v1177 = vunpack.c.l.b16 %v419
      %v1178 = vunpack.c.l.b16 %v420
      %v1179 = vunpack.c.l.b16 %v421
      %v1180 = vunpack.c.l.b16 %v422
      %v1181 = vunpack.c.l.b16 %v423
      %v1182 = vunpack.c.l.b16 %v424
      %v1183 = vunpack.c.l.b16 %v425
      %v1184 = vunpack.c.l.b16 %v426
      %v1185 = vunpack.c.l.b16 %v427
      %v1186 = vunpack.c.l.b16 %v428
      %v1187 = vunpack.c.l.b16 %v429
      %v1188 = vunpack.c.l.b16 %v430
      %v1189 = vpack.c.b16 %v1154, %v1153
      %v1190 = vpack.c.b16 %v1156, %v1155
      %v1191 = vpack.c.b16 %v1158, %v1157
      %v1192 = vpack.c.b16 %v1160, %v1159
      %v1193 = vpack.c.b16 %v1162, %v1161
      %v1194 = vpack.c.b16 %v1164, %v1163
      %v1195 = vpack.c.b16 %v1166, %v1165
      %v1196 = vpack.c.b16 %v1168, %v1167
      %v1197 = vpack.c.b16 %v1170, %v1169
      %v1198 = vpack.c.b16 %v1172, %v1171
      %v1199 = vpack.c.b16 %v1174, %v1173
      %v1200 = vpack.c.b16 %v1176, %v1175
      %v1201 = vpack.c.b16 %v1178, %v1177
      %v1202 = vpack.c.b16 %v1180, %v1179
      %v1203 = vpack.c.b16 %v1182, %v1181
      %v1204 = vpack.c.b16 %v1184, %v1183
      %v1205 = vpack.c.b16 %v1186, %v1185
      %v1206 = vpack.c.b16 %v1188, %v1187
      %v1226 = vsel %vm835, %v977, 0
      %v1229 = vsel %vm835, %v1002, 0
      %v1232 = vsel %vm835, %v1027, 0
      %v1235 = vsel %vm835, %v1052, 0
      %v1238 = vsel %vm835, %v1077, 0
      %v1241 = vsel %vm835, %v1102, 0
      %v1244 = vsel %vm835, %v1101, 0
      %1246 = vmatprep.subr.bf16.mxu0 0
      %1247 = vmatpush1.bf16.msra.mxu0 %v1196
      %1248 = vmatprep.subr.bf16.mxu0 0
      %1249 = vmatpush1.bf16.msra.mxu0 %v1195
      %1250 = vmatprep.subr.bf16.mxu0 0
      %1251 = vmatpush1.bf16.msra.mxu0 %v1194
      %1252 = vmatprep.subr.bf16.mxu0 0
      %1253 = vmatpush1.bf16.msra.mxu0 %v1193
      %1254 = vmatprep.subr.bf16.mxu0 0
      %1255 = vmatpush1.bf16.msra.mxu0 %v1192
      %1256 = vmatprep.subr.bf16.mxu0 0
      %1257 = vmatpush1.bf16.msra.mxu0 %v1191
      %1258 = vmatprep.subr.bf16.mxu0 0
      %1259 = vmatpush1.bf16.msra.mxu0 %v1190
      %1260 = vmatprep.subr.bf16.mxu0 0
      %1261 = vmatpush1.bf16.msra.mxu0 %v1189
      %1262 = vmatprep.subr.bf16.mxu0 0
      %1263 = vmatpush2.bf16.msra.mxu0 %v1204
      %1264 = vmatprep.subr.bf16.mxu0 0
      %1265 = vmatpush2.bf16.msra.mxu0 %v1203
      %1266 = vmatprep.subr.bf16.mxu0 0
      %1267 = vmatpush2.bf16.msra.mxu0 %v1202
      %1268 = vmatprep.subr.bf16.mxu0 0
      %1269 = vmatpush2.bf16.msra.mxu0 %v1201
      %1270 = vmatprep.subr.bf16.mxu0 0
      %1271 = vmatpush2.bf16.msra.mxu0 %v1200
      %1272 = vmatprep.subr.bf16.mxu0 0
      %1273 = vmatpush2.bf16.msra.mxu0 %v1199
      %1274 = vmatprep.subr.bf16.mxu0 0
      %1275 = vmatpush2.bf16.msra.mxu0 %v1198
      %1276 = vmatprep.subr.bf16.mxu0 0
      %1277 = vmatpush2.bf16.msra.mxu0 %v1197
      %1278 = vmatprep.mubr.bf16.mxu0 %v960
      %1279 = vmatmul.mubr.bf16.gmra.mxu0 %v945
      %v1280 = vpop.f32.mrf.mxu0
      %v1281 = vadd.f32 0.0, %v1280
      %v1282 = vpop.f32.mrf.mxu0
      %v1283 = vpop.f32.mrf.mxu0
      %v1284 = vadd.f32 0.0, %v1283
      %v1285 = vpop.f32.mrf.mxu0
      %1286 = vmatprep.mubr.bf16.mxu0 %v993
      %1287 = vmatmul.mubr.bf16.gmra.mxu0 %v985
      %v1288 = vpop.f32.mrf.mxu0
      %v1289 = vadd.f32 0.0, %v1288
      %v1290 = vpop.f32.mrf.mxu0
      %v1291 = vpop.f32.mrf.mxu0
      %v1292 = vadd.f32 0.0, %v1291
      %v1293 = vpop.f32.mrf.mxu0
      %1294 = vmatprep.mubr.bf16.mxu0 %v1018
      %1295 = vmatmul.mubr.bf16.gmra.mxu0 %v1010
      %v1296 = vpop.f32.mrf.mxu0
      %v1297 = vadd.f32 0.0, %v1296
      %v1298 = vpop.f32.mrf.mxu0
      %v1299 = vpop.f32.mrf.mxu0
      %v1300 = vadd.f32 0.0, %v1299
      %v1301 = vpop.f32.mrf.mxu0
      %1302 = vmatprep.mubr.bf16.mxu0 %v1043
      %1303 = vmatmul.mubr.bf16.gmra.mxu0 %v1035
      %v1304 = vpop.f32.mrf.mxu0
      %v1305 = vadd.f32 0.0, %v1304
      %v1306 = vpop.f32.mrf.mxu0
      %v1307 = vpop.f32.mrf.mxu0
      %v1308 = vadd.f32 0.0, %v1307
      %v1309 = vpop.f32.mrf.mxu0
      %1310 = vmatprep.mubr.bf16.mxu0 %v1068
      %1311 = vmatmul.mubr.bf16.gmra.mxu0 %v1060
      %v1312 = vpop.f32.mrf.mxu0
      %v1313 = vadd.f32 0.0, %v1312
      %v1314 = vpop.f32.mrf.mxu0
      %v1315 = vpop.f32.mrf.mxu0
      %v1316 = vadd.f32 0.0, %v1315
      %v1317 = vpop.f32.mrf.mxu0
      %1318 = vmatprep.mubr.bf16.mxu0 %v1093
      %1319 = vmatmul.mubr.bf16.gmra.mxu0 %v1085
      %v1320 = vpop.f32.mrf.mxu0
      %v1321 = vadd.f32 0.0, %v1320
      %v1322 = vpop.f32.mrf.mxu0
      %v1323 = vpop.f32.mrf.mxu0
      %v1324 = vadd.f32 0.0, %v1323
      %v1325 = vpop.f32.mrf.mxu0
      %1326 = vmatprep.mubr.bf16.mxu0 %v1092
      %1327 = vmatmul.mubr.bf16.gmra.mxu0 %v1084
      %v1328 = vpop.f32.mrf.mxu0
      %v1329 = vadd.f32 0.0, %v1328
      %v1330 = vpop.f32.mrf.mxu0
      %v1331 = vpop.f32.mrf.mxu0
      %v1332 = vpop.f32.mrf.mxu0
      %1333 = vdwg.mxu0
      %1334 = vmatprep.subr.bf16.mxu0 0
      %1335 = vmatpush1.bf16.msra.mxu0 0
      %1336 = vmatprep.subr.bf16.mxu0 0
      %1337 = vmatpush1.bf16.msra.mxu0 0
      %1338 = vmatprep.subr.bf16.mxu0 0
      %1339 = vmatpush1.bf16.msra.mxu0 0
      %1340 = vmatprep.subr.bf16.mxu0 0
      %1341 = vmatpush1.bf16.msra.mxu0 0
      %1342 = vmatprep.subr.bf16.mxu0 0
      %1343 = vmatpush1.bf16.msra.mxu0 0
      %1344 = vmatprep.subr.bf16.mxu0 0
      %1345 = vmatpush1.bf16.msra.mxu0 0
      %1346 = vmatprep.subr.bf16.mxu0 0
      %1347 = vmatpush1.bf16.msra.mxu0 %v1206
      %1348 = vmatprep.subr.bf16.mxu0 0
      %1349 = vmatpush1.bf16.msra.mxu0 %v1205
      %1350 = vmatprep.subr.bf16.mxu0 0
      %1351 = vmatpush2.bf16.msra.mxu0 0
      %1352 = vmatprep.subr.bf16.mxu0 0
      %1353 = vmatpush2.bf16.msra.mxu0 0
      %1354 = vmatprep.subr.bf16.mxu0 0
      %1355 = vmatpush2.bf16.msra.mxu0 0
      %1356 = vmatprep.subr.bf16.mxu0 0
      %1357 = vmatpush2.bf16.msra.mxu0 0
      %1358 = vmatprep.subr.bf16.mxu0 0
      %1359 = vmatpush2.bf16.msra.mxu0 0
      %1360 = vmatprep.subr.bf16.mxu0 0
      %1361 = vmatpush2.bf16.msra.mxu0 0
      %1362 = vmatprep.subr.bf16.mxu0 0
      %1363 = vmatpush2.bf16.msra.mxu0 0
      %1364 = vmatprep.subr.bf16.mxu0 0
      %1365 = vmatpush2.bf16.msra.mxu0 0
      %1366 = vmatprep.mubr.bf16.mxu0 0
      %1367 = vmatmul.mubr.bf16.gmra.mxu0 %v1226
      %v1368 = vpop.f32.mrf.mxu0
      %v1369 = vadd.f32 %v1281, %v1368
      %v1370 = vpop.f32.mrf.mxu0
      %v1371 = vpop.f32.mrf.mxu0
      %v1372 = vadd.f32 %v1284, %v1371
      %v1373 = vpop.f32.mrf.mxu0
      %1374 = vmatprep.mubr.bf16.mxu0 0
      %1375 = vmatmul.mubr.bf16.gmra.mxu0 %v1229
      %v1376 = vpop.f32.mrf.mxu0
      %v1377 = vadd.f32 %v1289, %v1376
      %v1378 = vpop.f32.mrf.mxu0
      %v1379 = vpop.f32.mrf.mxu0
      %v1380 = vadd.f32 %v1292, %v1379
      %v1381 = vpop.f32.mrf.mxu0
      %1382 = vmatprep.mubr.bf16.mxu0 0
      %1383 = vmatmul.mubr.bf16.gmra.mxu0 %v1232
      %v1384 = vpop.f32.mrf.mxu0
      %v1385 = vadd.f32 %v1297, %v1384
      %v1386 = vpop.f32.mrf.mxu0
      %v1387 = vpop.f32.mrf.mxu0
      %v1388 = vadd.f32 %v1300, %v1387
      %v1389 = vpop.f32.mrf.mxu0
      %1390 = vmatprep.mubr.bf16.mxu0 0
      %1391 = vmatmul.mubr.bf16.gmra.mxu0 %v1235
      %v1392 = vpop.f32.mrf.mxu0
      %v1393 = vadd.f32 %v1305, %v1392
      %v1394 = vpop.f32.mrf.mxu0
      %v1395 = vpop.f32.mrf.mxu0
      %v1396 = vadd.f32 %v1308, %v1395
      %v1397 = vpop.f32.mrf.mxu0
      %1398 = vmatprep.mubr.bf16.mxu0 0
      %1399 = vmatmul.mubr.bf16.gmra.mxu0 %v1238
      %v1400 = vpop.f32.mrf.mxu0
      %v1401 = vadd.f32 %v1313, %v1400
      %v1402 = vpop.f32.mrf.mxu0
      %v1403 = vpop.f32.mrf.mxu0
      %v1404 = vadd.f32 %v1316, %v1403
      %v1405 = vpop.f32.mrf.mxu0
      %1406 = vmatprep.mubr.bf16.mxu0 0
      %1407 = vmatmul.mubr.bf16.gmra.mxu0 %v1241
      %v1408 = vpop.f32.mrf.mxu0
      %v1409 = vadd.f32 %v1321, %v1408
      %v1410 = vpop.f32.mrf.mxu0
      %v1411 = vpop.f32.mrf.mxu0
      %v1412 = vadd.f32 %v1324, %v1411
      %v1413 = vpop.f32.mrf.mxu0
      %1414 = vmatprep.mubr.bf16.mxu0 0
      %1415 = vmatmul.mubr.bf16.gmra.mxu0 %v1244
      %v1416 = vpop.f32.mrf.mxu0
      %v1417 = vadd.f32 %v1329, %v1416
      %v1418 = vpop.f32.mrf.mxu0
      %v1419 = vpop.f32.mrf.mxu0
      %v1420 = vpop.f32.mrf.mxu0
      %1421 = vdwg.mxu0
      %v1422 = vld [vmem:[%s3] sm:$0x1]
      %v1424 = vlaneseq
      %v1425 = vshrl.u32 %v1424, 7
      %v1426 = vsub.s32 0, %v1425
      %v1427 = vrot.slane %v1422, %v1426
      %v1429 = vmul.f32 %v1369, %v1427
      %v1430 = vmul.f32 %v1372, %v1427
      %v1431 = vmul.f32 %v1377, %v1427
      %v1432 = vmul.f32 %v1380, %v1427
      %v1433 = vmul.f32 %v1385, %v1427
      %v1434 = vmul.f32 %v1388, %v1427
      %v1435 = vmul.f32 %v1393, %v1427
      %v1436 = vmul.f32 %v1396, %v1427
      %v1437 = vmul.f32 %v1401, %v1427
      %v1438 = vmul.f32 %v1404, %v1427
      %v1439 = vmul.f32 %v1409, %v1427
      %v1440 = vmul.f32 %v1412, %v1427
      %v1441 = vmul.f32 %v1417, %v1427
      %v1442 = vld [vmem:[%s4] sm:$0x1]
      %v1444 = vlaneseq
      %v1445 = vshrl.u32 %v1444, 7
      %v1446 = vsub.s32 0, %v1445
      %v1447 = vrot.slane %v1442, %v1446
      %v1449 = vadd.f32 %v1429, %v1447
      %v1450 = vadd.f32 %v1430, %v1447
      %v1451 = vadd.f32 %v1431, %v1447
      %v1452 = vadd.f32 %v1432, %v1447
      %v1453 = vadd.f32 %v1433, %v1447
      %v1454 = vadd.f32 %v1434, %v1447
      %v1455 = vadd.f32 %v1435, %v1447
      %v1456 = vadd.f32 %v1436, %v1447
      %v1457 = vadd.f32 %v1437, %v1447
      %v1458 = vadd.f32 %v1438, %v1447
      %v1459 = vadd.f32 %v1439, %v1447
      %v1460 = vadd.f32 %v1440, %v1447
      %v1461 = vadd.f32 %v1441, %v1447
      %v1462 = vsub.f32 0.0, %v1449
      %v1463 = vsub.f32 0.0, %v1450
      %v1464 = vsub.f32 0.0, %v1451
      %v1465 = vsub.f32 0.0, %v1452
      %v1466 = vsub.f32 0.0, %v1453
      %v1467 = vsub.f32 0.0, %v1454
      %v1468 = vsub.f32 0.0, %v1455
      %v1469 = vsub.f32 0.0, %v1456
      %v1470 = vsub.f32 0.0, %v1457
      %v1471 = vsub.f32 0.0, %v1458
      %v1472 = vsub.f32 0.0, %v1459
      %v1473 = vsub.f32 0.0, %v1460
      %v1474 = vsub.f32 0.0, %v1461
      %v1475 = vmul.f32 %v1462, 1.442695
      %v1476 = vpow.pop %v1475
      %v1477 = vmul.f32 %v1463, 1.442695
      %v1478 = vpow.pop %v1477
      %v1479 = vmul.f32 %v1464, 1.442695
      %v1480 = vpow.pop %v1479
      %v1481 = vmul.f32 %v1465, 1.442695
      %v1482 = vpow.pop %v1481
      %v1483 = vmul.f32 %v1466, 1.442695
      %v1484 = vpow.pop %v1483
      %v1485 = vmul.f32 %v1467, 1.442695
      %v1486 = vpow.pop %v1485
      %v1487 = vmul.f32 %v1468, 1.442695
      %v1488 = vpow.pop %v1487
      %v1489 = vmul.f32 %v1469, 1.442695
      %v1490 = vpow.pop %v1489
      %v1491 = vmul.f32 %v1470, 1.442695
      %v1492 = vpow.pop %v1491
      %v1493 = vmul.f32 %v1471, 1.442695
      %v1494 = vpow.pop %v1493
      %v1495 = vmul.f32 %v1472, 1.442695
      %v1496 = vpow.pop %v1495
      %v1497 = vmul.f32 %v1473, 1.442695
      %v1498 = vpow.pop %v1497
      %v1499 = vmul.f32 %v1474, 1.442695
      %v1500 = vpow.pop %v1499
      %v1501 = vadd.f32 %v1476, 1.0
      %v1502 = vadd.f32 %v1478, 1.0
      %v1503 = vadd.f32 %v1480, 1.0
      %v1504 = vadd.f32 %v1482, 1.0
      %v1505 = vadd.f32 %v1484, 1.0
      %v1506 = vadd.f32 %v1486, 1.0
      %v1507 = vadd.f32 %v1488, 1.0
      %v1508 = vadd.f32 %v1490, 1.0
      %v1509 = vadd.f32 %v1492, 1.0
      %v1510 = vadd.f32 %v1494, 1.0
      %v1511 = vadd.f32 %v1496, 1.0
      %v1512 = vadd.f32 %v1498, 1.0
      %v1513 = vadd.f32 %v1500, 1.0
      %v1514 = vrcp.pop %v1501
      %v1515 = vrcp.pop %v1502
      %v1516 = vrcp.pop %v1503
      %v1517 = vrcp.pop %v1504
      %v1518 = vrcp.pop %v1505
      %v1519 = vrcp.pop %v1506
      %v1520 = vrcp.pop %v1507
      %v1521 = vrcp.pop %v1508
      %v1522 = vrcp.pop %v1509
      %v1523 = vrcp.pop %v1510
      %v1524 = vrcp.pop %v1511
      %v1525 = vrcp.pop %v1512
      %v1526 = vrcp.pop %v1513
      %v1527 = vmul.f32 %v1449, %v1514
      %v1528 = vmul.f32 %v1450, %v1515
      %v1529 = vmul.f32 %v1451, %v1516
      %v1530 = vmul.f32 %v1452, %v1517
      %v1531 = vmul.f32 %v1453, %v1518
      %v1532 = vmul.f32 %v1454, %v1519
      %v1533 = vmul.f32 %v1455, %v1520
      %v1534 = vmul.f32 %v1456, %v1521
      %v1535 = vmul.f32 %v1457, %v1522
      %v1536 = vmul.f32 %v1458, %v1523
      %v1537 = vmul.f32 %v1459, %v1524
      %v1538 = vmul.f32 %v1460, %v1525
      %v1539 = vmul.f32 %v1461, %v1526
      %v1540 = vsel %vm374, 1, 0
      %v1541 = vsel %vm375, 1, 0
      %v1542 = vsel %vm376, 1, 0
      %v1543 = vsel %vm377, 1, 0
      %v1544 = vsel %vm378, 1, 0
      %v1545 = vsel %vm379, 1, 0
      %v1546 = vsel %vm380, 1, 0
      %v1547 = vsel %vm381, 1, 0
      %v1548 = vsel %vm382, 1, 0
      %v1549 = vsel %vm383, 1, 0
      %v1550 = vsel %vm384, 1, 0
      %v1551 = vsel %vm385, 1, 0
      %v1552 = vsel %vm386, 1, 0
      %1553 = vset.pattern.permute.xlu0 0
      %1554 = vperm.xlu0 %1553, %v1540
      %v1555 = vpop.permute.xlu0 %1554
      %1556 = vset.pattern.permute.xlu0 0
      %1557 = vperm.xlu0 %1556, %v1541
      %v1558 = vpop.permute.xlu0 %1557
      %1559 = vset.pattern.permute.xlu0 0
      %1560 = vperm.xlu0 %1559, %v1542
      %v1561 = vpop.permute.xlu0 %1560
      %1562 = vset.pattern.permute.xlu0 0
      %1563 = vperm.xlu0 %1562, %v1543
      %v1564 = vpop.permute.xlu0 %1563
      %1565 = vset.pattern.permute.xlu0 0
      %1566 = vperm.xlu0 %1565, %v1544
      %v1567 = vpop.permute.xlu0 %1566
      %1568 = vset.pattern.permute.xlu0 0
      %1569 = vperm.xlu0 %1568, %v1545
      %v1570 = vpop.permute.xlu0 %1569
      %1571 = vset.pattern.permute.xlu0 0
      %1572 = vperm.xlu0 %1571, %v1546
      %v1573 = vpop.permute.xlu0 %1572
      %1574 = vset.pattern.permute.xlu0 0
      %1575 = vperm.xlu0 %1574, %v1547
      %v1576 = vpop.permute.xlu0 %1575
      %1577 = vset.pattern.permute.xlu0 0
      %1578 = vperm.xlu0 %1577, %v1548
      %v1579 = vpop.permute.xlu0 %1578
      %1580 = vset.pattern.permute.xlu0 0
      %1581 = vperm.xlu0 %1580, %v1549
      %v1582 = vpop.permute.xlu0 %1581
      %1583 = vset.pattern.permute.xlu0 0
      %1584 = vperm.xlu0 %1583, %v1550
      %v1585 = vpop.permute.xlu0 %1584
      %1586 = vset.pattern.permute.xlu0 0
      %1587 = vperm.xlu0 %1586, %v1551
      %v1588 = vpop.permute.xlu0 %1587
      %1589 = vset.pattern.permute.xlu0 0
      %1590 = vperm.xlu0 %1589, %v1552
      %v1591 = vpop.permute.xlu0 %1590
      %vm1592 = vcmp.eq.s32.totalorder %v1555, 1
      %vm1593 = vcmp.eq.s32.totalorder %v1558, 1
      %vm1594 = vcmp.eq.s32.totalorder %v1561, 1
      %vm1595 = vcmp.eq.s32.totalorder %v1564, 1
      %vm1596 = vcmp.eq.s32.totalorder %v1567, 1
      %vm1597 = vcmp.eq.s32.totalorder %v1570, 1
      %vm1598 = vcmp.eq.s32.totalorder %v1573, 1
      %vm1599 = vcmp.eq.s32.totalorder %v1576, 1
      %vm1600 = vcmp.eq.s32.totalorder %v1579, 1
      %vm1601 = vcmp.eq.s32.totalorder %v1582, 1
      %vm1602 = vcmp.eq.s32.totalorder %v1585, 1
      %vm1603 = vcmp.eq.s32.totalorder %v1588, 1
      %vm1604 = vcmp.eq.s32.totalorder %v1591, 1
      %v1605 = vsel %vm1592, %v1527, 0.0
      %v1606 = vsel %vm1593, %v1528, 0.0
      %v1607 = vsel %vm1594, %v1529, 0.0
      %v1608 = vsel %vm1595, %v1530, 0.0
      %v1609 = vsel %vm1596, %v1531, 0.0
      %v1610 = vsel %vm1597, %v1532, 0.0
      %v1611 = vsel %vm1598, %v1533, 0.0
      %v1612 = vsel %vm1599, %v1534, 0.0
      %v1613 = vsel %vm1600, %v1535, 0.0
      %v1614 = vsel %vm1601, %v1536, 0.0
      %v1615 = vsel %vm1602, %v1537, 0.0
      %v1616 = vsel %vm1603, %v1538, 0.0
      %v1617 = vsel %vm1604, %v1539, 0.0
      %v1618 = vpack.c.bf16 %v1606, %v1605
      %v1619 = vpack.c.bf16 %v1608, %v1607
      %v1620 = vpack.c.bf16 %v1610, %v1609
      %v1621 = vpack.c.bf16 %v1612, %v1611
      %v1622 = vpack.c.bf16 %v1614, %v1613
      %v1623 = vpack.c.bf16 %v1616, %v1615
      %v1624 = vpack.c.bf16 %v1617, %v1617
      %v1632 = vunpack.c.l.b16 %v1618
      %v1633 = vunpack.c.h.b16 %v1618
      %v1634 = vunpack.c.l.b16 %v1619
      %v1635 = vunpack.c.h.b16 %v1619
      %v1636 = vunpack.c.l.b16 %v1620
      %v1637 = vunpack.c.h.b16 %v1620
      %v1638 = vunpack.c.l.b16 %v1621
      %v1639 = vunpack.c.h.b16 %v1621
      %v1640 = vunpack.c.l.b16 %v1622
      %v1641 = vunpack.c.h.b16 %v1622
      %v1642 = vunpack.c.l.b16 %v1623
      %v1643 = vunpack.c.h.b16 %v1623
      %v1644 = vunpack.c.l.b16 %v1624
      %v1645 = vpack.c.b16 %v1632, %v1632
      %v1646 = vpack.c.b16 %v1633, %v1633
      %v1647 = vpack.c.b16 %v1634, %v1634
      %v1648 = vpack.c.b16 %v1635, %v1635
      %v1649 = vpack.c.b16 %v1636, %v1636
      %v1650 = vpack.c.b16 %v1637, %v1637
      %v1651 = vpack.c.b16 %v1638, %v1638
      %v1652 = vpack.c.b16 %v1639, %v1639
      %v1653 = vpack.c.b16 %v1640, %v1640
      %v1654 = vpack.c.b16 %v1641, %v1641
      %v1655 = vpack.c.b16 %v1642, %v1642
      %v1656 = vpack.c.b16 %v1643, %v1643
      %v1657 = vpack.c.b16 %v1644, %v1644
      %1671 = vst.msk [vmem:[#allocation2 + $0x8] sm:$0xf] %vm387, %v1645
      %1672 = vst.msk [vmem:[#allocation2 + $0xc] sm:$0xf] %vm387, %v1646
      %1673 = vst.msk [vmem:[#allocation2 + $0x10] sm:$0xf] %vm387, %v1647
      %1674 = vst.msk [vmem:[#allocation2 + $0x14] sm:$0xf] %vm387, %v1648
      %1675 = vst.msk [vmem:[#allocation2 + $0x18] sm:$0xf] %vm387, %v1649
      %1676 = vst.msk [vmem:[#allocation2 + $0x1c] sm:$0xf] %vm387, %v1650
      %1677 = vst.msk [vmem:[#allocation2 + $0x20] sm:$0xf] %vm387, %v1651
      %1678 = vst.msk [vmem:[#allocation2 + $0x24] sm:$0xf] %vm387, %v1652
      %1679 = vst.msk [vmem:[#allocation2 + $0x28] sm:$0xf] %vm387, %v1653
      %1680 = vst.msk [vmem:[#allocation2 + $0x2c] sm:$0xf] %vm387, %v1654
      %1681 = vst.msk [vmem:[#allocation2 + $0x30] sm:$0xf] %vm387, %v1655
      %1682 = vst.msk [vmem:[#allocation2 + $0x34] sm:$0xf] %vm387, %v1656
      %1683 = vst.msk [vmem:[#allocation2 + $0x38] sm:$0x3] %vm393, %v1657
      %s1684 = scalar_lea.vmem %s2, 144
      %v1685 = vld [vmem:[%s1684] sm:$0xf]
      %v1686 = vld [vmem:[%s1684 + $0x4] sm:$0xf]
      %v1687 = vld [vmem:[%s1684 + $0x8] sm:$0xf]
      %v1688 = vld [vmem:[%s1684 + $0xc] sm:$0xf]
      %v1689 = vld [vmem:[%s1684 + $0x10] sm:$0xf]
      %v1690 = vld [vmem:[%s1684 + $0x14] sm:$0xf]
      %v1691 = vld [vmem:[%s1684 + $0x18] sm:$0xf]
      %v1692 = vld [vmem:[%s1684 + $0x1c] sm:$0xf]
      %v1693 = vld [vmem:[%s1684 + $0x20] sm:$0xf]
      %v1694 = vld [vmem:[%s1684 + $0x24] sm:$0xf]
      %v1695 = vld [vmem:[%s1684 + $0x28] sm:$0xf]
      %v1696 = vld [vmem:[%s1684 + $0x2c] sm:$0xf]
      %v1697 = vld [vmem:[%s1684 + $0x30] sm:$0xf]
      %v1698 = vld [vmem:[%s1684 + $0x34] sm:$0xf]
      %v1699 = vld [vmem:[%s1684 + $0x38] sm:$0xf]
      %v1700 = vld [vmem:[%s1684 + $0x3c] sm:$0xf]
      %v1701 = vld [vmem:[%s1684 + $0x40] sm:$0xf]
      %v1702 = vld [vmem:[%s1684 + $0x44] sm:$0xf]
      %v1703 = vld [vmem:[%s1684 + $0x48] sm:$0xf]
      %v1704 = vld [vmem:[%s1684 + $0x4c] sm:$0xf]
      %v1705 = vld [vmem:[%s1684 + $0x50] sm:$0xf]
      %v1706 = vld [vmem:[%s1684 + $0x54] sm:$0xf]
      %v1707 = vld [vmem:[%s1684 + $0x58] sm:$0xf]
      %v1708 = vld [vmem:[%s1684 + $0x5c] sm:$0xf]
      %v1709 = vld [vmem:[%s1684 + $0x60] sm:$0xf]
      %v1710 = vld [vmem:[%s1684 + $0x64] sm:$0xf]
      %v1711 = vld [vmem:[%s1684 + $0x68] sm:$0xf]
      %v1712 = vld [vmem:[%s1684 + $0x6c] sm:$0xf]
      %v1713 = vld [vmem:[%s1684 + $0x70] sm:$0xf]
      %v1714 = vld [vmem:[%s1684 + $0x74] sm:$0xf]
      %v1715 = vld [vmem:[%s1684 + $0x78] sm:$0xf]
      %v1716 = vld [vmem:[%s1684 + $0x7c] sm:$0xf]
      %v1717 = vld [vmem:[%s1684 + $0x80] sm:$0xf]
      %v1718 = vld [vmem:[%s1684 + $0x84] sm:$0xf]
      %v1719 = vld [vmem:[%s1684 + $0x88] sm:$0xf]
      %v1720 = vld [vmem:[%s1684 + $0x8c] sm:$0xf]
      %v1721 = vld [vmem:[#allocation2] sm:$0xc]
      %v1722 = vld [vmem:[#allocation2 + $0x4] sm:$0xf]
      %v1723 = vld [vmem:[#allocation2 + $0x8] sm:$0xf]
      %v1724 = vld [vmem:[#allocation2 + $0xc] sm:$0xf]
      %v1725 = vld [vmem:[#allocation2 + $0x10] sm:$0xf]
      %v1726 = vld [vmem:[#allocation2 + $0x14] sm:$0xf]
      %v1727 = vld [vmem:[#allocation2 + $0x18] sm:$0xf]
      %v1728 = vld [vmem:[#allocation2 + $0x1c] sm:$0xf]
      %v1729 = vld [vmem:[#allocation2 + $0x20] sm:$0xf]
      %v1730 = vld [vmem:[#allocation2 + $0x24] sm:$0xf]
      %v1731 = vld [vmem:[#allocation2 + $0x28] sm:$0xf]
      %v1732 = vld [vmem:[#allocation2 + $0x2c] sm:$0xf]
      %v1733 = vld [vmem:[#allocation2 + $0x30] sm:$0xf]
      %v1734 = vld [vmem:[#allocation2 + $0x34] sm:$0x1]
      %v1735 = vld [vmem:[#allocation2] sm:$0x8]
      %v1736 = vld [vmem:[#allocation2 + $0x34] sm:$0x3]
      %v1737 = vld [vmem:[#allocation2 + $0x4] sm:$0x8]
      %v1738 = vld [vmem:[#allocation2 + $0x34] sm:$0xf]
      %v1739 = vld [vmem:[#allocation2 + $0x38] sm:$0x3]
      %v1740 = vld [vmem:[#allocation2 + $0x38] sm:$0x7]
      %v1741 = vld [vmem:[#allocation2 + $0x38] sm:$0xf]
      %v1742 = vld [vmem:[#allocation2 + $0x3c] sm:$0x7]
      %v1743 = vld [vmem:[#allocation2 + $0xc] sm:$0xe]
      %v1744 = vld [vmem:[#allocation2 + $0x3c] sm:$0xf]
      %v1759 = vunpack.c.l.b16 %v1721
      %v1760 = vunpack.c.l.b16 %v1722
      %v1761 = vunpack.c.l.b16 %v1723
      %v1762 = vunpack.c.l.b16 %v1724
      %v1763 = vunpack.c.l.b16 %v1725
      %v1764 = vunpack.c.l.b16 %v1726
      %v1765 = vunpack.c.l.b16 %v1727
      %v1766 = vunpack.c.l.b16 %v1728
      %v1767 = vunpack.c.l.b16 %v1729
      %v1768 = vunpack.c.l.b16 %v1730
      %v1769 = vunpack.c.l.b16 %v1731
      %v1770 = vunpack.c.l.b16 %v1732
      %v1771 = vunpack.c.l.b16 %v1733
      %v1772 = vunpack.c.l.b16 %v1734
      %v1773 = vpack.c.b16 %v1760, %v1759
      %v1774 = vpack.c.b16 %v1762, %v1761
      %v1775 = vpack.c.b16 %v1764, %v1763
      %v1776 = vpack.c.b16 %v1766, %v1765
      %v1777 = vpack.c.b16 %v1768, %v1767
      %v1778 = vpack.c.b16 %v1770, %v1769
      %v1779 = vpack.c.b16 %v1772, %v1771
      %v1781 = vunpack.c.l.b16 %v1735
      %v1782 = vpack.c.b16 %v1760, %v1781
      %v1784 = vshrl.u32 %v1782, 16
      %v1786 = vshll.u32 %v1782, 16
      %v1788 = vrot.slane %v1786, 1
      %v1789 = vor.u32 %v1784, %v1788
      %v1791 = vshll.u32 %v1774, 16
      %v1793 = vrot.slane %v1791, 1
      %v1794 = vsel %vm493, %v1789, %v1793
      %v1795 = vshrl.u32 %v1774, 16
      %v1797 = vor.u32 %v1795, %v1793
      %v1799 = vshll.u32 %v1775, 16
      %v1801 = vrot.slane %v1799, 1
      %v1802 = vsel %vm493, %v1797, %v1801
      %v1803 = vshrl.u32 %v1775, 16
      %v1805 = vor.u32 %v1803, %v1801
      %v1807 = vshll.u32 %v1776, 16
      %v1809 = vrot.slane %v1807, 1
      %v1810 = vsel %vm493, %v1805, %v1809
      %v1811 = vshrl.u32 %v1776, 16
      %v1813 = vor.u32 %v1811, %v1809
      %v1815 = vshll.u32 %v1777, 16
      %v1817 = vrot.slane %v1815, 1
      %v1818 = vsel %vm493, %v1813, %v1817
      %v1819 = vshrl.u32 %v1777, 16
      %v1821 = vor.u32 %v1819, %v1817
      %v1823 = vshll.u32 %v1778, 16
      %v1825 = vrot.slane %v1823, 1
      %v1826 = vsel %vm493, %v1821, %v1825
      %v1827 = vshrl.u32 %v1778, 16
      %v1829 = vor.u32 %v1827, %v1825
      %v1831 = vshll.u32 %v1779, 16
      %v1833 = vrot.slane %v1831, 1
      %v1834 = vsel %vm493, %v1829, %v1833
      %v1835 = vshrl.u32 %v1779, 16
      %v1837 = vor.u32 %v1835, %v1833
      %1838 = vrot.lane.b32.xlu0 %v1794, 32
      %v1839 = vpop.permute.xlu0 %1838
      %1840 = vrot.lane.b32.xlu0 %v1802, 32
      %v1841 = vpop.permute.xlu0 %1840
      %1842 = vrot.lane.b32.xlu0 %v1810, 32
      %v1843 = vpop.permute.xlu0 %1842
      %1844 = vrot.lane.b32.xlu0 %v1818, 32
      %v1845 = vpop.permute.xlu0 %1844
      %1846 = vrot.lane.b32.xlu0 %v1826, 32
      %v1847 = vpop.permute.xlu0 %1846
      %1848 = vrot.lane.b32.xlu0 %v1834, 32
      %v1849 = vpop.permute.xlu0 %1848
      %1850 = vrot.lane.b32.xlu0 %v1837, 32
      %v1851 = vpop.permute.xlu0 %1850
      %v1853 = vunpack.c.l.b16 %v1736
      %v1854 = vpack.c.b16 %v1853, %v1771
      %v1855 = vrot.slane %v1782, 1
      %v1856 = vrot.slane %v1774, 1
      %v1857 = vsel %vm566, %v1855, %v1856
      %v1858 = vrot.slane %v1775, 1
      %v1859 = vsel %vm566, %v1856, %v1858
      %v1860 = vrot.slane %v1776, 1
      %v1861 = vsel %vm566, %v1858, %v1860
      %v1862 = vrot.slane %v1777, 1
      %v1863 = vsel %vm566, %v1860, %v1862
      %v1864 = vrot.slane %v1778, 1
      %v1865 = vsel %vm566, %v1862, %v1864
      %v1866 = vrot.slane %v1854, 1
      %v1867 = vsel %vm566, %v1864, %v1866
      %1868 = vrot.lane.b32.xlu0 %v1857, 64
      %v1869 = vpop.permute.xlu0 %1868
      %1870 = vrot.lane.b32.xlu0 %v1859, 64
      %v1871 = vpop.permute.xlu0 %1870
      %1872 = vrot.lane.b32.xlu0 %v1861, 64
      %v1873 = vpop.permute.xlu0 %1872
      %1874 = vrot.lane.b32.xlu0 %v1863, 64
      %v1875 = vpop.permute.xlu0 %1874
      %1876 = vrot.lane.b32.xlu0 %v1865, 64
      %v1877 = vpop.permute.xlu0 %1876
      %1878 = vrot.lane.b32.xlu0 %v1867, 64
      %v1879 = vpop.permute.xlu0 %1878
      %1880 = vrot.lane.b32.xlu0 %v1866, 64
      %v1881 = vpop.permute.xlu0 %1880
      %v1885 = vunpack.c.l.b16 %v1737
      %v1886 = vunpack.c.l.b16 %v1738
      %v1887 = vunpack.c.l.b16 %v1739
      %v1888 = vpack.c.b16 %v1761, %v1885
      %v1889 = vpack.c.b16 %v1763, %v1762
      %v1890 = vpack.c.b16 %v1765, %v1764
      %v1891 = vpack.c.b16 %v1767, %v1766
      %v1892 = vpack.c.b16 %v1769, %v1768
      %v1893 = vpack.c.b16 %v1771, %v1770
      %v1894 = vpack.c.b16 %v1887, %v1886
      %v1895 = vrot.slane %v1888, 1
      %v1896 = vrot.slane %v1889, 1
      %v1897 = vsel %vm566, %v1895, %v1896
      %v1898 = vrot.slane %v1890, 1
      %v1899 = vsel %vm566, %v1896, %v1898
      %v1900 = vrot.slane %v1891, 1
      %v1901 = vsel %vm566, %v1898, %v1900
      %v1902 = vrot.slane %v1892, 1
      %v1903 = vsel %vm566, %v1900, %v1902
      %v1904 = vrot.slane %v1893, 1
      %v1905 = vsel %vm566, %v1902, %v1904
      %v1906 = vrot.slane %v1894, 1
      %v1907 = vsel %vm566, %v1904, %v1906
      %1908 = vrot.lane.b32.xlu0 %v1897, 96
      %v1909 = vpop.permute.xlu0 %1908
      %1910 = vrot.lane.b32.xlu0 %v1899, 96
      %v1911 = vpop.permute.xlu0 %1910
      %1912 = vrot.lane.b32.xlu0 %v1901, 96
      %v1913 = vpop.permute.xlu0 %1912
      %1914 = vrot.lane.b32.xlu0 %v1903, 96
      %v1915 = vpop.permute.xlu0 %1914
      %1916 = vrot.lane.b32.xlu0 %v1905, 96
      %v1917 = vpop.permute.xlu0 %1916
      %1918 = vrot.lane.b32.xlu0 %v1907, 96
      %v1919 = vpop.permute.xlu0 %1918
      %1920 = vrot.lane.b32.xlu0 %v1906, 96
      %v1921 = vpop.permute.xlu0 %1920
      %v1922 = vpack.c.b16 %v1886, %v1771
      %v1923 = vpack.c.b16 %v1887, %v1887
      %v1924 = vrot.slane %v1795, 5
      %v1925 = vrot.slane %v1791, 6
      %v1926 = vor.u32 %v1924, %v1925
      %v1927 = vrot.slane %v1803, 5
      %v1928 = vrot.slane %v1799, 6
      %v1929 = vor.u32 %v1927, %v1928
      %v1930 = vsel %vm636, %v1926, %v1929
      %v1931 = vrot.slane %v1811, 5
      %v1932 = vrot.slane %v1807, 6
      %v1933 = vor.u32 %v1931, %v1932
      %v1934 = vsel %vm636, %v1929, %v1933
      %v1935 = vrot.slane %v1819, 5
      %v1936 = vrot.slane %v1815, 6
      %v1937 = vor.u32 %v1935, %v1936
      %v1938 = vsel %vm636, %v1933, %v1937
      %v1939 = vrot.slane %v1827, 5
      %v1940 = vrot.slane %v1823, 6
      %v1941 = vor.u32 %v1939, %v1940
      %v1942 = vsel %vm636, %v1937, %v1941
      %v1944 = vshrl.u32 %v1922, 16
      %v1946 = vrot.slane %v1944, 5
      %v1947 = vshll.u32 %v1922, 16
      %v1949 = vrot.slane %v1947, 6
      %v1950 = vor.u32 %v1946, %v1949
      %v1951 = vsel %vm636, %v1941, %v1950
      %v1953 = vshrl.u32 %v1923, 16
      %v1955 = vrot.slane %v1953, 5
      %v1956 = vshll.u32 %v1923, 16
      %v1958 = vrot.slane %v1956, 6
      %v1959 = vor.u32 %v1955, %v1958
      %v1960 = vsel %vm636, %v1950, %v1959
      %v1962 = vunpack.c.l.b16 %v1740
      %v1963 = vpack.c.b16 %v1962, %v1962
      %v1964 = vrot.slane %v1774, 6
      %v1965 = vrot.slane %v1775, 6
      %v1966 = vsel %vm677, %v1964, %v1965
      %v1967 = vrot.slane %v1776, 6
      %v1968 = vsel %vm677, %v1965, %v1967
      %v1969 = vrot.slane %v1777, 6
      %v1970 = vsel %vm677, %v1967, %v1969
      %v1971 = vrot.slane %v1778, 6
      %v1972 = vsel %vm677, %v1969, %v1971
      %v1973 = vrot.slane %v1922, 6
      %v1974 = vsel %vm677, %v1971, %v1973
      %v1975 = vrot.slane %v1963, 6
      %v1976 = vsel %vm677, %v1973, %v1975
      %1977 = vrot.lane.b32.xlu0 %v1964, 32
      %v1978 = vpop.permute.xlu0 %1977
      %1979 = vrot.lane.b32.xlu0 %v1966, 32
      %v1980 = vpop.permute.xlu0 %1979
      %1981 = vrot.lane.b32.xlu0 %v1968, 32
      %v1982 = vpop.permute.xlu0 %1981
      %1983 = vrot.lane.b32.xlu0 %v1970, 32
      %v1984 = vpop.permute.xlu0 %1983
      %1985 = vrot.lane.b32.xlu0 %v1972, 32
      %v1986 = vpop.permute.xlu0 %1985
      %1987 = vrot.lane.b32.xlu0 %v1974, 32
      %v1988 = vpop.permute.xlu0 %1987
      %1989 = vrot.lane.b32.xlu0 %v1976, 32
      %v1990 = vpop.permute.xlu0 %1989
      %v1993 = vunpack.c.l.b16 %v1741
      %v1994 = vunpack.c.l.b16 %v1742
      %v1995 = vpack.c.b16 %v1993, %v1886
      %v1996 = vpack.c.b16 %v1994, %v1994
      %v1997 = vrot.slane %v1889, 6
      %v1998 = vrot.slane %v1890, 6
      %v1999 = vsel %vm677, %v1997, %v1998
      %v2000 = vrot.slane %v1891, 6
      %v2001 = vsel %vm677, %v1998, %v2000
      %v2002 = vrot.slane %v1892, 6
      %v2003 = vsel %vm677, %v2000, %v2002
      %v2004 = vrot.slane %v1893, 6
      %v2005 = vsel %vm677, %v2002, %v2004
      %v2006 = vrot.slane %v1995, 6
      %v2007 = vsel %vm677, %v2004, %v2006
      %v2008 = vrot.slane %v1996, 6
      %v2009 = vsel %vm677, %v2006, %v2008
      %2010 = vrot.lane.b32.xlu0 %v1997, 64
      %v2011 = vpop.permute.xlu0 %2010
      %2012 = vrot.lane.b32.xlu0 %v1999, 64
      %v2013 = vpop.permute.xlu0 %2012
      %2014 = vrot.lane.b32.xlu0 %v2001, 64
      %v2015 = vpop.permute.xlu0 %2014
      %2016 = vrot.lane.b32.xlu0 %v2003, 64
      %v2017 = vpop.permute.xlu0 %2016
      %2018 = vrot.lane.b32.xlu0 %v2005, 64
      %v2019 = vpop.permute.xlu0 %2018
      %2020 = vrot.lane.b32.xlu0 %v2007, 64
      %v2021 = vpop.permute.xlu0 %2020
      %2022 = vrot.lane.b32.xlu0 %v2009, 64
      %v2023 = vpop.permute.xlu0 %2022
      %v2025 = vunpack.c.l.b16 %v1743
      %v2026 = vpack.c.b16 %v1763, %v2025
      %v2028 = vshrl.u32 %v2026, 16
      %v2030 = vrot.slane %v2028, 6
      %v2031 = vshll.u32 %v2026, 16
      %v2033 = vrot.slane %v2031, 7
      %v2034 = vor.u32 %v2030, %v2033
      %v2036 = vshrl.u32 %v1890, 16
      %v2038 = vrot.slane %v2036, 6
      %v2039 = vshll.u32 %v1890, 16
      %v2041 = vrot.slane %v2039, 7
      %v2042 = vor.u32 %v2038, %v2041
      %v2043 = vsel %vm741, %v2034, %v2042
      %v2045 = vshrl.u32 %v1891, 16
      %v2047 = vrot.slane %v2045, 6
      %v2048 = vshll.u32 %v1891, 16
      %v2050 = vrot.slane %v2048, 7
      %v2051 = vor.u32 %v2047, %v2050
      %v2052 = vsel %vm741, %v2042, %v2051
      %v2054 = vshrl.u32 %v1892, 16
      %v2056 = vrot.slane %v2054, 6
      %v2057 = vshll.u32 %v1892, 16
      %v2059 = vrot.slane %v2057, 7
      %v2060 = vor.u32 %v2056, %v2059
      %v2061 = vsel %vm741, %v2051, %v2060
      %v2063 = vshrl.u32 %v1893, 16
      %v2065 = vrot.slane %v2063, 6
      %v2066 = vshll.u32 %v1893, 16
      %v2068 = vrot.slane %v2066, 7
      %v2069 = vor.u32 %v2065, %v2068
      %v2070 = vsel %vm741, %v2060, %v2069
      %v2072 = vshrl.u32 %v1995, 16
      %v2074 = vrot.slane %v2072, 6
      %v2075 = vshll.u32 %v1995, 16
      %v2077 = vrot.slane %v2075, 7
      %v2078 = vor.u32 %v2074, %v2077
      %v2079 = vsel %vm741, %v2069, %v2078
      %v2081 = vshrl.u32 %v1996, 16
      %v2083 = vrot.slane %v2081, 6
      %v2084 = vshll.u32 %v1996, 16
      %v2086 = vrot.slane %v2084, 7
      %v2087 = vor.u32 %v2083, %v2086
      %v2088 = vsel %vm741, %v2078, %v2087
      %2089 = vrot.lane.b32.xlu0 %v2034, 96
      %v2090 = vpop.permute.xlu0 %2089
      %2091 = vrot.lane.b32.xlu0 %v2043, 96
      %v2092 = vpop.permute.xlu0 %2091
      %2093 = vrot.lane.b32.xlu0 %v2052, 96
      %v2094 = vpop.permute.xlu0 %2093
      %2095 = vrot.lane.b32.xlu0 %v2061, 96
      %v2096 = vpop.permute.xlu0 %2095
      %2097 = vrot.lane.b32.xlu0 %v2070, 96
      %v2098 = vpop.permute.xlu0 %2097
      %2099 = vrot.lane.b32.xlu0 %v2079, 96
      %v2100 = vpop.permute.xlu0 %2099
      %2101 = vrot.lane.b32.xlu0 %v2088, 96
      %v2102 = vpop.permute.xlu0 %2101
      %v2104 = vunpack.c.l.b16 %v1744
      %v2105 = vpack.c.b16 %v2104, %v2104
      %v2106 = vrot.slane %v2026, 7
      %v2107 = vrot.slane %v1890, 7
      %v2108 = vsel %vm821, %v2106, %v2107
      %v2109 = vrot.slane %v1891, 7
      %v2110 = vsel %vm821, %v2107, %v2109
      %v2111 = vrot.slane %v1892, 7
      %v2112 = vsel %vm821, %v2109, %v2111
      %v2113 = vrot.slane %v1893, 7
      %v2114 = vsel %vm821, %v2111, %v2113
      %v2115 = vrot.slane %v1995, 7
      %v2116 = vsel %vm821, %v2113, %v2115
      %v2117 = vrot.slane %v2105, 7
      %v2118 = vsel %vm821, %v2115, %v2117
      %v2121 = vsel %vm835, %v1773, %v1839
      %v2123 = vsel %vm835, %v1774, %v1841
      %v2125 = vsel %vm835, %v1775, %v1843
      %v2127 = vsel %vm835, %v1776, %v1845
      %v2129 = vsel %vm835, %v1777, %v1847
      %v2131 = vsel %vm835, %v1778, %v1849
      %v2133 = vsel %vm835, %v1779, %v1851
      %v2135 = vsel %vm851, %v2121, %v1869
      %v2137 = vsel %vm851, %v2123, %v1871
      %v2139 = vsel %vm851, %v2125, %v1873
      %v2141 = vsel %vm851, %v2127, %v1875
      %v2143 = vsel %vm851, %v2129, %v1877
      %v2145 = vsel %vm851, %v2131, %v1879
      %v2147 = vsel %vm851, %v2133, %v1881
      %v2149 = vsel %vm866, %v2135, %v1909
      %v2151 = vsel %vm866, %v2137, %v1911
      %v2153 = vsel %vm866, %v2139, %v1913
      %v2155 = vsel %vm866, %v2141, %v1915
      %v2157 = vsel %vm866, %v2143, %v1917
      %v2159 = vsel %vm866, %v2145, %v1919
      %v2161 = vsel %vm866, %v2147, %v1921
      %v2164 = vsel %vm835, %v1926, %v1978
      %v2167 = vsel %vm835, %v1930, %v1980
      %v2170 = vsel %vm835, %v1934, %v1982
      %v2173 = vsel %vm835, %v1938, %v1984
      %v2176 = vsel %vm835, %v1942, %v1986
      %v2179 = vsel %vm835, %v1951, %v1988
      %v2182 = vsel %vm835, %v1960, %v1990
      %v2184 = vsel %vm851, %v2164, %v2011
      %v2186 = vsel %vm851, %v2167, %v2013
      %v2188 = vsel %vm851, %v2170, %v2015
      %v2190 = vsel %vm851, %v2173, %v2017
      %v2192 = vsel %vm851, %v2176, %v2019
      %v2194 = vsel %vm851, %v2179, %v2021
      %v2196 = vsel %vm851, %v2182, %v2023
      %v2198 = vsel %vm866, %v2184, %v2090
      %v2200 = vsel %vm866, %v2186, %v2092
      %v2202 = vsel %vm866, %v2188, %v2094
      %v2204 = vsel %vm866, %v2190, %v2096
      %v2206 = vsel %vm866, %v2192, %v2098
      %v2208 = vsel %vm866, %v2194, %v2100
      %v2210 = vsel %vm866, %v2196, %v2102
      %v2211 = vshrl.u32 %v2149, 16
      %v2213 = vrot.slane %v2211, 2
      %v2214 = vshll.u32 %v2149, 16
      %v2216 = vrot.slane %v2214, 3
      %v2217 = vor.u32 %v2213, %v2216
      %v2218 = vshrl.u32 %v2151, 16
      %v2220 = vrot.slane %v2218, 2
      %v2221 = vshll.u32 %v2151, 16
      %v2223 = vrot.slane %v2221, 3
      %v2224 = vor.u32 %v2220, %v2223
      %v2225 = vsel %vm930, %v2217, %v2224
      %v2226 = vshrl.u32 %v2198, 16
      %v2228 = vrot.slane %v2226, 2
      %v2229 = vshll.u32 %v2198, 16
      %v2231 = vrot.slane %v2229, 3
      %v2232 = vor.u32 %v2228, %v2231
      %v2233 = vshrl.u32 %v2200, 16
      %v2235 = vrot.slane %v2233, 2
      %v2236 = vshll.u32 %v2200, 16
      %v2238 = vrot.slane %v2236, 3
      %v2239 = vor.u32 %v2235, %v2238
      %v2240 = vsel %vm930, %v2232, %v2239
      %v2242 = vshrl.u32 %v2106, 16
      %v2244 = vrot.slane %v2242, 2
      %v2245 = vshll.u32 %v2106, 16
      %v2247 = vrot.slane %v2245, 3
      %v2248 = vor.u32 %v2244, %v2247
      %v2250 = vshrl.u32 %v2108, 16
      %v2252 = vrot.slane %v2250, 2
      %v2253 = vshll.u32 %v2108, 16
      %v2255 = vrot.slane %v2253, 3
      %v2256 = vor.u32 %v2252, %v2255
      %v2257 = vsel %vm930, %v2248, %v2256
      %v2258 = vshrl.u32 %v2153, 16
      %v2260 = vrot.slane %v2258, 2
      %v2261 = vshll.u32 %v2153, 16
      %v2263 = vrot.slane %v2261, 3
      %v2264 = vor.u32 %v2260, %v2263
      %v2265 = vsel %vm930, %v2224, %v2264
      %v2266 = vshrl.u32 %v2202, 16
      %v2268 = vrot.slane %v2266, 2
      %v2269 = vshll.u32 %v2202, 16
      %v2271 = vrot.slane %v2269, 3
      %v2272 = vor.u32 %v2268, %v2271
      %v2273 = vsel %vm930, %v2239, %v2272
      %v2275 = vshrl.u32 %v2110, 16
      %v2277 = vrot.slane %v2275, 2
      %v2278 = vshll.u32 %v2110, 16
      %v2280 = vrot.slane %v2278, 3
      %v2281 = vor.u32 %v2277, %v2280
      %v2282 = vsel %vm930, %v2256, %v2281
      %v2283 = vshrl.u32 %v2155, 16
      %v2285 = vrot.slane %v2283, 2
      %v2286 = vshll.u32 %v2155, 16
      %v2288 = vrot.slane %v2286, 3
      %v2289 = vor.u32 %v2285, %v2288
      %v2290 = vsel %vm930, %v2264, %v2289
      %v2291 = vshrl.u32 %v2204, 16
      %v2293 = vrot.slane %v2291, 2
      %v2294 = vshll.u32 %v2204, 16
      %v2296 = vrot.slane %v2294, 3
      %v2297 = vor.u32 %v2293, %v2296
      %v2298 = vsel %vm930, %v2272, %v2297
      %v2300 = vshrl.u32 %v2112, 16
      %v2302 = vrot.slane %v2300, 2
      %v2303 = vshll.u32 %v2112, 16
      %v2305 = vrot.slane %v2303, 3
      %v2306 = vor.u32 %v2302, %v2305
      %v2307 = vsel %vm930, %v2281, %v2306
      %v2308 = vshrl.u32 %v2157, 16
      %v2310 = vrot.slane %v2308, 2
      %v2311 = vshll.u32 %v2157, 16
      %v2313 = vrot.slane %v2311, 3
      %v2314 = vor.u32 %v2310, %v2313
      %v2315 = vsel %vm930, %v2289, %v2314
      %v2316 = vshrl.u32 %v2206, 16
      %v2318 = vrot.slane %v2316, 2
      %v2319 = vshll.u32 %v2206, 16
      %v2321 = vrot.slane %v2319, 3
      %v2322 = vor.u32 %v2318, %v2321
      %v2323 = vsel %vm930, %v2297, %v2322
      %v2325 = vshrl.u32 %v2114, 16
      %v2327 = vrot.slane %v2325, 2
      %v2328 = vshll.u32 %v2114, 16
      %v2330 = vrot.slane %v2328, 3
      %v2331 = vor.u32 %v2327, %v2330
      %v2332 = vsel %vm930, %v2306, %v2331
      %v2333 = vshrl.u32 %v2159, 16
      %v2335 = vrot.slane %v2333, 2
      %v2336 = vshll.u32 %v2159, 16
      %v2338 = vrot.slane %v2336, 3
      %v2339 = vor.u32 %v2335, %v2338
      %v2340 = vsel %vm930, %v2314, %v2339
      %v2341 = vshrl.u32 %v2208, 16
      %v2343 = vrot.slane %v2341, 2
      %v2344 = vshll.u32 %v2208, 16
      %v2346 = vrot.slane %v2344, 3
      %v2347 = vor.u32 %v2343, %v2346
      %v2348 = vsel %vm930, %v2322, %v2347
      %v2350 = vshrl.u32 %v2116, 16
      %v2352 = vrot.slane %v2350, 2
      %v2353 = vshll.u32 %v2116, 16
      %v2355 = vrot.slane %v2353, 3
      %v2356 = vor.u32 %v2352, %v2355
      %v2357 = vsel %vm930, %v2331, %v2356
      %v2358 = vshrl.u32 %v2161, 16
      %v2360 = vrot.slane %v2358, 2
      %v2361 = vshll.u32 %v2161, 16
      %v2363 = vrot.slane %v2361, 3
      %v2364 = vor.u32 %v2360, %v2363
      %v2365 = vsel %vm930, %v2339, %v2364
      %v2366 = vshrl.u32 %v2210, 16
      %v2368 = vrot.slane %v2366, 2
      %v2369 = vshll.u32 %v2210, 16
      %v2371 = vrot.slane %v2369, 3
      %v2372 = vor.u32 %v2368, %v2371
      %v2373 = vsel %vm930, %v2347, %v2372
      %v2375 = vshrl.u32 %v2118, 16
      %v2377 = vrot.slane %v2375, 2
      %v2378 = vshll.u32 %v2118, 16
      %v2380 = vrot.slane %v2378, 3
      %v2381 = vor.u32 %v2377, %v2380
      %v2382 = vsel %vm930, %v2356, %v2381
      %v2433 = vunpack.c.l.b16 %v1685
      %v2434 = vunpack.c.l.b16 %v1686
      %v2435 = vunpack.c.l.b16 %v1687
      %v2436 = vunpack.c.l.b16 %v1688
      %v2437 = vunpack.c.l.b16 %v1689
      %v2438 = vunpack.c.l.b16 %v1690
      %v2439 = vunpack.c.l.b16 %v1691
      %v2440 = vunpack.c.l.b16 %v1692
      %v2441 = vunpack.c.l.b16 %v1693
      %v2442 = vunpack.c.l.b16 %v1694
      %v2443 = vunpack.c.l.b16 %v1695
      %v2444 = vunpack.c.l.b16 %v1696
      %v2445 = vunpack.c.l.b16 %v1697
      %v2446 = vunpack.c.l.b16 %v1698
      %v2447 = vunpack.c.l.b16 %v1699
      %v2448 = vunpack.c.l.b16 %v1700
      %v2449 = vunpack.c.l.b16 %v1701
      %v2450 = vunpack.c.l.b16 %v1702
      %v2451 = vunpack.c.l.b16 %v1703
      %v2452 = vunpack.c.l.b16 %v1704
      %v2453 = vunpack.c.l.b16 %v1705
      %v2454 = vunpack.c.l.b16 %v1706
      %v2455 = vunpack.c.l.b16 %v1707
      %v2456 = vunpack.c.l.b16 %v1708
      %v2457 = vunpack.c.l.b16 %v1709
      %v2458 = vunpack.c.l.b16 %v1710
      %v2459 = vunpack.c.l.b16 %v1711
      %v2460 = vunpack.c.l.b16 %v1712
      %v2461 = vunpack.c.l.b16 %v1713
      %v2462 = vunpack.c.l.b16 %v1714
      %v2463 = vunpack.c.l.b16 %v1715
      %v2464 = vunpack.c.l.b16 %v1716
      %v2465 = vunpack.c.l.b16 %v1717
      %v2466 = vunpack.c.l.b16 %v1718
      %v2467 = vunpack.c.l.b16 %v1719
      %v2468 = vunpack.c.l.b16 %v1720
      %v2469 = vpack.c.b16 %v2434, %v2433
      %v2470 = vpack.c.b16 %v2436, %v2435
      %v2471 = vpack.c.b16 %v2438, %v2437
      %v2472 = vpack.c.b16 %v2440, %v2439
      %v2473 = vpack.c.b16 %v2442, %v2441
      %v2474 = vpack.c.b16 %v2444, %v2443
      %v2475 = vpack.c.b16 %v2446, %v2445
      %v2476 = vpack.c.b16 %v2448, %v2447
      %v2477 = vpack.c.b16 %v2450, %v2449
      %v2478 = vpack.c.b16 %v2452, %v2451
      %v2479 = vpack.c.b16 %v2454, %v2453
      %v2480 = vpack.c.b16 %v2456, %v2455
      %v2481 = vpack.c.b16 %v2458, %v2457
      %v2482 = vpack.c.b16 %v2460, %v2459
      %v2483 = vpack.c.b16 %v2462, %v2461
      %v2484 = vpack.c.b16 %v2464, %v2463
      %v2485 = vpack.c.b16 %v2466, %v2465
      %v2486 = vpack.c.b16 %v2468, %v2467
      %v2506 = vsel %vm835, %v2257, 0
      %v2509 = vsel %vm835, %v2282, 0
      %v2512 = vsel %vm835, %v2307, 0
      %v2515 = vsel %vm835, %v2332, 0
      %v2518 = vsel %vm835, %v2357, 0
      %v2521 = vsel %vm835, %v2382, 0
      %v2524 = vsel %vm835, %v2381, 0
      %2526 = vmatprep.subr.bf16.mxu0 0
      %2527 = vmatpush1.bf16.msra.mxu0 %v2476
      %2528 = vmatprep.subr.bf16.mxu0 0
      %2529 = vmatpush1.bf16.msra.mxu0 %v2475
      %2530 = vmatprep.subr.bf16.mxu0 0
      %2531 = vmatpush1.bf16.msra.mxu0 %v2474
      %2532 = vmatprep.subr.bf16.mxu0 0
      %2533 = vmatpush1.bf16.msra.mxu0 %v2473
      %2534 = vmatprep.subr.bf16.mxu0 0
      %2535 = vmatpush1.bf16.msra.mxu0 %v2472
      %2536 = vmatprep.subr.bf16.mxu0 0
      %2537 = vmatpush1.bf16.msra.mxu0 %v2471
      %2538 = vmatprep.subr.bf16.mxu0 0
      %2539 = vmatpush1.bf16.msra.mxu0 %v2470
      %2540 = vmatprep.subr.bf16.mxu0 0
      %2541 = vmatpush1.bf16.msra.mxu0 %v2469
      %2542 = vmatprep.subr.bf16.mxu0 0
      %2543 = vmatpush2.bf16.msra.mxu0 %v2484
      %2544 = vmatprep.subr.bf16.mxu0 0
      %2545 = vmatpush2.bf16.msra.mxu0 %v2483
      %2546 = vmatprep.subr.bf16.mxu0 0
      %2547 = vmatpush2.bf16.msra.mxu0 %v2482
      %2548 = vmatprep.subr.bf16.mxu0 0
      %2549 = vmatpush2.bf16.msra.mxu0 %v2481
      %2550 = vmatprep.subr.bf16.mxu0 0
      %2551 = vmatpush2.bf16.msra.mxu0 %v2480
      %2552 = vmatprep.subr.bf16.mxu0 0
      %2553 = vmatpush2.bf16.msra.mxu0 %v2479
      %2554 = vmatprep.subr.bf16.mxu0 0
      %2555 = vmatpush2.bf16.msra.mxu0 %v2478
      %2556 = vmatprep.subr.bf16.mxu0 0
      %2557 = vmatpush2.bf16.msra.mxu0 %v2477
      %2558 = vmatprep.mubr.bf16.mxu0 %v2240
      %2559 = vmatmul.mubr.bf16.gmra.mxu0 %v2225
      %v2560 = vpop.f32.mrf.mxu0
      %v2561 = vadd.f32 0.0, %v2560
      %v2562 = vpop.f32.mrf.mxu0
      %v2563 = vpop.f32.mrf.mxu0
      %v2564 = vadd.f32 0.0, %v2563
      %v2565 = vpop.f32.mrf.mxu0
      %2566 = vmatprep.mubr.bf16.mxu0 %v2273
      %2567 = vmatmul.mubr.bf16.gmra.mxu0 %v2265
      %v2568 = vpop.f32.mrf.mxu0
      %v2569 = vadd.f32 0.0, %v2568
      %v2570 = vpop.f32.mrf.mxu0
      %v2571 = vpop.f32.mrf.mxu0
      %v2572 = vadd.f32 0.0, %v2571
      %v2573 = vpop.f32.mrf.mxu0
      %2574 = vmatprep.mubr.bf16.mxu0 %v2298
      %2575 = vmatmul.mubr.bf16.gmra.mxu0 %v2290
      %v2576 = vpop.f32.mrf.mxu0
      %v2577 = vadd.f32 0.0, %v2576
      %v2578 = vpop.f32.mrf.mxu0
      %v2579 = vpop.f32.mrf.mxu0
      %v2580 = vadd.f32 0.0, %v2579
      %v2581 = vpop.f32.mrf.mxu0
      %2582 = vmatprep.mubr.bf16.mxu0 %v2323
      %2583 = vmatmul.mubr.bf16.gmra.mxu0 %v2315
      %v2584 = vpop.f32.mrf.mxu0
      %v2585 = vadd.f32 0.0, %v2584
      %v2586 = vpop.f32.mrf.mxu0
      %v2587 = vpop.f32.mrf.mxu0
      %v2588 = vadd.f32 0.0, %v2587
      %v2589 = vpop.f32.mrf.mxu0
      %2590 = vmatprep.mubr.bf16.mxu0 %v2348
      %2591 = vmatmul.mubr.bf16.gmra.mxu0 %v2340
      %v2592 = vpop.f32.mrf.mxu0
      %v2593 = vadd.f32 0.0, %v2592
      %v2594 = vpop.f32.mrf.mxu0
      %v2595 = vpop.f32.mrf.mxu0
      %v2596 = vadd.f32 0.0, %v2595
      %v2597 = vpop.f32.mrf.mxu0
      %2598 = vmatprep.mubr.bf16.mxu0 %v2373
      %2599 = vmatmul.mubr.bf16.gmra.mxu0 %v2365
      %v2600 = vpop.f32.mrf.mxu0
      %v2601 = vadd.f32 0.0, %v2600
      %v2602 = vpop.f32.mrf.mxu0
      %v2603 = vpop.f32.mrf.mxu0
      %v2604 = vadd.f32 0.0, %v2603
      %v2605 = vpop.f32.mrf.mxu0
      %2606 = vmatprep.mubr.bf16.mxu0 %v2372
      %2607 = vmatmul.mubr.bf16.gmra.mxu0 %v2364
      %v2608 = vpop.f32.mrf.mxu0
      %v2609 = vadd.f32 0.0, %v2608
      %v2610 = vpop.f32.mrf.mxu0
      %v2611 = vpop.f32.mrf.mxu0
      %v2612 = vpop.f32.mrf.mxu0
      %2613 = vdwg.mxu0
      %2614 = vmatprep.subr.bf16.mxu0 0
      %2615 = vmatpush1.bf16.msra.mxu0 0
      %2616 = vmatprep.subr.bf16.mxu0 0
      %2617 = vmatpush1.bf16.msra.mxu0 0
      %2618 = vmatprep.subr.bf16.mxu0 0
      %2619 = vmatpush1.bf16.msra.mxu0 0
      %2620 = vmatprep.subr.bf16.mxu0 0
      %2621 = vmatpush1.bf16.msra.mxu0 0
      %2622 = vmatprep.subr.bf16.mxu0 0
      %2623 = vmatpush1.bf16.msra.mxu0 0
      %2624 = vmatprep.subr.bf16.mxu0 0
      %2625 = vmatpush1.bf16.msra.mxu0 0
      %2626 = vmatprep.subr.bf16.mxu0 0
      %2627 = vmatpush1.bf16.msra.mxu0 %v2486
      %2628 = vmatprep.subr.bf16.mxu0 0
      %2629 = vmatpush1.bf16.msra.mxu0 %v2485
      %2630 = vmatprep.subr.bf16.mxu0 0
      %2631 = vmatpush2.bf16.msra.mxu0 0
      %2632 = vmatprep.subr.bf16.mxu0 0
      %2633 = vmatpush2.bf16.msra.mxu0 0
      %2634 = vmatprep.subr.bf16.mxu0 0
      %2635 = vmatpush2.bf16.msra.mxu0 0
      %2636 = vmatprep.subr.bf16.mxu0 0
      %2637 = vmatpush2.bf16.msra.mxu0 0
      %2638 = vmatprep.subr.bf16.mxu0 0
      %2639 = vmatpush2.bf16.msra.mxu0 0
      %2640 = vmatprep.subr.bf16.mxu0 0
      %2641 = vmatpush2.bf16.msra.mxu0 0
      %2642 = vmatprep.subr.bf16.mxu0 0
      %2643 = vmatpush2.bf16.msra.mxu0 0
      %2644 = vmatprep.subr.bf16.mxu0 0
      %2645 = vmatpush2.bf16.msra.mxu0 0
      %2646 = vmatprep.mubr.bf16.mxu0 0
      %2647 = vmatmul.mubr.bf16.gmra.mxu0 %v2506
      %v2648 = vpop.f32.mrf.mxu0
      %v2649 = vadd.f32 %v2561, %v2648
      %v2650 = vpop.f32.mrf.mxu0
      %v2651 = vpop.f32.mrf.mxu0
      %v2652 = vadd.f32 %v2564, %v2651
      %v2653 = vpop.f32.mrf.mxu0
      %2654 = vmatprep.mubr.bf16.mxu0 0
      %2655 = vmatmul.mubr.bf16.gmra.mxu0 %v2509
      %v2656 = vpop.f32.mrf.mxu0
      %v2657 = vadd.f32 %v2569, %v2656
      %v2658 = vpop.f32.mrf.mxu0
      %v2659 = vpop.f32.mrf.mxu0
      %v2660 = vadd.f32 %v2572, %v2659
      %v2661 = vpop.f32.mrf.mxu0
      %2662 = vmatprep.mubr.bf16.mxu0 0
      %2663 = vmatmul.mubr.bf16.gmra.mxu0 %v2512
      %v2664 = vpop.f32.mrf.mxu0
      %v2665 = vadd.f32 %v2577, %v2664
      %v2666 = vpop.f32.mrf.mxu0
      %v2667 = vpop.f32.mrf.mxu0
      %v2668 = vadd.f32 %v2580, %v2667
      %v2669 = vpop.f32.mrf.mxu0
      %2670 = vmatprep.mubr.bf16.mxu0 0
      %2671 = vmatmul.mubr.bf16.gmra.mxu0 %v2515
      %v2672 = vpop.f32.mrf.mxu0
      %v2673 = vadd.f32 %v2585, %v2672
      %v2674 = vpop.f32.mrf.mxu0
      %v2675 = vpop.f32.mrf.mxu0
      %v2676 = vadd.f32 %v2588, %v2675
      %v2677 = vpop.f32.mrf.mxu0
      %2678 = vmatprep.mubr.bf16.mxu0 0
      %2679 = vmatmul.mubr.bf16.gmra.mxu0 %v2518
      %v2680 = vpop.f32.mrf.mxu0
      %v2681 = vadd.f32 %v2593, %v2680
      %v2682 = vpop.f32.mrf.mxu0
      %v2683 = vpop.f32.mrf.mxu0
      %v2684 = vadd.f32 %v2596, %v2683
      %v2685 = vpop.f32.mrf.mxu0
      %2686 = vmatprep.mubr.bf16.mxu0 0
      %2687 = vmatmul.mubr.bf16.gmra.mxu0 %v2521
      %v2688 = vpop.f32.mrf.mxu0
      %v2689 = vadd.f32 %v2601, %v2688
      %v2690 = vpop.f32.mrf.mxu0
      %v2691 = vpop.f32.mrf.mxu0
      %v2692 = vadd.f32 %v2604, %v2691
      %v2693 = vpop.f32.mrf.mxu0
      %2694 = vmatprep.mubr.bf16.mxu0 0
      %2695 = vmatmul.mubr.bf16.gmra.mxu0 %v2524
      %v2696 = vpop.f32.mrf.mxu0
      %v2697 = vadd.f32 %v2609, %v2696
      %v2698 = vpop.f32.mrf.mxu0
      %v2699 = vpop.f32.mrf.mxu0
      %v2700 = vpop.f32.mrf.mxu0
      %2701 = vdwg.mxu0
      %s2702 = scalar_lea.vmem %s3, 1
      %v2703 = vld [vmem:[%s2702] sm:$0x1]
      %v2705 = vlaneseq
      %v2706 = vshrl.u32 %v2705, 7
      %v2707 = vsub.s32 0, %v2706
      %v2708 = vrot.slane %v2703, %v2707
      %v2710 = vmul.f32 %v2649, %v2708
      %v2711 = vmul.f32 %v2652, %v2708
      %v2712 = vmul.f32 %v2657, %v2708
      %v2713 = vmul.f32 %v2660, %v2708
      %v2714 = vmul.f32 %v2665, %v2708
      %v2715 = vmul.f32 %v2668, %v2708
      %v2716 = vmul.f32 %v2673, %v2708
      %v2717 = vmul.f32 %v2676, %v2708
      %v2718 = vmul.f32 %v2681, %v2708
      %v2719 = vmul.f32 %v2684, %v2708
      %v2720 = vmul.f32 %v2689, %v2708
      %v2721 = vmul.f32 %v2692, %v2708
      %v2722 = vmul.f32 %v2697, %v2708
      %s2723 = scalar_lea.vmem %s4, 1
      %v2724 = vld [vmem:[%s2723] sm:$0x1]
      %v2726 = vlaneseq
      %v2727 = vshrl.u32 %v2726, 7
      %v2728 = vsub.s32 0, %v2727
      %v2729 = vrot.slane %v2724, %v2728
      %v2731 = vadd.f32 %v2710, %v2729
      %v2732 = vadd.f32 %v2711, %v2729
      %v2733 = vadd.f32 %v2712, %v2729
      %v2734 = vadd.f32 %v2713, %v2729
      %v2735 = vadd.f32 %v2714, %v2729
      %v2736 = vadd.f32 %v2715, %v2729
      %v2737 = vadd.f32 %v2716, %v2729
      %v2738 = vadd.f32 %v2717, %v2729
      %v2739 = vadd.f32 %v2718, %v2729
      %v2740 = vadd.f32 %v2719, %v2729
      %v2741 = vadd.f32 %v2720, %v2729
      %v2742 = vadd.f32 %v2721, %v2729
      %v2743 = vadd.f32 %v2722, %v2729
      %v2744 = vsub.f32 0.0, %v2731
      %v2745 = vsub.f32 0.0, %v2732
      %v2746 = vsub.f32 0.0, %v2733
      %v2747 = vsub.f32 0.0, %v2734
      %v2748 = vsub.f32 0.0, %v2735
      %v2749 = vsub.f32 0.0, %v2736
      %v2750 = vsub.f32 0.0, %v2737
      %v2751 = vsub.f32 0.0, %v2738
      %v2752 = vsub.f32 0.0, %v2739
      %v2753 = vsub.f32 0.0, %v2740
      %v2754 = vsub.f32 0.0, %v2741
      %v2755 = vsub.f32 0.0, %v2742
      %v2756 = vsub.f32 0.0, %v2743
      %v2757 = vmul.f32 %v2744, 1.442695
      %v2758 = vpow.pop %v2757
      %v2759 = vmul.f32 %v2745, 1.442695
      %v2760 = vpow.pop %v2759
      %v2761 = vmul.f32 %v2746, 1.442695
      %v2762 = vpow.pop %v2761
      %v2763 = vmul.f32 %v2747, 1.442695
      %v2764 = vpow.pop %v2763
      %v2765 = vmul.f32 %v2748, 1.442695
      %v2766 = vpow.pop %v2765
      %v2767 = vmul.f32 %v2749, 1.442695
      %v2768 = vpow.pop %v2767
      %v2769 = vmul.f32 %v2750, 1.442695
      %v2770 = vpow.pop %v2769
      %v2771 = vmul.f32 %v2751, 1.442695
      %v2772 = vpow.pop %v2771
      %v2773 = vmul.f32 %v2752, 1.442695
      %v2774 = vpow.pop %v2773
      %v2775 = vmul.f32 %v2753, 1.442695
      %v2776 = vpow.pop %v2775
      %v2777 = vmul.f32 %v2754, 1.442695
      %v2778 = vpow.pop %v2777
      %v2779 = vmul.f32 %v2755, 1.442695
      %v2780 = vpow.pop %v2779
      %v2781 = vmul.f32 %v2756, 1.442695
      %v2782 = vpow.pop %v2781
      %v2783 = vadd.f32 %v2758, 1.0
      %v2784 = vadd.f32 %v2760, 1.0
      %v2785 = vadd.f32 %v2762, 1.0
      %v2786 = vadd.f32 %v2764, 1.0
      %v2787 = vadd.f32 %v2766, 1.0
      %v2788 = vadd.f32 %v2768, 1.0
      %v2789 = vadd.f32 %v2770, 1.0
      %v2790 = vadd.f32 %v2772, 1.0
      %v2791 = vadd.f32 %v2774, 1.0
      %v2792 = vadd.f32 %v2776, 1.0
      %v2793 = vadd.f32 %v2778, 1.0
      %v2794 = vadd.f32 %v2780, 1.0
      %v2795 = vadd.f32 %v2782, 1.0
      %v2796 = vrcp.pop %v2783
      %v2797 = vrcp.pop %v2784
      %v2798 = vrcp.pop %v2785
      %v2799 = vrcp.pop %v2786
      %v2800 = vrcp.pop %v2787
      %v2801 = vrcp.pop %v2788
      %v2802 = vrcp.pop %v2789
      %v2803 = vrcp.pop %v2790
      %v2804 = vrcp.pop %v2791
      %v2805 = vrcp.pop %v2792
      %v2806 = vrcp.pop %v2793
      %v2807 = vrcp.pop %v2794
      %v2808 = vrcp.pop %v2795
      %v2809 = vmul.f32 %v2731, %v2796
      %v2810 = vmul.f32 %v2732, %v2797
      %v2811 = vmul.f32 %v2733, %v2798
      %v2812 = vmul.f32 %v2734, %v2799
      %v2813 = vmul.f32 %v2735, %v2800
      %v2814 = vmul.f32 %v2736, %v2801
      %v2815 = vmul.f32 %v2737, %v2802
      %v2816 = vmul.f32 %v2738, %v2803
      %v2817 = vmul.f32 %v2739, %v2804
      %v2818 = vmul.f32 %v2740, %v2805
      %v2819 = vmul.f32 %v2741, %v2806
      %v2820 = vmul.f32 %v2742, %v2807
      %v2821 = vmul.f32 %v2743, %v2808
      %v2822 = vsel %vm1592, %v2809, 0.0
      %v2823 = vsel %vm1593, %v2810, 0.0
      %v2824 = vsel %vm1594, %v2811, 0.0
      %v2825 = vsel %vm1595, %v2812, 0.0
      %v2826 = vsel %vm1596, %v2813, 0.0
      %v2827 = vsel %vm1597, %v2814, 0.0
      %v2828 = vsel %vm1598, %v2815, 0.0
      %v2829 = vsel %vm1599, %v2816, 0.0
      %v2830 = vsel %vm1600, %v2817, 0.0
      %v2831 = vsel %vm1601, %v2818, 0.0
      %v2832 = vsel %vm1602, %v2819, 0.0
      %v2833 = vsel %vm1603, %v2820, 0.0
      %v2834 = vsel %vm1604, %v2821, 0.0
      %v2835 = vpack.c.bf16 %v2823, %v2822
      %v2836 = vpack.c.bf16 %v2825, %v2824
      %v2837 = vpack.c.bf16 %v2827, %v2826
      %v2838 = vpack.c.bf16 %v2829, %v2828
      %v2839 = vpack.c.bf16 %v2831, %v2830
      %v2840 = vpack.c.bf16 %v2833, %v2832
      %v2841 = vpack.c.bf16 %v2834, %v2834
      %2842 = vst.msk [vmem:[#allocation3] sm:$0xf] %vm387, 0
      %2843 = vst.msk [vmem:[#allocation3 + $0x4] sm:$0xf] %vm387, 0
      %2844 = vst.msk [vmem:[#allocation3 + $0x38] sm:$0xc] %vm390, 0
      %2845 = vst.msk [vmem:[#allocation3 + $0x3c] sm:$0xf] %vm387, 0
      %2846 = vst.msk [vmem:[#allocation3 + $0x40] sm:$0x3] %vm393, 0
      %v2847 = vld [vmem:[%s5] sm:$0xf]
      %v2848 = vld [vmem:[%s5 + $0x4] sm:$0xf]
      %v2849 = vld [vmem:[%s5 + $0x8] sm:$0xf]
      %v2850 = vld [vmem:[%s5 + $0xc] sm:$0xf]
      %v2851 = vld [vmem:[%s5 + $0x10] sm:$0xf]
      %v2852 = vld [vmem:[%s5 + $0x14] sm:$0xf]
      %v2853 = vld [vmem:[%s5 + $0x18] sm:$0xf]
      %v2854 = vld [vmem:[%s5 + $0x1c] sm:$0xf]
      %v2855 = vld [vmem:[%s5 + $0x20] sm:$0xf]
      %v2856 = vld [vmem:[%s5 + $0x24] sm:$0xf]
      %v2857 = vld [vmem:[%s5 + $0x28] sm:$0xf]
      %v2858 = vld [vmem:[%s5 + $0x2c] sm:$0xf]
      %v2859 = vld [vmem:[%s5 + $0x30] sm:$0xf]
      %v2860 = vld [vmem:[%s5 + $0x34] sm:$0xf]
      %v2861 = vld [vmem:[%s5 + $0x38] sm:$0xf]
      %v2862 = vld [vmem:[%s5 + $0x3c] sm:$0xf]
      %v2863 = vld [vmem:[%s5 + $0x40] sm:$0xf]
      %v2864 = vld [vmem:[%s5 + $0x44] sm:$0xf]
      %v2865 = vld [vmem:[%s5 + $0x48] sm:$0xf]
      %v2866 = vld [vmem:[%s5 + $0x4c] sm:$0xf]
      %v2867 = vld [vmem:[%s5 + $0x50] sm:$0xf]
      %v2868 = vld [vmem:[%s5 + $0x54] sm:$0xf]
      %v2869 = vld [vmem:[%s5 + $0x58] sm:$0xf]
      %v2870 = vld [vmem:[%s5 + $0x5c] sm:$0xf]
      %v2871 = vld [vmem:[%s5 + $0x60] sm:$0xf]
      %v2872 = vld [vmem:[%s5 + $0x64] sm:$0xf]
      %v2873 = vld [vmem:[%s5 + $0x68] sm:$0xf]
      %v2874 = vld [vmem:[%s5 + $0x6c] sm:$0xf]
      %v2875 = vld [vmem:[%s5 + $0x70] sm:$0xf]
      %v2876 = vld [vmem:[%s5 + $0x74] sm:$0xf]
      %v2877 = vld [vmem:[%s5 + $0x78] sm:$0xf]
      %v2878 = vld [vmem:[%s5 + $0x7c] sm:$0xf]
      %v2879 = vld [vmem:[%s5 + $0x80] sm:$0xf]
      %v2880 = vld [vmem:[%s5 + $0x84] sm:$0xf]
      %v2881 = vld [vmem:[%s5 + $0x88] sm:$0xf]
      %v2882 = vld [vmem:[%s5 + $0x8c] sm:$0xf]
      %v2883 = vld [vmem:[%s354] sm:$0xc]
      %v2884 = vld [vmem:[%s354 + $0x4] sm:$0xf]
      %v2885 = vld [vmem:[%s354 + $0x8] sm:$0xf]
      %v2886 = vld [vmem:[%s354 + $0xc] sm:$0xf]
      %v2887 = vld [vmem:[%s354 + $0x10] sm:$0xf]
      %v2888 = vld [vmem:[%s354 + $0x14] sm:$0xf]
      %v2889 = vld [vmem:[%s354 + $0x18] sm:$0xf]
      %v2890 = vld [vmem:[%s354 + $0x1c] sm:$0xf]
      %v2891 = vld [vmem:[%s354 + $0x20] sm:$0xf]
      %v2892 = vld [vmem:[%s354 + $0x24] sm:$0xf]
      %v2893 = vld [vmem:[%s354 + $0x28] sm:$0xf]
      %v2894 = vld [vmem:[%s354 + $0x2c] sm:$0xf]
      %v2895 = vld [vmem:[%s354 + $0x30] sm:$0xf]
      %v2896 = vld [vmem:[%s354 + $0x34] sm:$0x1]
      %v2897 = vld [vmem:[%s354] sm:$0x8]
      %v2898 = vld [vmem:[%s354 + $0x34] sm:$0x3]
      %v2899 = vld [vmem:[%s354 + $0x4] sm:$0x8]
      %v2900 = vld [vmem:[%s354 + $0x34] sm:$0xf]
      %v2901 = vld [vmem:[%s354 + $0x38] sm:$0x3]
      %v2902 = vld [vmem:[%s354 + $0x38] sm:$0x7]
      %v2903 = vld [vmem:[%s354 + $0x38] sm:$0xf]
      %v2904 = vld [vmem:[%s354 + $0x3c] sm:$0x7]
      %v2905 = vld [vmem:[%s354 + $0xc] sm:$0xe]
      %v2906 = vld [vmem:[%s354 + $0x3c] sm:$0xf]
      %v2921 = vunpack.c.l.b16 %v2883
      %v2922 = vunpack.c.l.b16 %v2884
      %v2923 = vunpack.c.l.b16 %v2885
      %v2924 = vunpack.c.l.b16 %v2886
      %v2925 = vunpack.c.l.b16 %v2887
      %v2926 = vunpack.c.l.b16 %v2888
      %v2927 = vunpack.c.l.b16 %v2889
      %v2928 = vunpack.c.l.b16 %v2890
      %v2929 = vunpack.c.l.b16 %v2891
      %v2930 = vunpack.c.l.b16 %v2892
      %v2931 = vunpack.c.l.b16 %v2893
      %v2932 = vunpack.c.l.b16 %v2894
      %v2933 = vunpack.c.l.b16 %v2895
      %v2934 = vunpack.c.l.b16 %v2896
      %v2935 = vpack.c.b16 %v2922, %v2921
      %v2936 = vpack.c.b16 %v2924, %v2923
      %v2937 = vpack.c.b16 %v2926, %v2925
      %v2938 = vpack.c.b16 %v2928, %v2927
      %v2939 = vpack.c.b16 %v2930, %v2929
      %v2940 = vpack.c.b16 %v2932, %v2931
      %v2941 = vpack.c.b16 %v2934, %v2933
      %v2943 = vunpack.c.l.b16 %v2897
      %v2944 = vpack.c.b16 %v2922, %v2943
      %v2946 = vshrl.u32 %v2944, 16
      %v2948 = vshll.u32 %v2944, 16
      %v2950 = vrot.slane %v2948, 1
      %v2951 = vor.u32 %v2946, %v2950
      %v2953 = vshll.u32 %v2936, 16
      %v2955 = vrot.slane %v2953, 1
      %v2956 = vsel %vm493, %v2951, %v2955
      %v2957 = vshrl.u32 %v2936, 16
      %v2959 = vor.u32 %v2957, %v2955
      %v2961 = vshll.u32 %v2937, 16
      %v2963 = vrot.slane %v2961, 1
      %v2964 = vsel %vm493, %v2959, %v2963
      %v2965 = vshrl.u32 %v2937, 16
      %v2967 = vor.u32 %v2965, %v2963
      %v2969 = vshll.u32 %v2938, 16
      %v2971 = vrot.slane %v2969, 1
      %v2972 = vsel %vm493, %v2967, %v2971
      %v2973 = vshrl.u32 %v2938, 16
      %v2975 = vor.u32 %v2973, %v2971
      %v2977 = vshll.u32 %v2939, 16
      %v2979 = vrot.slane %v2977, 1
      %v2980 = vsel %vm493, %v2975, %v2979
      %v2981 = vshrl.u32 %v2939, 16
      %v2983 = vor.u32 %v2981, %v2979
      %v2985 = vshll.u32 %v2940, 16
      %v2987 = vrot.slane %v2985, 1
      %v2988 = vsel %vm493, %v2983, %v2987
      %v2989 = vshrl.u32 %v2940, 16
      %v2991 = vor.u32 %v2989, %v2987
      %v2993 = vshll.u32 %v2941, 16
      %v2995 = vrot.slane %v2993, 1
      %v2996 = vsel %vm493, %v2991, %v2995
      %v2997 = vshrl.u32 %v2941, 16
      %v2999 = vor.u32 %v2997, %v2995
      %3000 = vrot.lane.b32.xlu0 %v2956, 32
      %v3001 = vpop.permute.xlu0 %3000
      %3002 = vrot.lane.b32.xlu0 %v2964, 32
      %v3003 = vpop.permute.xlu0 %3002
      %3004 = vrot.lane.b32.xlu0 %v2972, 32
      %v3005 = vpop.permute.xlu0 %3004
      %3006 = vrot.lane.b32.xlu0 %v2980, 32
      %v3007 = vpop.permute.xlu0 %3006
      %3008 = vrot.lane.b32.xlu0 %v2988, 32
      %v3009 = vpop.permute.xlu0 %3008
      %3010 = vrot.lane.b32.xlu0 %v2996, 32
      %v3011 = vpop.permute.xlu0 %3010
      %3012 = vrot.lane.b32.xlu0 %v2999, 32
      %v3013 = vpop.permute.xlu0 %3012
      %v3015 = vunpack.c.l.b16 %v2898
      %v3016 = vpack.c.b16 %v3015, %v2933
      %v3017 = vrot.slane %v2944, 1
      %v3018 = vrot.slane %v2936, 1
      %v3019 = vsel %vm566, %v3017, %v3018
      %v3020 = vrot.slane %v2937, 1
      %v3021 = vsel %vm566, %v3018, %v3020
      %v3022 = vrot.slane %v2938, 1
      %v3023 = vsel %vm566, %v3020, %v3022
      %v3024 = vrot.slane %v2939, 1
      %v3025 = vsel %vm566, %v3022, %v3024
      %v3026 = vrot.slane %v2940, 1
      %v3027 = vsel %vm566, %v3024, %v3026
      %v3028 = vrot.slane %v3016, 1
      %v3029 = vsel %vm566, %v3026, %v3028
      %3030 = vrot.lane.b32.xlu0 %v3019, 64
      %v3031 = vpop.permute.xlu0 %3030
      %3032 = vrot.lane.b32.xlu0 %v3021, 64
      %v3033 = vpop.permute.xlu0 %3032
      %3034 = vrot.lane.b32.xlu0 %v3023, 64
      %v3035 = vpop.permute.xlu0 %3034
      %3036 = vrot.lane.b32.xlu0 %v3025, 64
      %v3037 = vpop.permute.xlu0 %3036
      %3038 = vrot.lane.b32.xlu0 %v3027, 64
      %v3039 = vpop.permute.xlu0 %3038
      %3040 = vrot.lane.b32.xlu0 %v3029, 64
      %v3041 = vpop.permute.xlu0 %3040
      %3042 = vrot.lane.b32.xlu0 %v3028, 64
      %v3043 = vpop.permute.xlu0 %3042
      %v3047 = vunpack.c.l.b16 %v2899
      %v3048 = vunpack.c.l.b16 %v2900
      %v3049 = vunpack.c.l.b16 %v2901
      %v3050 = vpack.c.b16 %v2923, %v3047
      %v3051 = vpack.c.b16 %v2925, %v2924
      %v3052 = vpack.c.b16 %v2927, %v2926
      %v3053 = vpack.c.b16 %v2929, %v2928
      %v3054 = vpack.c.b16 %v2931, %v2930
      %v3055 = vpack.c.b16 %v2933, %v2932
      %v3056 = vpack.c.b16 %v3049, %v3048
      %v3057 = vrot.slane %v3050, 1
      %v3058 = vrot.slane %v3051, 1
      %v3059 = vsel %vm566, %v3057, %v3058
      %v3060 = vrot.slane %v3052, 1
      %v3061 = vsel %vm566, %v3058, %v3060
      %v3062 = vrot.slane %v3053, 1
      %v3063 = vsel %vm566, %v3060, %v3062
      %v3064 = vrot.slane %v3054, 1
      %v3065 = vsel %vm566, %v3062, %v3064
      %v3066 = vrot.slane %v3055, 1
      %v3067 = vsel %vm566, %v3064, %v3066
      %v3068 = vrot.slane %v3056, 1
      %v3069 = vsel %vm566, %v3066, %v3068
      %3070 = vrot.lane.b32.xlu0 %v3059, 96
      %v3071 = vpop.permute.xlu0 %3070
      %3072 = vrot.lane.b32.xlu0 %v3061, 96
      %v3073 = vpop.permute.xlu0 %3072
      %3074 = vrot.lane.b32.xlu0 %v3063, 96
      %v3075 = vpop.permute.xlu0 %3074
      %3076 = vrot.lane.b32.xlu0 %v3065, 96
      %v3077 = vpop.permute.xlu0 %3076
      %3078 = vrot.lane.b32.xlu0 %v3067, 96
      %v3079 = vpop.permute.xlu0 %3078
      %3080 = vrot.lane.b32.xlu0 %v3069, 96
      %v3081 = vpop.permute.xlu0 %3080
      %3082 = vrot.lane.b32.xlu0 %v3068, 96
      %v3083 = vpop.permute.xlu0 %3082
      %v3084 = vpack.c.b16 %v3048, %v2933
      %v3085 = vpack.c.b16 %v3049, %v3049
      %v3086 = vrot.slane %v2957, 5
      %v3087 = vrot.slane %v2953, 6
      %v3088 = vor.u32 %v3086, %v3087
      %v3089 = vrot.slane %v2965, 5
      %v3090 = vrot.slane %v2961, 6
      %v3091 = vor.u32 %v3089, %v3090
      %v3092 = vsel %vm636, %v3088, %v3091
      %v3093 = vrot.slane %v2973, 5
      %v3094 = vrot.slane %v2969, 6
      %v3095 = vor.u32 %v3093, %v3094
      %v3096 = vsel %vm636, %v3091, %v3095
      %v3097 = vrot.slane %v2981, 5
      %v3098 = vrot.slane %v2977, 6
      %v3099 = vor.u32 %v3097, %v3098
      %v3100 = vsel %vm636, %v3095, %v3099
      %v3101 = vrot.slane %v2989, 5
      %v3102 = vrot.slane %v2985, 6
      %v3103 = vor.u32 %v3101, %v3102
      %v3104 = vsel %vm636, %v3099, %v3103
      %v3106 = vshrl.u32 %v3084, 16
      %v3108 = vrot.slane %v3106, 5
      %v3109 = vshll.u32 %v3084, 16
      %v3111 = vrot.slane %v3109, 6
      %v3112 = vor.u32 %v3108, %v3111
      %v3113 = vsel %vm636, %v3103, %v3112
      %v3115 = vshrl.u32 %v3085, 16
      %v3117 = vrot.slane %v3115, 5
      %v3118 = vshll.u32 %v3085, 16
      %v3120 = vrot.slane %v3118, 6
      %v3121 = vor.u32 %v3117, %v3120
      %v3122 = vsel %vm636, %v3112, %v3121
      %v3124 = vunpack.c.l.b16 %v2902
      %v3125 = vpack.c.b16 %v3124, %v3124
      %v3126 = vrot.slane %v2936, 6
      %v3127 = vrot.slane %v2937, 6
      %v3128 = vsel %vm677, %v3126, %v3127
      %v3129 = vrot.slane %v2938, 6
      %v3130 = vsel %vm677, %v3127, %v3129
      %v3131 = vrot.slane %v2939, 6
      %v3132 = vsel %vm677, %v3129, %v3131
      %v3133 = vrot.slane %v2940, 6
      %v3134 = vsel %vm677, %v3131, %v3133
      %v3135 = vrot.slane %v3084, 6
      %v3136 = vsel %vm677, %v3133, %v3135
      %v3137 = vrot.slane %v3125, 6
      %v3138 = vsel %vm677, %v3135, %v3137
      %3139 = vrot.lane.b32.xlu0 %v3126, 32
      %v3140 = vpop.permute.xlu0 %3139
      %3141 = vrot.lane.b32.xlu0 %v3128, 32
      %v3142 = vpop.permute.xlu0 %3141
      %3143 = vrot.lane.b32.xlu0 %v3130, 32
      %v3144 = vpop.permute.xlu0 %3143
      %3145 = vrot.lane.b32.xlu0 %v3132, 32
      %v3146 = vpop.permute.xlu0 %3145
      %3147 = vrot.lane.b32.xlu0 %v3134, 32
      %v3148 = vpop.permute.xlu0 %3147
      %3149 = vrot.lane.b32.xlu0 %v3136, 32
      %v3150 = vpop.permute.xlu0 %3149
      %3151 = vrot.lane.b32.xlu0 %v3138, 32
      %v3152 = vpop.permute.xlu0 %3151
      %v3155 = vunpack.c.l.b16 %v2903
      %v3156 = vunpack.c.l.b16 %v2904
      %v3157 = vpack.c.b16 %v3155, %v3048
      %v3158 = vpack.c.b16 %v3156, %v3156
      %v3159 = vrot.slane %v3051, 6
      %v3160 = vrot.slane %v3052, 6
      %v3161 = vsel %vm677, %v3159, %v3160
      %v3162 = vrot.slane %v3053, 6
      %v3163 = vsel %vm677, %v3160, %v3162
      %v3164 = vrot.slane %v3054, 6
      %v3165 = vsel %vm677, %v3162, %v3164
      %v3166 = vrot.slane %v3055, 6
      %v3167 = vsel %vm677, %v3164, %v3166
      %v3168 = vrot.slane %v3157, 6
      %v3169 = vsel %vm677, %v3166, %v3168
      %v3170 = vrot.slane %v3158, 6
      %v3171 = vsel %vm677, %v3168, %v3170
      %3172 = vrot.lane.b32.xlu0 %v3159, 64
      %v3173 = vpop.permute.xlu0 %3172
      %3174 = vrot.lane.b32.xlu0 %v3161, 64
      %v3175 = vpop.permute.xlu0 %3174
      %3176 = vrot.lane.b32.xlu0 %v3163, 64
      %v3177 = vpop.permute.xlu0 %3176
      %3178 = vrot.lane.b32.xlu0 %v3165, 64
      %v3179 = vpop.permute.xlu0 %3178
      %3180 = vrot.lane.b32.xlu0 %v3167, 64
      %v3181 = vpop.permute.xlu0 %3180
      %3182 = vrot.lane.b32.xlu0 %v3169, 64
      %v3183 = vpop.permute.xlu0 %3182
      %3184 = vrot.lane.b32.xlu0 %v3171, 64
      %v3185 = vpop.permute.xlu0 %3184
      %v3187 = vunpack.c.l.b16 %v2905
      %v3188 = vpack.c.b16 %v2925, %v3187
      %v3190 = vshrl.u32 %v3188, 16
      %v3192 = vrot.slane %v3190, 6
      %v3193 = vshll.u32 %v3188, 16
      %v3195 = vrot.slane %v3193, 7
      %v3196 = vor.u32 %v3192, %v3195
      %v3198 = vshrl.u32 %v3052, 16
      %v3200 = vrot.slane %v3198, 6
      %v3201 = vshll.u32 %v3052, 16
      %v3203 = vrot.slane %v3201, 7
      %v3204 = vor.u32 %v3200, %v3203
      %v3205 = vsel %vm741, %v3196, %v3204
      %v3207 = vshrl.u32 %v3053, 16
      %v3209 = vrot.slane %v3207, 6
      %v3210 = vshll.u32 %v3053, 16
      %v3212 = vrot.slane %v3210, 7
      %v3213 = vor.u32 %v3209, %v3212
      %v3214 = vsel %vm741, %v3204, %v3213
      %v3216 = vshrl.u32 %v3054, 16
      %v3218 = vrot.slane %v3216, 6
      %v3219 = vshll.u32 %v3054, 16
      %v3221 = vrot.slane %v3219, 7
      %v3222 = vor.u32 %v3218, %v3221
      %v3223 = vsel %vm741, %v3213, %v3222
      %v3225 = vshrl.u32 %v3055, 16
      %v3227 = vrot.slane %v3225, 6
      %v3228 = vshll.u32 %v3055, 16
      %v3230 = vrot.slane %v3228, 7
      %v3231 = vor.u32 %v3227, %v3230
      %v3232 = vsel %vm741, %v3222, %v3231
      %v3234 = vshrl.u32 %v3157, 16
      %v3236 = vrot.slane %v3234, 6
      %v3237 = vshll.u32 %v3157, 16
      %v3239 = vrot.slane %v3237, 7
      %v3240 = vor.u32 %v3236, %v3239
      %v3241 = vsel %vm741, %v3231, %v3240
      %v3243 = vshrl.u32 %v3158, 16
      %v3245 = vrot.slane %v3243, 6
      %v3246 = vshll.u32 %v3158, 16
      %v3248 = vrot.slane %v3246, 7
      %v3249 = vor.u32 %v3245, %v3248
      %v3250 = vsel %vm741, %v3240, %v3249
      %3251 = vrot.lane.b32.xlu0 %v3196, 96
      %v3252 = vpop.permute.xlu0 %3251
      %3253 = vrot.lane.b32.xlu0 %v3205, 96
      %v3254 = vpop.permute.xlu0 %3253
      %3255 = vrot.lane.b32.xlu0 %v3214, 96
      %v3256 = vpop.permute.xlu0 %3255
      %3257 = vrot.lane.b32.xlu0 %v3223, 96
      %v3258 = vpop.permute.xlu0 %3257
      %3259 = vrot.lane.b32.xlu0 %v3232, 96
      %v3260 = vpop.permute.xlu0 %3259
      %3261 = vrot.lane.b32.xlu0 %v3241, 96
      %v3262 = vpop.permute.xlu0 %3261
      %3263 = vrot.lane.b32.xlu0 %v3250, 96
      %v3264 = vpop.permute.xlu0 %3263
      %v3266 = vunpack.c.l.b16 %v2906
      %v3267 = vpack.c.b16 %v3266, %v3266
      %v3268 = vrot.slane %v3188, 7
      %v3269 = vrot.slane %v3052, 7
      %v3270 = vsel %vm821, %v3268, %v3269
      %v3271 = vrot.slane %v3053, 7
      %v3272 = vsel %vm821, %v3269, %v3271
      %v3273 = vrot.slane %v3054, 7
      %v3274 = vsel %vm821, %v3271, %v3273
      %v3275 = vrot.slane %v3055, 7
      %v3276 = vsel %vm821, %v3273, %v3275
      %v3277 = vrot.slane %v3157, 7
      %v3278 = vsel %vm821, %v3275, %v3277
      %v3279 = vrot.slane %v3267, 7
      %v3280 = vsel %vm821, %v3277, %v3279
      %v3283 = vsel %vm835, %v2935, %v3001
      %v3285 = vsel %vm835, %v2936, %v3003
      %v3287 = vsel %vm835, %v2937, %v3005
      %v3289 = vsel %vm835, %v2938, %v3007
      %v3291 = vsel %vm835, %v2939, %v3009
      %v3293 = vsel %vm835, %v2940, %v3011
      %v3295 = vsel %vm835, %v2941, %v3013
      %v3297 = vsel %vm851, %v3283, %v3031
      %v3299 = vsel %vm851, %v3285, %v3033
      %v3301 = vsel %vm851, %v3287, %v3035
      %v3303 = vsel %vm851, %v3289, %v3037
      %v3305 = vsel %vm851, %v3291, %v3039
      %v3307 = vsel %vm851, %v3293, %v3041
      %v3309 = vsel %vm851, %v3295, %v3043
      %v3311 = vsel %vm866, %v3297, %v3071
      %v3313 = vsel %vm866, %v3299, %v3073
      %v3315 = vsel %vm866, %v3301, %v3075
      %v3317 = vsel %vm866, %v3303, %v3077
      %v3319 = vsel %vm866, %v3305, %v3079
      %v3321 = vsel %vm866, %v3307, %v3081
      %v3323 = vsel %vm866, %v3309, %v3083
      %v3326 = vsel %vm835, %v3088, %v3140
      %v3329 = vsel %vm835, %v3092, %v3142
      %v3332 = vsel %vm835, %v3096, %v3144
      %v3335 = vsel %vm835, %v3100, %v3146
      %v3338 = vsel %vm835, %v3104, %v3148
      %v3341 = vsel %vm835, %v3113, %v3150
      %v3344 = vsel %vm835, %v3122, %v3152
      %v3346 = vsel %vm851, %v3326, %v3173
      %v3348 = vsel %vm851, %v3329, %v3175
      %v3350 = vsel %vm851, %v3332, %v3177
      %v3352 = vsel %vm851, %v3335, %v3179
      %v3354 = vsel %vm851, %v3338, %v3181
      %v3356 = vsel %vm851, %v3341, %v3183
      %v3358 = vsel %vm851, %v3344, %v3185
      %v3360 = vsel %vm866, %v3346, %v3252
      %v3362 = vsel %vm866, %v3348, %v3254
      %v3364 = vsel %vm866, %v3350, %v3256
      %v3366 = vsel %vm866, %v3352, %v3258
      %v3368 = vsel %vm866, %v3354, %v3260
      %v3370 = vsel %vm866, %v3356, %v3262
      %v3372 = vsel %vm866, %v3358, %v3264
      %v3373 = vshrl.u32 %v3311, 16
      %v3375 = vrot.slane %v3373, 2
      %v3376 = vshll.u32 %v3311, 16
      %v3378 = vrot.slane %v3376, 3
      %v3379 = vor.u32 %v3375, %v3378
      %v3380 = vshrl.u32 %v3313, 16
      %v3382 = vrot.slane %v3380, 2
      %v3383 = vshll.u32 %v3313, 16
      %v3385 = vrot.slane %v3383, 3
      %v3386 = vor.u32 %v3382, %v3385
      %v3387 = vsel %vm930, %v3379, %v3386
      %v3388 = vshrl.u32 %v3360, 16
      %v3390 = vrot.slane %v3388, 2
      %v3391 = vshll.u32 %v3360, 16
      %v3393 = vrot.slane %v3391, 3
      %v3394 = vor.u32 %v3390, %v3393
      %v3395 = vshrl.u32 %v3362, 16
      %v3397 = vrot.slane %v3395, 2
      %v3398 = vshll.u32 %v3362, 16
      %v3400 = vrot.slane %v3398, 3
      %v3401 = vor.u32 %v3397, %v3400
      %v3402 = vsel %vm930, %v3394, %v3401
      %v3404 = vshrl.u32 %v3268, 16
      %v3406 = vrot.slane %v3404, 2
      %v3407 = vshll.u32 %v3268, 16
      %v3409 = vrot.slane %v3407, 3
      %v3410 = vor.u32 %v3406, %v3409
      %v3412 = vshrl.u32 %v3270, 16
      %v3414 = vrot.slane %v3412, 2
      %v3415 = vshll.u32 %v3270, 16
      %v3417 = vrot.slane %v3415, 3
      %v3418 = vor.u32 %v3414, %v3417
      %v3419 = vsel %vm930, %v3410, %v3418
      %v3420 = vshrl.u32 %v3315, 16
      %v3422 = vrot.slane %v3420, 2
      %v3423 = vshll.u32 %v3315, 16
      %v3425 = vrot.slane %v3423, 3
      %v3426 = vor.u32 %v3422, %v3425
      %v3427 = vsel %vm930, %v3386, %v3426
      %v3428 = vshrl.u32 %v3364, 16
      %v3430 = vrot.slane %v3428, 2
      %v3431 = vshll.u32 %v3364, 16
      %v3433 = vrot.slane %v3431, 3
      %v3434 = vor.u32 %v3430, %v3433
      %v3435 = vsel %vm930, %v3401, %v3434
      %v3437 = vshrl.u32 %v3272, 16
      %v3439 = vrot.slane %v3437, 2
      %v3440 = vshll.u32 %v3272, 16
      %v3442 = vrot.slane %v3440, 3
      %v3443 = vor.u32 %v3439, %v3442
      %v3444 = vsel %vm930, %v3418, %v3443
      %v3445 = vshrl.u32 %v3317, 16
      %v3447 = vrot.slane %v3445, 2
      %v3448 = vshll.u32 %v3317, 16
      %v3450 = vrot.slane %v3448, 3
      %v3451 = vor.u32 %v3447, %v3450
      %v3452 = vsel %vm930, %v3426, %v3451
      %v3453 = vshrl.u32 %v3366, 16
      %v3455 = vrot.slane %v3453, 2
      %v3456 = vshll.u32 %v3366, 16
      %v3458 = vrot.slane %v3456, 3
      %v3459 = vor.u32 %v3455, %v3458
      %v3460 = vsel %vm930, %v3434, %v3459
      %v3462 = vshrl.u32 %v3274, 16
      %v3464 = vrot.slane %v3462, 2
      %v3465 = vshll.u32 %v3274, 16
      %v3467 = vrot.slane %v3465, 3
      %v3468 = vor.u32 %v3464, %v3467
      %v3469 = vsel %vm930, %v3443, %v3468
      %v3470 = vshrl.u32 %v3319, 16
      %v3472 = vrot.slane %v3470, 2
      %v3473 = vshll.u32 %v3319, 16
      %v3475 = vrot.slane %v3473, 3
      %v3476 = vor.u32 %v3472, %v3475
      %v3477 = vsel %vm930, %v3451, %v3476
      %v3478 = vshrl.u32 %v3368, 16
      %v3480 = vrot.slane %v3478, 2
      %v3481 = vshll.u32 %v3368, 16
      %v3483 = vrot.slane %v3481, 3
      %v3484 = vor.u32 %v3480, %v3483
      %v3485 = vsel %vm930, %v3459, %v3484
      %v3487 = vshrl.u32 %v3276, 16
      %v3489 = vrot.slane %v3487, 2
      %v3490 = vshll.u32 %v3276, 16
      %v3492 = vrot.slane %v3490, 3
      %v3493 = vor.u32 %v3489, %v3492
      %v3494 = vsel %vm930, %v3468, %v3493
      %v3495 = vshrl.u32 %v3321, 16
      %v3497 = vrot.slane %v3495, 2
      %v3498 = vshll.u32 %v3321, 16
      %v3500 = vrot.slane %v3498, 3
      %v3501 = vor.u32 %v3497, %v3500
      %v3502 = vsel %vm930, %v3476, %v3501
      %v3503 = vshrl.u32 %v3370, 16
      %v3505 = vrot.slane %v3503, 2
      %v3506 = vshll.u32 %v3370, 16
      %v3508 = vrot.slane %v3506, 3
      %v3509 = vor.u32 %v3505, %v3508
      %v3510 = vsel %vm930, %v3484, %v3509
      %v3512 = vshrl.u32 %v3278, 16
      %v3514 = vrot.slane %v3512, 2
      %v3515 = vshll.u32 %v3278, 16
      %v3517 = vrot.slane %v3515, 3
      %v3518 = vor.u32 %v3514, %v3517
      %v3519 = vsel %vm930, %v3493, %v3518
      %v3520 = vshrl.u32 %v3323, 16
      %v3522 = vrot.slane %v3520, 2
      %v3523 = vshll.u32 %v3323, 16
      %v3525 = vrot.slane %v3523, 3
      %v3526 = vor.u32 %v3522, %v3525
      %v3527 = vsel %vm930, %v3501, %v3526
      %v3528 = vshrl.u32 %v3372, 16
      %v3530 = vrot.slane %v3528, 2
      %v3531 = vshll.u32 %v3372, 16
      %v3533 = vrot.slane %v3531, 3
      %v3534 = vor.u32 %v3530, %v3533
      %v3535 = vsel %vm930, %v3509, %v3534
      %v3537 = vshrl.u32 %v3280, 16
      %v3539 = vrot.slane %v3537, 2
      %v3540 = vshll.u32 %v3280, 16
      %v3542 = vrot.slane %v3540, 3
      %v3543 = vor.u32 %v3539, %v3542
      %v3544 = vsel %vm930, %v3518, %v3543
      %v3595 = vunpack.c.l.b16 %v2847
      %v3596 = vunpack.c.l.b16 %v2848
      %v3597 = vunpack.c.l.b16 %v2849
      %v3598 = vunpack.c.l.b16 %v2850
      %v3599 = vunpack.c.l.b16 %v2851
      %v3600 = vunpack.c.l.b16 %v2852
      %v3601 = vunpack.c.l.b16 %v2853
      %v3602 = vunpack.c.l.b16 %v2854
      %v3603 = vunpack.c.l.b16 %v2855
      %v3604 = vunpack.c.l.b16 %v2856
      %v3605 = vunpack.c.l.b16 %v2857
      %v3606 = vunpack.c.l.b16 %v2858
      %v3607 = vunpack.c.l.b16 %v2859
      %v3608 = vunpack.c.l.b16 %v2860
      %v3609 = vunpack.c.l.b16 %v2861
      %v3610 = vunpack.c.l.b16 %v2862
      %v3611 = vunpack.c.l.b16 %v2863
      %v3612 = vunpack.c.l.b16 %v2864
      %v3613 = vunpack.c.l.b16 %v2865
      %v3614 = vunpack.c.l.b16 %v2866
      %v3615 = vunpack.c.l.b16 %v2867
      %v3616 = vunpack.c.l.b16 %v2868
      %v3617 = vunpack.c.l.b16 %v2869
      %v3618 = vunpack.c.l.b16 %v2870
      %v3619 = vunpack.c.l.b16 %v2871
      %v3620 = vunpack.c.l.b16 %v2872
      %v3621 = vunpack.c.l.b16 %v2873
      %v3622 = vunpack.c.l.b16 %v2874
      %v3623 = vunpack.c.l.b16 %v2875
      %v3624 = vunpack.c.l.b16 %v2876
      %v3625 = vunpack.c.l.b16 %v2877
      %v3626 = vunpack.c.l.b16 %v2878
      %v3627 = vunpack.c.l.b16 %v2879
      %v3628 = vunpack.c.l.b16 %v2880
      %v3629 = vunpack.c.l.b16 %v2881
      %v3630 = vunpack.c.l.b16 %v2882
      %v3631 = vpack.c.b16 %v3596, %v3595
      %v3632 = vpack.c.b16 %v3598, %v3597
      %v3633 = vpack.c.b16 %v3600, %v3599
      %v3634 = vpack.c.b16 %v3602, %v3601
      %v3635 = vpack.c.b16 %v3604, %v3603
      %v3636 = vpack.c.b16 %v3606, %v3605
      %v3637 = vpack.c.b16 %v3608, %v3607
      %v3638 = vpack.c.b16 %v3610, %v3609
      %v3639 = vpack.c.b16 %v3612, %v3611
      %v3640 = vpack.c.b16 %v3614, %v3613
      %v3641 = vpack.c.b16 %v3616, %v3615
      %v3642 = vpack.c.b16 %v3618, %v3617
      %v3643 = vpack.c.b16 %v3620, %v3619
      %v3644 = vpack.c.b16 %v3622, %v3621
      %v3645 = vpack.c.b16 %v3624, %v3623
      %v3646 = vpack.c.b16 %v3626, %v3625
      %v3647 = vpack.c.b16 %v3628, %v3627
      %v3648 = vpack.c.b16 %v3630, %v3629
      %v3668 = vsel %vm835, %v3419, 0
      %v3671 = vsel %vm835, %v3444, 0
      %v3674 = vsel %vm835, %v3469, 0
      %v3677 = vsel %vm835, %v3494, 0
      %v3680 = vsel %vm835, %v3519, 0
      %v3683 = vsel %vm835, %v3544, 0
      %v3686 = vsel %vm835, %v3543, 0
      %3688 = vmatprep.subr.bf16.mxu0 0
      %3689 = vmatpush1.bf16.msra.mxu0 %v3638
      %3690 = vmatprep.subr.bf16.mxu0 0
      %3691 = vmatpush1.bf16.msra.mxu0 %v3637
      %3692 = vmatprep.subr.bf16.mxu0 0
      %3693 = vmatpush1.bf16.msra.mxu0 %v3636
      %3694 = vmatprep.subr.bf16.mxu0 0
      %3695 = vmatpush1.bf16.msra.mxu0 %v3635
      %3696 = vmatprep.subr.bf16.mxu0 0
      %3697 = vmatpush1.bf16.msra.mxu0 %v3634
      %3698 = vmatprep.subr.bf16.mxu0 0
      %3699 = vmatpush1.bf16.msra.mxu0 %v3633
      %3700 = vmatprep.subr.bf16.mxu0 0
      %3701 = vmatpush1.bf16.msra.mxu0 %v3632
      %3702 = vmatprep.subr.bf16.mxu0 0
      %3703 = vmatpush1.bf16.msra.mxu0 %v3631
      %3704 = vmatprep.subr.bf16.mxu0 0
      %3705 = vmatpush2.bf16.msra.mxu0 %v3646
      %3706 = vmatprep.subr.bf16.mxu0 0
      %3707 = vmatpush2.bf16.msra.mxu0 %v3645
      %3708 = vmatprep.subr.bf16.mxu0 0
      %3709 = vmatpush2.bf16.msra.mxu0 %v3644
      %3710 = vmatprep.subr.bf16.mxu0 0
      %3711 = vmatpush2.bf16.msra.mxu0 %v3643
      %3712 = vmatprep.subr.bf16.mxu0 0
      %3713 = vmatpush2.bf16.msra.mxu0 %v3642
      %3714 = vmatprep.subr.bf16.mxu0 0
      %3715 = vmatpush2.bf16.msra.mxu0 %v3641
      %3716 = vmatprep.subr.bf16.mxu0 0
      %3717 = vmatpush2.bf16.msra.mxu0 %v3640
      %3718 = vmatprep.subr.bf16.mxu0 0
      %3719 = vmatpush2.bf16.msra.mxu0 %v3639
      %3720 = vmatprep.mubr.bf16.mxu0 %v3402
      %3721 = vmatmul.mubr.bf16.gmra.mxu0 %v3387
      %v3722 = vpop.f32.mrf.mxu0
      %v3723 = vadd.f32 0.0, %v3722
      %v3724 = vpop.f32.mrf.mxu0
      %v3725 = vpop.f32.mrf.mxu0
      %v3726 = vadd.f32 0.0, %v3725
      %v3727 = vpop.f32.mrf.mxu0
      %3728 = vmatprep.mubr.bf16.mxu0 %v3435
      %3729 = vmatmul.mubr.bf16.gmra.mxu0 %v3427
      %v3730 = vpop.f32.mrf.mxu0
      %v3731 = vadd.f32 0.0, %v3730
      %v3732 = vpop.f32.mrf.mxu0
      %v3733 = vpop.f32.mrf.mxu0
      %v3734 = vadd.f32 0.0, %v3733
      %v3735 = vpop.f32.mrf.mxu0
      %3736 = vmatprep.mubr.bf16.mxu0 %v3460
      %3737 = vmatmul.mubr.bf16.gmra.mxu0 %v3452
      %v3738 = vpop.f32.mrf.mxu0
      %v3739 = vadd.f32 0.0, %v3738
      %v3740 = vpop.f32.mrf.mxu0
      %v3741 = vpop.f32.mrf.mxu0
      %v3742 = vadd.f32 0.0, %v3741
      %v3743 = vpop.f32.mrf.mxu0
      %3744 = vmatprep.mubr.bf16.mxu0 %v3485
      %3745 = vmatmul.mubr.bf16.gmra.mxu0 %v3477
      %v3746 = vpop.f32.mrf.mxu0
      %v3747 = vadd.f32 0.0, %v3746
      %v3748 = vpop.f32.mrf.mxu0
      %v3749 = vpop.f32.mrf.mxu0
      %v3750 = vadd.f32 0.0, %v3749
      %v3751 = vpop.f32.mrf.mxu0
      %3752 = vmatprep.mubr.bf16.mxu0 %v3510
      %3753 = vmatmul.mubr.bf16.gmra.mxu0 %v3502
      %v3754 = vpop.f32.mrf.mxu0
      %v3755 = vadd.f32 0.0, %v3754
      %v3756 = vpop.f32.mrf.mxu0
      %v3757 = vpop.f32.mrf.mxu0
      %v3758 = vadd.f32 0.0, %v3757
      %v3759 = vpop.f32.mrf.mxu0
      %3760 = vmatprep.mubr.bf16.mxu0 %v3535
      %3761 = vmatmul.mubr.bf16.gmra.mxu0 %v3527
      %v3762 = vpop.f32.mrf.mxu0
      %v3763 = vadd.f32 0.0, %v3762
      %v3764 = vpop.f32.mrf.mxu0
      %v3765 = vpop.f32.mrf.mxu0
      %v3766 = vadd.f32 0.0, %v3765
      %v3767 = vpop.f32.mrf.mxu0
      %3768 = vmatprep.mubr.bf16.mxu0 %v3534
      %3769 = vmatmul.mubr.bf16.gmra.mxu0 %v3526
      %v3770 = vpop.f32.mrf.mxu0
      %v3771 = vadd.f32 0.0, %v3770
      %v3772 = vpop.f32.mrf.mxu0
      %v3773 = vpop.f32.mrf.mxu0
      %v3774 = vpop.f32.mrf.mxu0
      %3775 = vdwg.mxu0
      %3776 = vmatprep.subr.bf16.mxu0 0
      %3777 = vmatpush1.bf16.msra.mxu0 0
      %3778 = vmatprep.subr.bf16.mxu0 0
      %3779 = vmatpush1.bf16.msra.mxu0 0
      %3780 = vmatprep.subr.bf16.mxu0 0
      %3781 = vmatpush1.bf16.msra.mxu0 0
      %3782 = vmatprep.subr.bf16.mxu0 0
      %3783 = vmatpush1.bf16.msra.mxu0 0
      %3784 = vmatprep.subr.bf16.mxu0 0
      %3785 = vmatpush1.bf16.msra.mxu0 0
      %3786 = vmatprep.subr.bf16.mxu0 0
      %3787 = vmatpush1.bf16.msra.mxu0 0
      %3788 = vmatprep.subr.bf16.mxu0 0
      %3789 = vmatpush1.bf16.msra.mxu0 %v3648
      %3790 = vmatprep.subr.bf16.mxu0 0
      %3791 = vmatpush1.bf16.msra.mxu0 %v3647
      %3792 = vmatprep.subr.bf16.mxu0 0
      %3793 = vmatpush2.bf16.msra.mxu0 0
      %3794 = vmatprep.subr.bf16.mxu0 0
      %3795 = vmatpush2.bf16.msra.mxu0 0
      %3796 = vmatprep.subr.bf16.mxu0 0
      %3797 = vmatpush2.bf16.msra.mxu0 0
      %3798 = vmatprep.subr.bf16.mxu0 0
      %3799 = vmatpush2.bf16.msra.mxu0 0
      %3800 = vmatprep.subr.bf16.mxu0 0
      %3801 = vmatpush2.bf16.msra.mxu0 0
      %3802 = vmatprep.subr.bf16.mxu0 0
      %3803 = vmatpush2.bf16.msra.mxu0 0
      %3804 = vmatprep.subr.bf16.mxu0 0
      %3805 = vmatpush2.bf16.msra.mxu0 0
      %3806 = vmatprep.subr.bf16.mxu0 0
      %3807 = vmatpush2.bf16.msra.mxu0 0
      %3808 = vmatprep.mubr.bf16.mxu0 0
      %3809 = vmatmul.mubr.bf16.gmra.mxu0 %v3668
      %v3810 = vpop.f32.mrf.mxu0
      %v3811 = vadd.f32 %v3723, %v3810
      %v3812 = vpop.f32.mrf.mxu0
      %v3813 = vpop.f32.mrf.mxu0
      %v3814 = vadd.f32 %v3726, %v3813
      %v3815 = vpop.f32.mrf.mxu0
      %3816 = vmatprep.mubr.bf16.mxu0 0
      %3817 = vmatmul.mubr.bf16.gmra.mxu0 %v3671
      %v3818 = vpop.f32.mrf.mxu0
      %v3819 = vadd.f32 %v3731, %v3818
      %v3820 = vpop.f32.mrf.mxu0
      %v3821 = vpop.f32.mrf.mxu0
      %v3822 = vadd.f32 %v3734, %v3821
      %v3823 = vpop.f32.mrf.mxu0
      %3824 = vmatprep.mubr.bf16.mxu0 0
      %3825 = vmatmul.mubr.bf16.gmra.mxu0 %v3674
      %v3826 = vpop.f32.mrf.mxu0
      %v3827 = vadd.f32 %v3739, %v3826
      %v3828 = vpop.f32.mrf.mxu0
      %v3829 = vpop.f32.mrf.mxu0
      %v3830 = vadd.f32 %v3742, %v3829
      %v3831 = vpop.f32.mrf.mxu0
      %3832 = vmatprep.mubr.bf16.mxu0 0
      %3833 = vmatmul.mubr.bf16.gmra.mxu0 %v3677
      %v3834 = vpop.f32.mrf.mxu0
      %v3835 = vadd.f32 %v3747, %v3834
      %v3836 = vpop.f32.mrf.mxu0
      %v3837 = vpop.f32.mrf.mxu0
      %v3838 = vadd.f32 %v3750, %v3837
      %v3839 = vpop.f32.mrf.mxu0
      %3840 = vmatprep.mubr.bf16.mxu0 0
      %3841 = vmatmul.mubr.bf16.gmra.mxu0 %v3680
      %v3842 = vpop.f32.mrf.mxu0
      %v3843 = vadd.f32 %v3755, %v3842
      %v3844 = vpop.f32.mrf.mxu0
      %v3845 = vpop.f32.mrf.mxu0
      %v3846 = vadd.f32 %v3758, %v3845
      %v3847 = vpop.f32.mrf.mxu0
      %3848 = vmatprep.mubr.bf16.mxu0 0
      %3849 = vmatmul.mubr.bf16.gmra.mxu0 %v3683
      %v3850 = vpop.f32.mrf.mxu0
      %v3851 = vadd.f32 %v3763, %v3850
      %v3852 = vpop.f32.mrf.mxu0
      %v3853 = vpop.f32.mrf.mxu0
      %v3854 = vadd.f32 %v3766, %v3853
      %v3855 = vpop.f32.mrf.mxu0
      %3856 = vmatprep.mubr.bf16.mxu0 0
      %3857 = vmatmul.mubr.bf16.gmra.mxu0 %v3686
      %v3858 = vpop.f32.mrf.mxu0
      %v3859 = vadd.f32 %v3771, %v3858
      %v3860 = vpop.f32.mrf.mxu0
      %v3861 = vpop.f32.mrf.mxu0
      %v3862 = vpop.f32.mrf.mxu0
      %3863 = vdwg.mxu0
      %v3864 = vld [vmem:[%s6] sm:$0x1]
      %v3866 = vlaneseq
      %v3867 = vshrl.u32 %v3866, 7
      %v3868 = vsub.s32 0, %v3867
      %v3869 = vrot.slane %v3864, %v3868
      %v3871 = vmul.f32 %v3811, %v3869
      %v3872 = vmul.f32 %v3814, %v3869
      %v3873 = vmul.f32 %v3819, %v3869
      %v3874 = vmul.f32 %v3822, %v3869
      %v3875 = vmul.f32 %v3827, %v3869
      %v3876 = vmul.f32 %v3830, %v3869
      %v3877 = vmul.f32 %v3835, %v3869
      %v3878 = vmul.f32 %v3838, %v3869
      %v3879 = vmul.f32 %v3843, %v3869
      %v3880 = vmul.f32 %v3846, %v3869
      %v3881 = vmul.f32 %v3851, %v3869
      %v3882 = vmul.f32 %v3854, %v3869
      %v3883 = vmul.f32 %v3859, %v3869
      %v3884 = vld [vmem:[%s7] sm:$0x1]
      %v3886 = vlaneseq
      %v3887 = vshrl.u32 %v3886, 7
      %v3888 = vsub.s32 0, %v3887
      %v3889 = vrot.slane %v3884, %v3888
      %v3891 = vadd.f32 %v3871, %v3889
      %v3892 = vadd.f32 %v3872, %v3889
      %v3893 = vadd.f32 %v3873, %v3889
      %v3894 = vadd.f32 %v3874, %v3889
      %v3895 = vadd.f32 %v3875, %v3889
      %v3896 = vadd.f32 %v3876, %v3889
      %v3897 = vadd.f32 %v3877, %v3889
      %v3898 = vadd.f32 %v3878, %v3889
      %v3899 = vadd.f32 %v3879, %v3889
      %v3900 = vadd.f32 %v3880, %v3889
      %v3901 = vadd.f32 %v3881, %v3889
      %v3902 = vadd.f32 %v3882, %v3889
      %v3903 = vadd.f32 %v3883, %v3889
      %v3904 = vsub.f32 0.0, %v3891
      %v3905 = vsub.f32 0.0, %v3892
      %v3906 = vsub.f32 0.0, %v3893
      %v3907 = vsub.f32 0.0, %v3894
      %v3908 = vsub.f32 0.0, %v3895
      %v3909 = vsub.f32 0.0, %v3896
      %v3910 = vsub.f32 0.0, %v3897
      %v3911 = vsub.f32 0.0, %v3898
      %v3912 = vsub.f32 0.0, %v3899
      %v3913 = vsub.f32 0.0, %v3900
      %v3914 = vsub.f32 0.0, %v3901
      %v3915 = vsub.f32 0.0, %v3902
      %v3916 = vsub.f32 0.0, %v3903
      %v3917 = vmul.f32 %v3904, 1.442695
      %v3918 = vpow.pop %v3917
      %v3919 = vmul.f32 %v3905, 1.442695
      %v3920 = vpow.pop %v3919
      %v3921 = vmul.f32 %v3906, 1.442695
      %v3922 = vpow.pop %v3921
      %v3923 = vmul.f32 %v3907, 1.442695
      %v3924 = vpow.pop %v3923
      %v3925 = vmul.f32 %v3908, 1.442695
      %v3926 = vpow.pop %v3925
      %v3927 = vmul.f32 %v3909, 1.442695
      %v3928 = vpow.pop %v3927
      %v3929 = vmul.f32 %v3910, 1.442695
      %v3930 = vpow.pop %v3929
      %v3931 = vmul.f32 %v3911, 1.442695
      %v3932 = vpow.pop %v3931
      %v3933 = vmul.f32 %v3912, 1.442695
      %v3934 = vpow.pop %v3933
      %v3935 = vmul.f32 %v3913, 1.442695
      %v3936 = vpow.pop %v3935
      %v3937 = vmul.f32 %v3914, 1.442695
      %v3938 = vpow.pop %v3937
      %v3939 = vmul.f32 %v3915, 1.442695
      %v3940 = vpow.pop %v3939
      %v3941 = vmul.f32 %v3916, 1.442695
      %v3942 = vpow.pop %v3941
      %v3943 = vadd.f32 %v3918, 1.0
      %v3944 = vadd.f32 %v3920, 1.0
      %v3945 = vadd.f32 %v3922, 1.0
      %v3946 = vadd.f32 %v3924, 1.0
      %v3947 = vadd.f32 %v3926, 1.0
      %v3948 = vadd.f32 %v3928, 1.0
      %v3949 = vadd.f32 %v3930, 1.0
      %v3950 = vadd.f32 %v3932, 1.0
      %v3951 = vadd.f32 %v3934, 1.0
      %v3952 = vadd.f32 %v3936, 1.0
      %v3953 = vadd.f32 %v3938, 1.0
      %v3954 = vadd.f32 %v3940, 1.0
      %v3955 = vadd.f32 %v3942, 1.0
      %v3956 = vrcp.pop %v3943
      %v3957 = vrcp.pop %v3944
      %v3958 = vrcp.pop %v3945
      %v3959 = vrcp.pop %v3946
      %v3960 = vrcp.pop %v3947
      %v3961 = vrcp.pop %v3948
      %v3962 = vrcp.pop %v3949
      %v3963 = vrcp.pop %v3950
      %v3964 = vrcp.pop %v3951
      %v3965 = vrcp.pop %v3952
      %v3966 = vrcp.pop %v3953
      %v3967 = vrcp.pop %v3954
      %v3968 = vrcp.pop %v3955
      %v3969 = vmul.f32 %v3891, %v3956
      %v3970 = vmul.f32 %v3892, %v3957
      %v3971 = vmul.f32 %v3893, %v3958
      %v3972 = vmul.f32 %v3894, %v3959
      %v3973 = vmul.f32 %v3895, %v3960
      %v3974 = vmul.f32 %v3896, %v3961
      %v3975 = vmul.f32 %v3897, %v3962
      %v3976 = vmul.f32 %v3898, %v3963
      %v3977 = vmul.f32 %v3899, %v3964
      %v3978 = vmul.f32 %v3900, %v3965
      %v3979 = vmul.f32 %v3901, %v3966
      %v3980 = vmul.f32 %v3902, %v3967
      %v3981 = vmul.f32 %v3903, %v3968
      %v3982 = vsel %vm1592, %v3969, 0.0
      %v3983 = vsel %vm1593, %v3970, 0.0
      %v3984 = vsel %vm1594, %v3971, 0.0
      %v3985 = vsel %vm1595, %v3972, 0.0
      %v3986 = vsel %vm1596, %v3973, 0.0
      %v3987 = vsel %vm1597, %v3974, 0.0
      %v3988 = vsel %vm1598, %v3975, 0.0
      %v3989 = vsel %vm1599, %v3976, 0.0
      %v3990 = vsel %vm1600, %v3977, 0.0
      %v3991 = vsel %vm1601, %v3978, 0.0
      %v3992 = vsel %vm1602, %v3979, 0.0
      %v3993 = vsel %vm1603, %v3980, 0.0
      %v3994 = vsel %vm1604, %v3981, 0.0
      %v3995 = vpack.c.bf16 %v3983, %v3982
      %v3996 = vpack.c.bf16 %v3985, %v3984
      %v3997 = vpack.c.bf16 %v3987, %v3986
      %v3998 = vpack.c.bf16 %v3989, %v3988
      %v3999 = vpack.c.bf16 %v3991, %v3990
      %v4000 = vpack.c.bf16 %v3993, %v3992
      %v4001 = vpack.c.bf16 %v3994, %v3994
      %v4009 = vunpack.c.l.b16 %v3995
      %v4010 = vunpack.c.h.b16 %v3995
      %v4011 = vunpack.c.l.b16 %v3996
      %v4012 = vunpack.c.h.b16 %v3996
      %v4013 = vunpack.c.l.b16 %v3997
      %v4014 = vunpack.c.h.b16 %v3997
      %v4015 = vunpack.c.l.b16 %v3998
      %v4016 = vunpack.c.h.b16 %v3998
      %v4017 = vunpack.c.l.b16 %v3999
      %v4018 = vunpack.c.h.b16 %v3999
      %v4019 = vunpack.c.l.b16 %v4000
      %v4020 = vunpack.c.h.b16 %v4000
      %v4021 = vunpack.c.l.b16 %v4001
      %v4022 = vpack.c.b16 %v4009, %v4009
      %v4023 = vpack.c.b16 %v4010, %v4010
      %v4024 = vpack.c.b16 %v4011, %v4011
      %v4025 = vpack.c.b16 %v4012, %v4012
      %v4026 = vpack.c.b16 %v4013, %v4013
      %v4027 = vpack.c.b16 %v4014, %v4014
      %v4028 = vpack.c.b16 %v4015, %v4015
      %v4029 = vpack.c.b16 %v4016, %v4016
      %v4030 = vpack.c.b16 %v4017, %v4017
      %v4031 = vpack.c.b16 %v4018, %v4018
      %v4032 = vpack.c.b16 %v4019, %v4019
      %v4033 = vpack.c.b16 %v4020, %v4020
      %v4034 = vpack.c.b16 %v4021, %v4021
      %4048 = vst.msk [vmem:[#allocation3 + $0x8] sm:$0xf] %vm387, %v4022
      %4049 = vst.msk [vmem:[#allocation3 + $0xc] sm:$0xf] %vm387, %v4023
      %4050 = vst.msk [vmem:[#allocation3 + $0x10] sm:$0xf] %vm387, %v4024
      %4051 = vst.msk [vmem:[#allocation3 + $0x14] sm:$0xf] %vm387, %v4025
      %4052 = vst.msk [vmem:[#allocation3 + $0x18] sm:$0xf] %vm387, %v4026
      %4053 = vst.msk [vmem:[#allocation3 + $0x1c] sm:$0xf] %vm387, %v4027
      %4054 = vst.msk [vmem:[#allocation3 + $0x20] sm:$0xf] %vm387, %v4028
      %4055 = vst.msk [vmem:[#allocation3 + $0x24] sm:$0xf] %vm387, %v4029
      %4056 = vst.msk [vmem:[#allocation3 + $0x28] sm:$0xf] %vm387, %v4030
      %4057 = vst.msk [vmem:[#allocation3 + $0x2c] sm:$0xf] %vm387, %v4031
      %4058 = vst.msk [vmem:[#allocation3 + $0x30] sm:$0xf] %vm387, %v4032
      %4059 = vst.msk [vmem:[#allocation3 + $0x34] sm:$0xf] %vm387, %v4033
      %4060 = vst.msk [vmem:[#allocation3 + $0x38] sm:$0x3] %vm393, %v4034
      %s4061 = scalar_lea.vmem %s5, 144
      %v4062 = vld [vmem:[%s4061] sm:$0xf]
      %v4063 = vld [vmem:[%s4061 + $0x4] sm:$0xf]
      %v4064 = vld [vmem:[%s4061 + $0x8] sm:$0xf]
      %v4065 = vld [vmem:[%s4061 + $0xc] sm:$0xf]
      %v4066 = vld [vmem:[%s4061 + $0x10] sm:$0xf]
      %v4067 = vld [vmem:[%s4061 + $0x14] sm:$0xf]
      %v4068 = vld [vmem:[%s4061 + $0x18] sm:$0xf]
      %v4069 = vld [vmem:[%s4061 + $0x1c] sm:$0xf]
      %v4070 = vld [vmem:[%s4061 + $0x20] sm:$0xf]
      %v4071 = vld [vmem:[%s4061 + $0x24] sm:$0xf]
      %v4072 = vld [vmem:[%s4061 + $0x28] sm:$0xf]
      %v4073 = vld [vmem:[%s4061 + $0x2c] sm:$0xf]
      %v4074 = vld [vmem:[%s4061 + $0x30] sm:$0xf]
      %v4075 = vld [vmem:[%s4061 + $0x34] sm:$0xf]
      %v4076 = vld [vmem:[%s4061 + $0x38] sm:$0xf]
      %v4077 = vld [vmem:[%s4061 + $0x3c] sm:$0xf]
      %v4078 = vld [vmem:[%s4061 + $0x40] sm:$0xf]
      %v4079 = vld [vmem:[%s4061 + $0x44] sm:$0xf]
      %v4080 = vld [vmem:[%s4061 + $0x48] sm:$0xf]
      %v4081 = vld [vmem:[%s4061 + $0x4c] sm:$0xf]
      %v4082 = vld [vmem:[%s4061 + $0x50] sm:$0xf]
      %v4083 = vld [vmem:[%s4061 + $0x54] sm:$0xf]
      %v4084 = vld [vmem:[%s4061 + $0x58] sm:$0xf]
      %v4085 = vld [vmem:[%s4061 + $0x5c] sm:$0xf]
      %v4086 = vld [vmem:[%s4061 + $0x60] sm:$0xf]
      %v4087 = vld [vmem:[%s4061 + $0x64] sm:$0xf]
      %v4088 = vld [vmem:[%s4061 + $0x68] sm:$0xf]
      %v4089 = vld [vmem:[%s4061 + $0x6c] sm:$0xf]
      %v4090 = vld [vmem:[%s4061 + $0x70] sm:$0xf]
      %v4091 = vld [vmem:[%s4061 + $0x74] sm:$0xf]
      %v4092 = vld [vmem:[%s4061 + $0x78] sm:$0xf]
      %v4093 = vld [vmem:[%s4061 + $0x7c] sm:$0xf]
      %v4094 = vld [vmem:[%s4061 + $0x80] sm:$0xf]
      %v4095 = vld [vmem:[%s4061 + $0x84] sm:$0xf]
      %v4096 = vld [vmem:[%s4061 + $0x88] sm:$0xf]
      %v4097 = vld [vmem:[%s4061 + $0x8c] sm:$0xf]
      %v4098 = vld [vmem:[#allocation3] sm:$0xc]
      %v4099 = vld [vmem:[#allocation3 + $0x4] sm:$0xf]
      %v4100 = vld [vmem:[#allocation3 + $0x8] sm:$0xf]
      %v4101 = vld [vmem:[#allocation3 + $0xc] sm:$0xf]
      %v4102 = vld [vmem:[#allocation3 + $0x10] sm:$0xf]
      %v4103 = vld [vmem:[#allocation3 + $0x14] sm:$0xf]
      %v4104 = vld [vmem:[#allocation3 + $0x18] sm:$0xf]
      %v4105 = vld [vmem:[#allocation3 + $0x1c] sm:$0xf]
      %v4106 = vld [vmem:[#allocation3 + $0x20] sm:$0xf]
      %v4107 = vld [vmem:[#allocation3 + $0x24] sm:$0xf]
      %v4108 = vld [vmem:[#allocation3 + $0x28] sm:$0xf]
      %v4109 = vld [vmem:[#allocation3 + $0x2c] sm:$0xf]
      %v4110 = vld [vmem:[#allocation3 + $0x30] sm:$0xf]
      %v4111 = vld [vmem:[#allocation3 + $0x34] sm:$0x1]
      %v4112 = vld [vmem:[#allocation3] sm:$0x8]
      %v4113 = vld [vmem:[#allocation3 + $0x34] sm:$0x3]
      %v4114 = vld [vmem:[#allocation3 + $0x4] sm:$0x8]
      %v4115 = vld [vmem:[#allocation3 + $0x34] sm:$0xf]
      %v4116 = vld [vmem:[#allocation3 + $0x38] sm:$0x3]
      %v4117 = vld [vmem:[#allocation3 + $0x38] sm:$0x7]
      %v4118 = vld [vmem:[#allocation3 + $0x38] sm:$0xf]
      %v4119 = vld [vmem:[#allocation3 + $0x3c] sm:$0x7]
      %v4120 = vld [vmem:[#allocation3 + $0xc] sm:$0xe]
      %v4121 = vld [vmem:[#allocation3 + $0x3c] sm:$0xf]
      %v4136 = vunpack.c.l.b16 %v4098
      %v4137 = vunpack.c.l.b16 %v4099
      %v4138 = vunpack.c.l.b16 %v4100
      %v4139 = vunpack.c.l.b16 %v4101
      %v4140 = vunpack.c.l.b16 %v4102
      %v4141 = vunpack.c.l.b16 %v4103
      %v4142 = vunpack.c.l.b16 %v4104
      %v4143 = vunpack.c.l.b16 %v4105
      %v4144 = vunpack.c.l.b16 %v4106
      %v4145 = vunpack.c.l.b16 %v4107
      %v4146 = vunpack.c.l.b16 %v4108
      %v4147 = vunpack.c.l.b16 %v4109
      %v4148 = vunpack.c.l.b16 %v4110
      %v4149 = vunpack.c.l.b16 %v4111
      %v4150 = vpack.c.b16 %v4137, %v4136
      %v4151 = vpack.c.b16 %v4139, %v4138
      %v4152 = vpack.c.b16 %v4141, %v4140
      %v4153 = vpack.c.b16 %v4143, %v4142
      %v4154 = vpack.c.b16 %v4145, %v4144
      %v4155 = vpack.c.b16 %v4147, %v4146
      %v4156 = vpack.c.b16 %v4149, %v4148
      %v4158 = vunpack.c.l.b16 %v4112
      %v4159 = vpack.c.b16 %v4137, %v4158
      %v4161 = vshrl.u32 %v4159, 16
      %v4163 = vshll.u32 %v4159, 16
      %v4165 = vrot.slane %v4163, 1
      %v4166 = vor.u32 %v4161, %v4165
      %v4168 = vshll.u32 %v4151, 16
      %v4170 = vrot.slane %v4168, 1
      %v4171 = vsel %vm493, %v4166, %v4170
      %v4172 = vshrl.u32 %v4151, 16
      %v4174 = vor.u32 %v4172, %v4170
      %v4176 = vshll.u32 %v4152, 16
      %v4178 = vrot.slane %v4176, 1
      %v4179 = vsel %vm493, %v4174, %v4178
      %v4180 = vshrl.u32 %v4152, 16
      %v4182 = vor.u32 %v4180, %v4178
      %v4184 = vshll.u32 %v4153, 16
      %v4186 = vrot.slane %v4184, 1
      %v4187 = vsel %vm493, %v4182, %v4186
      %v4188 = vshrl.u32 %v4153, 16
      %v4190 = vor.u32 %v4188, %v4186
      %v4192 = vshll.u32 %v4154, 16
      %v4194 = vrot.slane %v4192, 1
      %v4195 = vsel %vm493, %v4190, %v4194
      %v4196 = vshrl.u32 %v4154, 16
      %v4198 = vor.u32 %v4196, %v4194
      %v4200 = vshll.u32 %v4155, 16
      %v4202 = vrot.slane %v4200, 1
      %v4203 = vsel %vm493, %v4198, %v4202
      %v4204 = vshrl.u32 %v4155, 16
      %v4206 = vor.u32 %v4204, %v4202
      %v4208 = vshll.u32 %v4156, 16
      %v4210 = vrot.slane %v4208, 1
      %v4211 = vsel %vm493, %v4206, %v4210
      %v4212 = vshrl.u32 %v4156, 16
      %v4214 = vor.u32 %v4212, %v4210
      %4215 = vrot.lane.b32.xlu0 %v4171, 32
      %v4216 = vpop.permute.xlu0 %4215
      %4217 = vrot.lane.b32.xlu0 %v4179, 32
      %v4218 = vpop.permute.xlu0 %4217
      %4219 = vrot.lane.b32.xlu0 %v4187, 32
      %v4220 = vpop.permute.xlu0 %4219
      %4221 = vrot.lane.b32.xlu0 %v4195, 32
      %v4222 = vpop.permute.xlu0 %4221
      %4223 = vrot.lane.b32.xlu0 %v4203, 32
      %v4224 = vpop.permute.xlu0 %4223
      %4225 = vrot.lane.b32.xlu0 %v4211, 32
      %v4226 = vpop.permute.xlu0 %4225
      %4227 = vrot.lane.b32.xlu0 %v4214, 32
      %v4228 = vpop.permute.xlu0 %4227
      %v4230 = vunpack.c.l.b16 %v4113
      %v4231 = vpack.c.b16 %v4230, %v4148
      %v4232 = vrot.slane %v4159, 1
      %v4233 = vrot.slane %v4151, 1
      %v4234 = vsel %vm566, %v4232, %v4233
      %v4235 = vrot.slane %v4152, 1
      %v4236 = vsel %vm566, %v4233, %v4235
      %v4237 = vrot.slane %v4153, 1
      %v4238 = vsel %vm566, %v4235, %v4237
      %v4239 = vrot.slane %v4154, 1
      %v4240 = vsel %vm566, %v4237, %v4239
      %v4241 = vrot.slane %v4155, 1
      %v4242 = vsel %vm566, %v4239, %v4241
      %v4243 = vrot.slane %v4231, 1
      %v4244 = vsel %vm566, %v4241, %v4243
      %4245 = vrot.lane.b32.xlu0 %v4234, 64
      %v4246 = vpop.permute.xlu0 %4245
      %4247 = vrot.lane.b32.xlu0 %v4236, 64
      %v4248 = vpop.permute.xlu0 %4247
      %4249 = vrot.lane.b32.xlu0 %v4238, 64
      %v4250 = vpop.permute.xlu0 %4249
      %4251 = vrot.lane.b32.xlu0 %v4240, 64
      %v4252 = vpop.permute.xlu0 %4251
      %4253 = vrot.lane.b32.xlu0 %v4242, 64
      %v4254 = vpop.permute.xlu0 %4253
      %4255 = vrot.lane.b32.xlu0 %v4244, 64
      %v4256 = vpop.permute.xlu0 %4255
      %4257 = vrot.lane.b32.xlu0 %v4243, 64
      %v4258 = vpop.permute.xlu0 %4257
      %v4262 = vunpack.c.l.b16 %v4114
      %v4263 = vunpack.c.l.b16 %v4115
      %v4264 = vunpack.c.l.b16 %v4116
      %v4265 = vpack.c.b16 %v4138, %v4262
      %v4266 = vpack.c.b16 %v4140, %v4139
      %v4267 = vpack.c.b16 %v4142, %v4141
      %v4268 = vpack.c.b16 %v4144, %v4143
      %v4269 = vpack.c.b16 %v4146, %v4145
      %v4270 = vpack.c.b16 %v4148, %v4147
      %v4271 = vpack.c.b16 %v4264, %v4263
      %v4272 = vrot.slane %v4265, 1
      %v4273 = vrot.slane %v4266, 1
      %v4274 = vsel %vm566, %v4272, %v4273
      %v4275 = vrot.slane %v4267, 1
      %v4276 = vsel %vm566, %v4273, %v4275
      %v4277 = vrot.slane %v4268, 1
      %v4278 = vsel %vm566, %v4275, %v4277
      %v4279 = vrot.slane %v4269, 1
      %v4280 = vsel %vm566, %v4277, %v4279
      %v4281 = vrot.slane %v4270, 1
      %v4282 = vsel %vm566, %v4279, %v4281
      %v4283 = vrot.slane %v4271, 1
      %v4284 = vsel %vm566, %v4281, %v4283
      %4285 = vrot.lane.b32.xlu0 %v4274, 96
      %v4286 = vpop.permute.xlu0 %4285
      %4287 = vrot.lane.b32.xlu0 %v4276, 96
      %v4288 = vpop.permute.xlu0 %4287
      %4289 = vrot.lane.b32.xlu0 %v4278, 96
      %v4290 = vpop.permute.xlu0 %4289
      %4291 = vrot.lane.b32.xlu0 %v4280, 96
      %v4292 = vpop.permute.xlu0 %4291
      %4293 = vrot.lane.b32.xlu0 %v4282, 96
      %v4294 = vpop.permute.xlu0 %4293
      %4295 = vrot.lane.b32.xlu0 %v4284, 96
      %v4296 = vpop.permute.xlu0 %4295
      %4297 = vrot.lane.b32.xlu0 %v4283, 96
      %v4298 = vpop.permute.xlu0 %4297
      %v4299 = vpack.c.b16 %v4263, %v4148
      %v4300 = vpack.c.b16 %v4264, %v4264
      %v4301 = vrot.slane %v4172, 5
      %v4302 = vrot.slane %v4168, 6
      %v4303 = vor.u32 %v4301, %v4302
      %v4304 = vrot.slane %v4180, 5
      %v4305 = vrot.slane %v4176, 6
      %v4306 = vor.u32 %v4304, %v4305
      %v4307 = vsel %vm636, %v4303, %v4306
      %v4308 = vrot.slane %v4188, 5
      %v4309 = vrot.slane %v4184, 6
      %v4310 = vor.u32 %v4308, %v4309
      %v4311 = vsel %vm636, %v4306, %v4310
      %v4312 = vrot.slane %v4196, 5
      %v4313 = vrot.slane %v4192, 6
      %v4314 = vor.u32 %v4312, %v4313
      %v4315 = vsel %vm636, %v4310, %v4314
      %v4316 = vrot.slane %v4204, 5
      %v4317 = vrot.slane %v4200, 6
      %v4318 = vor.u32 %v4316, %v4317
      %v4319 = vsel %vm636, %v4314, %v4318
      %v4321 = vshrl.u32 %v4299, 16
      %v4323 = vrot.slane %v4321, 5
      %v4324 = vshll.u32 %v4299, 16
      %v4326 = vrot.slane %v4324, 6
      %v4327 = vor.u32 %v4323, %v4326
      %v4328 = vsel %vm636, %v4318, %v4327
      %v4330 = vshrl.u32 %v4300, 16
      %v4332 = vrot.slane %v4330, 5
      %v4333 = vshll.u32 %v4300, 16
      %v4335 = vrot.slane %v4333, 6
      %v4336 = vor.u32 %v4332, %v4335
      %v4337 = vsel %vm636, %v4327, %v4336
      %v4339 = vunpack.c.l.b16 %v4117
      %v4340 = vpack.c.b16 %v4339, %v4339
      %v4341 = vrot.slane %v4151, 6
      %v4342 = vrot.slane %v4152, 6
      %v4343 = vsel %vm677, %v4341, %v4342
      %v4344 = vrot.slane %v4153, 6
      %v4345 = vsel %vm677, %v4342, %v4344
      %v4346 = vrot.slane %v4154, 6
      %v4347 = vsel %vm677, %v4344, %v4346
      %v4348 = vrot.slane %v4155, 6
      %v4349 = vsel %vm677, %v4346, %v4348
      %v4350 = vrot.slane %v4299, 6
      %v4351 = vsel %vm677, %v4348, %v4350
      %v4352 = vrot.slane %v4340, 6
      %v4353 = vsel %vm677, %v4350, %v4352
      %4354 = vrot.lane.b32.xlu0 %v4341, 32
      %v4355 = vpop.permute.xlu0 %4354
      %4356 = vrot.lane.b32.xlu0 %v4343, 32
      %v4357 = vpop.permute.xlu0 %4356
      %4358 = vrot.lane.b32.xlu0 %v4345, 32
      %v4359 = vpop.permute.xlu0 %4358
      %4360 = vrot.lane.b32.xlu0 %v4347, 32
      %v4361 = vpop.permute.xlu0 %4360
      %4362 = vrot.lane.b32.xlu0 %v4349, 32
      %v4363 = vpop.permute.xlu0 %4362
      %4364 = vrot.lane.b32.xlu0 %v4351, 32
      %v4365 = vpop.permute.xlu0 %4364
      %4366 = vrot.lane.b32.xlu0 %v4353, 32
      %v4367 = vpop.permute.xlu0 %4366
      %v4370 = vunpack.c.l.b16 %v4118
      %v4371 = vunpack.c.l.b16 %v4119
      %v4372 = vpack.c.b16 %v4370, %v4263
      %v4373 = vpack.c.b16 %v4371, %v4371
      %v4374 = vrot.slane %v4266, 6
      %v4375 = vrot.slane %v4267, 6
      %v4376 = vsel %vm677, %v4374, %v4375
      %v4377 = vrot.slane %v4268, 6
      %v4378 = vsel %vm677, %v4375, %v4377
      %v4379 = vrot.slane %v4269, 6
      %v4380 = vsel %vm677, %v4377, %v4379
      %v4381 = vrot.slane %v4270, 6
      %v4382 = vsel %vm677, %v4379, %v4381
      %v4383 = vrot.slane %v4372, 6
      %v4384 = vsel %vm677, %v4381, %v4383
      %v4385 = vrot.slane %v4373, 6
      %v4386 = vsel %vm677, %v4383, %v4385
      %4387 = vrot.lane.b32.xlu0 %v4374, 64
      %v4388 = vpop.permute.xlu0 %4387
      %4389 = vrot.lane.b32.xlu0 %v4376, 64
      %v4390 = vpop.permute.xlu0 %4389
      %4391 = vrot.lane.b32.xlu0 %v4378, 64
      %v4392 = vpop.permute.xlu0 %4391
      %4393 = vrot.lane.b32.xlu0 %v4380, 64
      %v4394 = vpop.permute.xlu0 %4393
      %4395 = vrot.lane.b32.xlu0 %v4382, 64
      %v4396 = vpop.permute.xlu0 %4395
      %4397 = vrot.lane.b32.xlu0 %v4384, 64
      %v4398 = vpop.permute.xlu0 %4397
      %4399 = vrot.lane.b32.xlu0 %v4386, 64
      %v4400 = vpop.permute.xlu0 %4399
      %v4402 = vunpack.c.l.b16 %v4120
      %v4403 = vpack.c.b16 %v4140, %v4402
      %v4405 = vshrl.u32 %v4403, 16
      %v4407 = vrot.slane %v4405, 6
      %v4408 = vshll.u32 %v4403, 16
      %v4410 = vrot.slane %v4408, 7
      %v4411 = vor.u32 %v4407, %v4410
      %v4413 = vshrl.u32 %v4267, 16
      %v4415 = vrot.slane %v4413, 6
      %v4416 = vshll.u32 %v4267, 16
      %v4418 = vrot.slane %v4416, 7
      %v4419 = vor.u32 %v4415, %v4418
      %v4420 = vsel %vm741, %v4411, %v4419
      %v4422 = vshrl.u32 %v4268, 16
      %v4424 = vrot.slane %v4422, 6
      %v4425 = vshll.u32 %v4268, 16
      %v4427 = vrot.slane %v4425, 7
      %v4428 = vor.u32 %v4424, %v4427
      %v4429 = vsel %vm741, %v4419, %v4428
      %v4431 = vshrl.u32 %v4269, 16
      %v4433 = vrot.slane %v4431, 6
      %v4434 = vshll.u32 %v4269, 16
      %v4436 = vrot.slane %v4434, 7
      %v4437 = vor.u32 %v4433, %v4436
      %v4438 = vsel %vm741, %v4428, %v4437
      %v4440 = vshrl.u32 %v4270, 16
      %v4442 = vrot.slane %v4440, 6
      %v4443 = vshll.u32 %v4270, 16
      %v4445 = vrot.slane %v4443, 7
      %v4446 = vor.u32 %v4442, %v4445
      %v4447 = vsel %vm741, %v4437, %v4446
      %v4449 = vshrl.u32 %v4372, 16
      %v4451 = vrot.slane %v4449, 6
      %v4452 = vshll.u32 %v4372, 16
      %v4454 = vrot.slane %v4452, 7
      %v4455 = vor.u32 %v4451, %v4454
      %v4456 = vsel %vm741, %v4446, %v4455
      %v4458 = vshrl.u32 %v4373, 16
      %v4460 = vrot.slane %v4458, 6
      %v4461 = vshll.u32 %v4373, 16
      %v4463 = vrot.slane %v4461, 7
      %v4464 = vor.u32 %v4460, %v4463
      %v4465 = vsel %vm741, %v4455, %v4464
      %4466 = vrot.lane.b32.xlu0 %v4411, 96
      %v4467 = vpop.permute.xlu0 %4466
      %4468 = vrot.lane.b32.xlu0 %v4420, 96
      %v4469 = vpop.permute.xlu0 %4468
      %4470 = vrot.lane.b32.xlu0 %v4429, 96
      %v4471 = vpop.permute.xlu0 %4470
      %4472 = vrot.lane.b32.xlu0 %v4438, 96
      %v4473 = vpop.permute.xlu0 %4472
      %4474 = vrot.lane.b32.xlu0 %v4447, 96
      %v4475 = vpop.permute.xlu0 %4474
      %4476 = vrot.lane.b32.xlu0 %v4456, 96
      %v4477 = vpop.permute.xlu0 %4476
      %4478 = vrot.lane.b32.xlu0 %v4465, 96
      %v4479 = vpop.permute.xlu0 %4478
      %v4481 = vunpack.c.l.b16 %v4121
      %v4482 = vpack.c.b16 %v4481, %v4481
      %v4483 = vrot.slane %v4403, 7
      %v4484 = vrot.slane %v4267, 7
      %v4485 = vsel %vm821, %v4483, %v4484
      %v4486 = vrot.slane %v4268, 7
      %v4487 = vsel %vm821, %v4484, %v4486
      %v4488 = vrot.slane %v4269, 7
      %v4489 = vsel %vm821, %v4486, %v4488
      %v4490 = vrot.slane %v4270, 7
      %v4491 = vsel %vm821, %v4488, %v4490
      %v4492 = vrot.slane %v4372, 7
      %v4493 = vsel %vm821, %v4490, %v4492
      %v4494 = vrot.slane %v4482, 7
      %v4495 = vsel %vm821, %v4492, %v4494
      %v4498 = vsel %vm835, %v4150, %v4216
      %v4500 = vsel %vm835, %v4151, %v4218
      %v4502 = vsel %vm835, %v4152, %v4220
      %v4504 = vsel %vm835, %v4153, %v4222
      %v4506 = vsel %vm835, %v4154, %v4224
      %v4508 = vsel %vm835, %v4155, %v4226
      %v4510 = vsel %vm835, %v4156, %v4228
      %v4512 = vsel %vm851, %v4498, %v4246
      %v4514 = vsel %vm851, %v4500, %v4248
      %v4516 = vsel %vm851, %v4502, %v4250
      %v4518 = vsel %vm851, %v4504, %v4252
      %v4520 = vsel %vm851, %v4506, %v4254
      %v4522 = vsel %vm851, %v4508, %v4256
      %v4524 = vsel %vm851, %v4510, %v4258
      %v4526 = vsel %vm866, %v4512, %v4286
      %v4528 = vsel %vm866, %v4514, %v4288
      %v4530 = vsel %vm866, %v4516, %v4290
      %v4532 = vsel %vm866, %v4518, %v4292
      %v4534 = vsel %vm866, %v4520, %v4294
      %v4536 = vsel %vm866, %v4522, %v4296
      %v4538 = vsel %vm866, %v4524, %v4298
      %v4541 = vsel %vm835, %v4303, %v4355
      %v4544 = vsel %vm835, %v4307, %v4357
      %v4547 = vsel %vm835, %v4311, %v4359
      %v4550 = vsel %vm835, %v4315, %v4361
      %v4553 = vsel %vm835, %v4319, %v4363
      %v4556 = vsel %vm835, %v4328, %v4365
      %v4559 = vsel %vm835, %v4337, %v4367
      %v4561 = vsel %vm851, %v4541, %v4388
      %v4563 = vsel %vm851, %v4544, %v4390
      %v4565 = vsel %vm851, %v4547, %v4392
      %v4567 = vsel %vm851, %v4550, %v4394
      %v4569 = vsel %vm851, %v4553, %v4396
      %v4571 = vsel %vm851, %v4556, %v4398
      %v4573 = vsel %vm851, %v4559, %v4400
      %v4575 = vsel %vm866, %v4561, %v4467
      %v4577 = vsel %vm866, %v4563, %v4469
      %v4579 = vsel %vm866, %v4565, %v4471
      %v4581 = vsel %vm866, %v4567, %v4473
      %v4583 = vsel %vm866, %v4569, %v4475
      %v4585 = vsel %vm866, %v4571, %v4477
      %v4587 = vsel %vm866, %v4573, %v4479
      %v4588 = vshrl.u32 %v4526, 16
      %v4590 = vrot.slane %v4588, 2
      %v4591 = vshll.u32 %v4526, 16
      %v4593 = vrot.slane %v4591, 3
      %v4594 = vor.u32 %v4590, %v4593
      %v4595 = vshrl.u32 %v4528, 16
      %v4597 = vrot.slane %v4595, 2
      %v4598 = vshll.u32 %v4528, 16
      %v4600 = vrot.slane %v4598, 3
      %v4601 = vor.u32 %v4597, %v4600
      %v4602 = vsel %vm930, %v4594, %v4601
      %v4603 = vshrl.u32 %v4575, 16
      %v4605 = vrot.slane %v4603, 2
      %v4606 = vshll.u32 %v4575, 16
      %v4608 = vrot.slane %v4606, 3
      %v4609 = vor.u32 %v4605, %v4608
      %v4610 = vshrl.u32 %v4577, 16
      %v4612 = vrot.slane %v4610, 2
      %v4613 = vshll.u32 %v4577, 16
      %v4615 = vrot.slane %v4613, 3
      %v4616 = vor.u32 %v4612, %v4615
      %v4617 = vsel %vm930, %v4609, %v4616
      %v4619 = vshrl.u32 %v4483, 16
      %v4621 = vrot.slane %v4619, 2
      %v4622 = vshll.u32 %v4483, 16
      %v4624 = vrot.slane %v4622, 3
      %v4625 = vor.u32 %v4621, %v4624
      %v4627 = vshrl.u32 %v4485, 16
      %v4629 = vrot.slane %v4627, 2
      %v4630 = vshll.u32 %v4485, 16
      %v4632 = vrot.slane %v4630, 3
      %v4633 = vor.u32 %v4629, %v4632
      %v4634 = vsel %vm930, %v4625, %v4633
      %v4635 = vshrl.u32 %v4530, 16
      %v4637 = vrot.slane %v4635, 2
      %v4638 = vshll.u32 %v4530, 16
      %v4640 = vrot.slane %v4638, 3
      %v4641 = vor.u32 %v4637, %v4640
      %v4642 = vsel %vm930, %v4601, %v4641
      %v4643 = vshrl.u32 %v4579, 16
      %v4645 = vrot.slane %v4643, 2
      %v4646 = vshll.u32 %v4579, 16
      %v4648 = vrot.slane %v4646, 3
      %v4649 = vor.u32 %v4645, %v4648
      %v4650 = vsel %vm930, %v4616, %v4649
      %v4652 = vshrl.u32 %v4487, 16
      %v4654 = vrot.slane %v4652, 2
      %v4655 = vshll.u32 %v4487, 16
      %v4657 = vrot.slane %v4655, 3
      %v4658 = vor.u32 %v4654, %v4657
      %v4659 = vsel %vm930, %v4633, %v4658
      %v4660 = vshrl.u32 %v4532, 16
      %v4662 = vrot.slane %v4660, 2
      %v4663 = vshll.u32 %v4532, 16
      %v4665 = vrot.slane %v4663, 3
      %v4666 = vor.u32 %v4662, %v4665
      %v4667 = vsel %vm930, %v4641, %v4666
      %v4668 = vshrl.u32 %v4581, 16
      %v4670 = vrot.slane %v4668, 2
      %v4671 = vshll.u32 %v4581, 16
      %v4673 = vrot.slane %v4671, 3
      %v4674 = vor.u32 %v4670, %v4673
      %v4675 = vsel %vm930, %v4649, %v4674
      %v4677 = vshrl.u32 %v4489, 16
      %v4679 = vrot.slane %v4677, 2
      %v4680 = vshll.u32 %v4489, 16
      %v4682 = vrot.slane %v4680, 3
      %v4683 = vor.u32 %v4679, %v4682
      %v4684 = vsel %vm930, %v4658, %v4683
      %v4685 = vshrl.u32 %v4534, 16
      %v4687 = vrot.slane %v4685, 2
      %v4688 = vshll.u32 %v4534, 16
      %v4690 = vrot.slane %v4688, 3
      %v4691 = vor.u32 %v4687, %v4690
      %v4692 = vsel %vm930, %v4666, %v4691
      %v4693 = vshrl.u32 %v4583, 16
      %v4695 = vrot.slane %v4693, 2
      %v4696 = vshll.u32 %v4583, 16
      %v4698 = vrot.slane %v4696, 3
      %v4699 = vor.u32 %v4695, %v4698
      %v4700 = vsel %vm930, %v4674, %v4699
      %v4702 = vshrl.u32 %v4491, 16
      %v4704 = vrot.slane %v4702, 2
      %v4705 = vshll.u32 %v4491, 16
      %v4707 = vrot.slane %v4705, 3
      %v4708 = vor.u32 %v4704, %v4707
      %v4709 = vsel %vm930, %v4683, %v4708
      %v4710 = vshrl.u32 %v4536, 16
      %v4712 = vrot.slane %v4710, 2
      %v4713 = vshll.u32 %v4536, 16
      %v4715 = vrot.slane %v4713, 3
      %v4716 = vor.u32 %v4712, %v4715
      %v4717 = vsel %vm930, %v4691, %v4716
      %v4718 = vshrl.u32 %v4585, 16
      %v4720 = vrot.slane %v4718, 2
      %v4721 = vshll.u32 %v4585, 16
      %v4723 = vrot.slane %v4721, 3
      %v4724 = vor.u32 %v4720, %v4723
      %v4725 = vsel %vm930, %v4699, %v4724
      %v4727 = vshrl.u32 %v4493, 16
      %v4729 = vrot.slane %v4727, 2
      %v4730 = vshll.u32 %v4493, 16
      %v4732 = vrot.slane %v4730, 3
      %v4733 = vor.u32 %v4729, %v4732
      %v4734 = vsel %vm930, %v4708, %v4733
      %v4735 = vshrl.u32 %v4538, 16
      %v4737 = vrot.slane %v4735, 2
      %v4738 = vshll.u32 %v4538, 16
      %v4740 = vrot.slane %v4738, 3
      %v4741 = vor.u32 %v4737, %v4740
      %v4742 = vsel %vm930, %v4716, %v4741
      %v4743 = vshrl.u32 %v4587, 16
      %v4745 = vrot.slane %v4743, 2
      %v4746 = vshll.u32 %v4587, 16
      %v4748 = vrot.slane %v4746, 3
      %v4749 = vor.u32 %v4745, %v4748
      %v4750 = vsel %vm930, %v4724, %v4749
      %v4752 = vshrl.u32 %v4495, 16
      %v4754 = vrot.slane %v4752, 2
      %v4755 = vshll.u32 %v4495, 16
      %v4757 = vrot.slane %v4755, 3
      %v4758 = vor.u32 %v4754, %v4757
      %v4759 = vsel %vm930, %v4733, %v4758
      %v4810 = vunpack.c.l.b16 %v4062
      %v4811 = vunpack.c.l.b16 %v4063
      %v4812 = vunpack.c.l.b16 %v4064
      %v4813 = vunpack.c.l.b16 %v4065
      %v4814 = vunpack.c.l.b16 %v4066
      %v4815 = vunpack.c.l.b16 %v4067
      %v4816 = vunpack.c.l.b16 %v4068
      %v4817 = vunpack.c.l.b16 %v4069
      %v4818 = vunpack.c.l.b16 %v4070
      %v4819 = vunpack.c.l.b16 %v4071
      %v4820 = vunpack.c.l.b16 %v4072
      %v4821 = vunpack.c.l.b16 %v4073
      %v4822 = vunpack.c.l.b16 %v4074
      %v4823 = vunpack.c.l.b16 %v4075
      %v4824 = vunpack.c.l.b16 %v4076
      %v4825 = vunpack.c.l.b16 %v4077
      %v4826 = vunpack.c.l.b16 %v4078
      %v4827 = vunpack.c.l.b16 %v4079
      %v4828 = vunpack.c.l.b16 %v4080
      %v4829 = vunpack.c.l.b16 %v4081
      %v4830 = vunpack.c.l.b16 %v4082
      %v4831 = vunpack.c.l.b16 %v4083
      %v4832 = vunpack.c.l.b16 %v4084
      %v4833 = vunpack.c.l.b16 %v4085
      %v4834 = vunpack.c.l.b16 %v4086
      %v4835 = vunpack.c.l.b16 %v4087
      %v4836 = vunpack.c.l.b16 %v4088
      %v4837 = vunpack.c.l.b16 %v4089
      %v4838 = vunpack.c.l.b16 %v4090
      %v4839 = vunpack.c.l.b16 %v4091
      %v4840 = vunpack.c.l.b16 %v4092
      %v4841 = vunpack.c.l.b16 %v4093
      %v4842 = vunpack.c.l.b16 %v4094
      %v4843 = vunpack.c.l.b16 %v4095
      %v4844 = vunpack.c.l.b16 %v4096
      %v4845 = vunpack.c.l.b16 %v4097
      %v4846 = vpack.c.b16 %v4811, %v4810
      %v4847 = vpack.c.b16 %v4813, %v4812
      %v4848 = vpack.c.b16 %v4815, %v4814
      %v4849 = vpack.c.b16 %v4817, %v4816
      %v4850 = vpack.c.b16 %v4819, %v4818
      %v4851 = vpack.c.b16 %v4821, %v4820
      %v4852 = vpack.c.b16 %v4823, %v4822
      %v4853 = vpack.c.b16 %v4825, %v4824
      %v4854 = vpack.c.b16 %v4827, %v4826
      %v4855 = vpack.c.b16 %v4829, %v4828
      %v4856 = vpack.c.b16 %v4831, %v4830
      %v4857 = vpack.c.b16 %v4833, %v4832
      %v4858 = vpack.c.b16 %v4835, %v4834
      %v4859 = vpack.c.b16 %v4837, %v4836
      %v4860 = vpack.c.b16 %v4839, %v4838
      %v4861 = vpack.c.b16 %v4841, %v4840
      %v4862 = vpack.c.b16 %v4843, %v4842
      %v4863 = vpack.c.b16 %v4845, %v4844
      %v4883 = vsel %vm835, %v4634, 0
      %v4886 = vsel %vm835, %v4659, 0
      %v4889 = vsel %vm835, %v4684, 0
      %v4892 = vsel %vm835, %v4709, 0
      %v4895 = vsel %vm835, %v4734, 0
      %v4898 = vsel %vm835, %v4759, 0
      %v4901 = vsel %vm835, %v4758, 0
      %4903 = vmatprep.subr.bf16.mxu0 0
      %4904 = vmatpush1.bf16.msra.mxu0 %v4853
      %4905 = vmatprep.subr.bf16.mxu0 0
      %4906 = vmatpush1.bf16.msra.mxu0 %v4852
      %4907 = vmatprep.subr.bf16.mxu0 0
      %4908 = vmatpush1.bf16.msra.mxu0 %v4851
      %4909 = vmatprep.subr.bf16.mxu0 0
      %4910 = vmatpush1.bf16.msra.mxu0 %v4850
      %4911 = vmatprep.subr.bf16.mxu0 0
      %4912 = vmatpush1.bf16.msra.mxu0 %v4849
      %4913 = vmatprep.subr.bf16.mxu0 0
      %4914 = vmatpush1.bf16.msra.mxu0 %v4848
      %4915 = vmatprep.subr.bf16.mxu0 0
      %4916 = vmatpush1.bf16.msra.mxu0 %v4847
      %4917 = vmatprep.subr.bf16.mxu0 0
      %4918 = vmatpush1.bf16.msra.mxu0 %v4846
      %4919 = vmatprep.subr.bf16.mxu0 0
      %4920 = vmatpush2.bf16.msra.mxu0 %v4861
      %4921 = vmatprep.subr.bf16.mxu0 0
      %4922 = vmatpush2.bf16.msra.mxu0 %v4860
      %4923 = vmatprep.subr.bf16.mxu0 0
      %4924 = vmatpush2.bf16.msra.mxu0 %v4859
      %4925 = vmatprep.subr.bf16.mxu0 0
      %4926 = vmatpush2.bf16.msra.mxu0 %v4858
      %4927 = vmatprep.subr.bf16.mxu0 0
      %4928 = vmatpush2.bf16.msra.mxu0 %v4857
      %4929 = vmatprep.subr.bf16.mxu0 0
      %4930 = vmatpush2.bf16.msra.mxu0 %v4856
      %4931 = vmatprep.subr.bf16.mxu0 0
      %4932 = vmatpush2.bf16.msra.mxu0 %v4855
      %4933 = vmatprep.subr.bf16.mxu0 0
      %4934 = vmatpush2.bf16.msra.mxu0 %v4854
      %4935 = vmatprep.mubr.bf16.mxu0 %v4617
      %4936 = vmatmul.mubr.bf16.gmra.mxu0 %v4602
      %v4937 = vpop.f32.mrf.mxu0
      %v4938 = vadd.f32 0.0, %v4937
      %v4939 = vpop.f32.mrf.mxu0
      %v4940 = vpop.f32.mrf.mxu0
      %v4941 = vadd.f32 0.0, %v4940
      %v4942 = vpop.f32.mrf.mxu0
      %4943 = vmatprep.mubr.bf16.mxu0 %v4650
      %4944 = vmatmul.mubr.bf16.gmra.mxu0 %v4642
      %v4945 = vpop.f32.mrf.mxu0
      %v4946 = vadd.f32 0.0, %v4945
      %v4947 = vpop.f32.mrf.mxu0
      %v4948 = vpop.f32.mrf.mxu0
      %v4949 = vadd.f32 0.0, %v4948
      %v4950 = vpop.f32.mrf.mxu0
      %4951 = vmatprep.mubr.bf16.mxu0 %v4675
      %4952 = vmatmul.mubr.bf16.gmra.mxu0 %v4667
      %v4953 = vpop.f32.mrf.mxu0
      %v4954 = vadd.f32 0.0, %v4953
      %v4955 = vpop.f32.mrf.mxu0
      %v4956 = vpop.f32.mrf.mxu0
      %v4957 = vadd.f32 0.0, %v4956
      %v4958 = vpop.f32.mrf.mxu0
      %4959 = vmatprep.mubr.bf16.mxu0 %v4700
      %4960 = vmatmul.mubr.bf16.gmra.mxu0 %v4692
      %v4961 = vpop.f32.mrf.mxu0
      %v4962 = vadd.f32 0.0, %v4961
      %v4963 = vpop.f32.mrf.mxu0
      %v4964 = vpop.f32.mrf.mxu0
      %v4965 = vadd.f32 0.0, %v4964
      %v4966 = vpop.f32.mrf.mxu0
      %4967 = vmatprep.mubr.bf16.mxu0 %v4725
      %4968 = vmatmul.mubr.bf16.gmra.mxu0 %v4717
      %v4969 = vpop.f32.mrf.mxu0
      %v4970 = vadd.f32 0.0, %v4969
      %v4971 = vpop.f32.mrf.mxu0
      %v4972 = vpop.f32.mrf.mxu0
      %v4973 = vadd.f32 0.0, %v4972
      %v4974 = vpop.f32.mrf.mxu0
      %4975 = vmatprep.mubr.bf16.mxu0 %v4750
      %4976 = vmatmul.mubr.bf16.gmra.mxu0 %v4742
      %v4977 = vpop.f32.mrf.mxu0
      %v4978 = vadd.f32 0.0, %v4977
      %v4979 = vpop.f32.mrf.mxu0
      %v4980 = vpop.f32.mrf.mxu0
      %v4981 = vadd.f32 0.0, %v4980
      %v4982 = vpop.f32.mrf.mxu0
      %4983 = vmatprep.mubr.bf16.mxu0 %v4749
      %4984 = vmatmul.mubr.bf16.gmra.mxu0 %v4741
      %v4985 = vpop.f32.mrf.mxu0
      %v4986 = vadd.f32 0.0, %v4985
      %v4987 = vpop.f32.mrf.mxu0
      %v4988 = vpop.f32.mrf.mxu0
      %v4989 = vpop.f32.mrf.mxu0
      %4990 = vdwg.mxu0
      %4991 = vmatprep.subr.bf16.mxu0 0
      %4992 = vmatpush1.bf16.msra.mxu0 0
      %4993 = vmatprep.subr.bf16.mxu0 0
      %4994 = vmatpush1.bf16.msra.mxu0 0
      %4995 = vmatprep.subr.bf16.mxu0 0
      %4996 = vmatpush1.bf16.msra.mxu0 0
      %4997 = vmatprep.subr.bf16.mxu0 0
      %4998 = vmatpush1.bf16.msra.mxu0 0
      %4999 = vmatprep.subr.bf16.mxu0 0
      %5000 = vmatpush1.bf16.msra.mxu0 0
      %5001 = vmatprep.subr.bf16.mxu0 0
      %5002 = vmatpush1.bf16.msra.mxu0 0
      %5003 = vmatprep.subr.bf16.mxu0 0
      %5004 = vmatpush1.bf16.msra.mxu0 %v4863
      %5005 = vmatprep.subr.bf16.mxu0 0
      %5006 = vmatpush1.bf16.msra.mxu0 %v4862
      %5007 = vmatprep.subr.bf16.mxu0 0
      %5008 = vmatpush2.bf16.msra.mxu0 0
      %5009 = vmatprep.subr.bf16.mxu0 0
      %5010 = vmatpush2.bf16.msra.mxu0 0
      %5011 = vmatprep.subr.bf16.mxu0 0
      %5012 = vmatpush2.bf16.msra.mxu0 0
      %5013 = vmatprep.subr.bf16.mxu0 0
      %5014 = vmatpush2.bf16.msra.mxu0 0
      %5015 = vmatprep.subr.bf16.mxu0 0
      %5016 = vmatpush2.bf16.msra.mxu0 0
      %5017 = vmatprep.subr.bf16.mxu0 0
      %5018 = vmatpush2.bf16.msra.mxu0 0
      %5019 = vmatprep.subr.bf16.mxu0 0
      %5020 = vmatpush2.bf16.msra.mxu0 0
      %5021 = vmatprep.subr.bf16.mxu0 0
      %5022 = vmatpush2.bf16.msra.mxu0 0
      %5023 = vmatprep.mubr.bf16.mxu0 0
      %5024 = vmatmul.mubr.bf16.gmra.mxu0 %v4883
      %v5025 = vpop.f32.mrf.mxu0
      %v5026 = vadd.f32 %v4938, %v5025
      %v5027 = vpop.f32.mrf.mxu0
      %v5028 = vpop.f32.mrf.mxu0
      %v5029 = vadd.f32 %v4941, %v5028
      %v5030 = vpop.f32.mrf.mxu0
      %5031 = vmatprep.mubr.bf16.mxu0 0
      %5032 = vmatmul.mubr.bf16.gmra.mxu0 %v4886
      %v5033 = vpop.f32.mrf.mxu0
      %v5034 = vadd.f32 %v4946, %v5033
      %v5035 = vpop.f32.mrf.mxu0
      %v5036 = vpop.f32.mrf.mxu0
      %v5037 = vadd.f32 %v4949, %v5036
      %v5038 = vpop.f32.mrf.mxu0
      %5039 = vmatprep.mubr.bf16.mxu0 0
      %5040 = vmatmul.mubr.bf16.gmra.mxu0 %v4889
      %v5041 = vpop.f32.mrf.mxu0
      %v5042 = vadd.f32 %v4954, %v5041
      %v5043 = vpop.f32.mrf.mxu0
      %v5044 = vpop.f32.mrf.mxu0
      %v5045 = vadd.f32 %v4957, %v5044
      %v5046 = vpop.f32.mrf.mxu0
      %5047 = vmatprep.mubr.bf16.mxu0 0
      %5048 = vmatmul.mubr.bf16.gmra.mxu0 %v4892
      %v5049 = vpop.f32.mrf.mxu0
      %v5050 = vadd.f32 %v4962, %v5049
      %v5051 = vpop.f32.mrf.mxu0
      %v5052 = vpop.f32.mrf.mxu0
      %v5053 = vadd.f32 %v4965, %v5052
      %v5054 = vpop.f32.mrf.mxu0
      %5055 = vmatprep.mubr.bf16.mxu0 0
      %5056 = vmatmul.mubr.bf16.gmra.mxu0 %v4895
      %v5057 = vpop.f32.mrf.mxu0
      %v5058 = vadd.f32 %v4970, %v5057
      %v5059 = vpop.f32.mrf.mxu0
      %v5060 = vpop.f32.mrf.mxu0
      %v5061 = vadd.f32 %v4973, %v5060
      %v5062 = vpop.f32.mrf.mxu0
      %5063 = vmatprep.mubr.bf16.mxu0 0
      %5064 = vmatmul.mubr.bf16.gmra.mxu0 %v4898
      %v5065 = vpop.f32.mrf.mxu0
      %v5066 = vadd.f32 %v4978, %v5065
      %v5067 = vpop.f32.mrf.mxu0
      %v5068 = vpop.f32.mrf.mxu0
      %v5069 = vadd.f32 %v4981, %v5068
      %v5070 = vpop.f32.mrf.mxu0
      %5071 = vmatprep.mubr.bf16.mxu0 0
      %5072 = vmatmul.mubr.bf16.gmra.mxu0 %v4901
      %v5073 = vpop.f32.mrf.mxu0
      %v5074 = vadd.f32 %v4986, %v5073
      %v5075 = vpop.f32.mrf.mxu0
      %v5076 = vpop.f32.mrf.mxu0
      %v5077 = vpop.f32.mrf.mxu0
      %5078 = vdwg.mxu0
      %s5079 = scalar_lea.vmem %s6, 1
      %v5080 = vld [vmem:[%s5079] sm:$0x1]
      %v5082 = vlaneseq
      %v5083 = vshrl.u32 %v5082, 7
      %v5084 = vsub.s32 0, %v5083
      %v5085 = vrot.slane %v5080, %v5084
      %v5087 = vmul.f32 %v5026, %v5085
      %v5088 = vmul.f32 %v5029, %v5085
      %v5089 = vmul.f32 %v5034, %v5085
      %v5090 = vmul.f32 %v5037, %v5085
      %v5091 = vmul.f32 %v5042, %v5085
      %v5092 = vmul.f32 %v5045, %v5085
      %v5093 = vmul.f32 %v5050, %v5085
      %v5094 = vmul.f32 %v5053, %v5085
      %v5095 = vmul.f32 %v5058, %v5085
      %v5096 = vmul.f32 %v5061, %v5085
      %v5097 = vmul.f32 %v5066, %v5085
      %v5098 = vmul.f32 %v5069, %v5085
      %v5099 = vmul.f32 %v5074, %v5085
      %s5100 = scalar_lea.vmem %s7, 1
      %v5101 = vld [vmem:[%s5100] sm:$0x1]
      %v5103 = vlaneseq
      %v5104 = vshrl.u32 %v5103, 7
      %v5105 = vsub.s32 0, %v5104
      %v5106 = vrot.slane %v5101, %v5105
      %v5108 = vadd.f32 %v5087, %v5106
      %v5109 = vadd.f32 %v5088, %v5106
      %v5110 = vadd.f32 %v5089, %v5106
      %v5111 = vadd.f32 %v5090, %v5106
      %v5112 = vadd.f32 %v5091, %v5106
      %v5113 = vadd.f32 %v5092, %v5106
      %v5114 = vadd.f32 %v5093, %v5106
      %v5115 = vadd.f32 %v5094, %v5106
      %v5116 = vadd.f32 %v5095, %v5106
      %v5117 = vadd.f32 %v5096, %v5106
      %v5118 = vadd.f32 %v5097, %v5106
      %v5119 = vadd.f32 %v5098, %v5106
      %v5120 = vadd.f32 %v5099, %v5106
      %v5121 = vsub.f32 0.0, %v5108
      %v5122 = vsub.f32 0.0, %v5109
      %v5123 = vsub.f32 0.0, %v5110
      %v5124 = vsub.f32 0.0, %v5111
      %v5125 = vsub.f32 0.0, %v5112
      %v5126 = vsub.f32 0.0, %v5113
      %v5127 = vsub.f32 0.0, %v5114
      %v5128 = vsub.f32 0.0, %v5115
      %v5129 = vsub.f32 0.0, %v5116
      %v5130 = vsub.f32 0.0, %v5117
      %v5131 = vsub.f32 0.0, %v5118
      %v5132 = vsub.f32 0.0, %v5119
      %v5133 = vsub.f32 0.0, %v5120
      %v5134 = vmul.f32 %v5121, 1.442695
      %v5135 = vpow.pop %v5134
      %v5136 = vmul.f32 %v5122, 1.442695
      %v5137 = vpow.pop %v5136
      %v5138 = vmul.f32 %v5123, 1.442695
      %v5139 = vpow.pop %v5138
      %v5140 = vmul.f32 %v5124, 1.442695
      %v5141 = vpow.pop %v5140
      %v5142 = vmul.f32 %v5125, 1.442695
      %v5143 = vpow.pop %v5142
      %v5144 = vmul.f32 %v5126, 1.442695
      %v5145 = vpow.pop %v5144
      %v5146 = vmul.f32 %v5127, 1.442695
      %v5147 = vpow.pop %v5146
      %v5148 = vmul.f32 %v5128, 1.442695
      %v5149 = vpow.pop %v5148
      %v5150 = vmul.f32 %v5129, 1.442695
      %v5151 = vpow.pop %v5150
      %v5152 = vmul.f32 %v5130, 1.442695
      %v5153 = vpow.pop %v5152
      %v5154 = vmul.f32 %v5131, 1.442695
      %v5155 = vpow.pop %v5154
      %v5156 = vmul.f32 %v5132, 1.442695
      %v5157 = vpow.pop %v5156
      %v5158 = vmul.f32 %v5133, 1.442695
      %v5159 = vpow.pop %v5158
      %v5160 = vadd.f32 %v5135, 1.0
      %v5161 = vadd.f32 %v5137, 1.0
      %v5162 = vadd.f32 %v5139, 1.0
      %v5163 = vadd.f32 %v5141, 1.0
      %v5164 = vadd.f32 %v5143, 1.0
      %v5165 = vadd.f32 %v5145, 1.0
      %v5166 = vadd.f32 %v5147, 1.0
      %v5167 = vadd.f32 %v5149, 1.0
      %v5168 = vadd.f32 %v5151, 1.0
      %v5169 = vadd.f32 %v5153, 1.0
      %v5170 = vadd.f32 %v5155, 1.0
      %v5171 = vadd.f32 %v5157, 1.0
      %v5172 = vadd.f32 %v5159, 1.0
      %v5173 = vrcp.pop %v5160
      %v5174 = vrcp.pop %v5161
      %v5175 = vrcp.pop %v5162
      %v5176 = vrcp.pop %v5163
      %v5177 = vrcp.pop %v5164
      %v5178 = vrcp.pop %v5165
      %v5179 = vrcp.pop %v5166
      %v5180 = vrcp.pop %v5167
      %v5181 = vrcp.pop %v5168
      %v5182 = vrcp.pop %v5169
      %v5183 = vrcp.pop %v5170
      %v5184 = vrcp.pop %v5171
      %v5185 = vrcp.pop %v5172
      %v5186 = vmul.f32 %v5108, %v5173
      %v5187 = vmul.f32 %v5109, %v5174
      %v5188 = vmul.f32 %v5110, %v5175
      %v5189 = vmul.f32 %v5111, %v5176
      %v5190 = vmul.f32 %v5112, %v5177
      %v5191 = vmul.f32 %v5113, %v5178
      %v5192 = vmul.f32 %v5114, %v5179
      %v5193 = vmul.f32 %v5115, %v5180
      %v5194 = vmul.f32 %v5116, %v5181
      %v5195 = vmul.f32 %v5117, %v5182
      %v5196 = vmul.f32 %v5118, %v5183
      %v5197 = vmul.f32 %v5119, %v5184
      %v5198 = vmul.f32 %v5120, %v5185
      %v5199 = vsel %vm1592, %v5186, 0.0
      %v5200 = vsel %vm1593, %v5187, 0.0
      %v5201 = vsel %vm1594, %v5188, 0.0
      %v5202 = vsel %vm1595, %v5189, 0.0
      %v5203 = vsel %vm1596, %v5190, 0.0
      %v5204 = vsel %vm1597, %v5191, 0.0
      %v5205 = vsel %vm1598, %v5192, 0.0
      %v5206 = vsel %vm1599, %v5193, 0.0
      %v5207 = vsel %vm1600, %v5194, 0.0
      %v5208 = vsel %vm1601, %v5195, 0.0
      %v5209 = vsel %vm1602, %v5196, 0.0
      %v5210 = vsel %vm1603, %v5197, 0.0
      %v5211 = vsel %vm1604, %v5198, 0.0
      %v5212 = vpack.c.bf16 %v5200, %v5199
      %v5213 = vpack.c.bf16 %v5202, %v5201
      %v5214 = vpack.c.bf16 %v5204, %v5203
      %v5215 = vpack.c.bf16 %v5206, %v5205
      %v5216 = vpack.c.bf16 %v5208, %v5207
      %v5217 = vpack.c.bf16 %v5210, %v5209
      %v5218 = vpack.c.bf16 %v5211, %v5211
      %5226 = vrot.lane.b32.xlu0 %v2835, 32
      %v5227 = vpop.permute.xlu0 %5226
      %5228 = vrot.lane.b32.xlu0 %v2836, 32
      %v5229 = vpop.permute.xlu0 %5228
      %5230 = vrot.lane.b32.xlu0 %v2837, 32
      %v5231 = vpop.permute.xlu0 %5230
      %5232 = vrot.lane.b32.xlu0 %v2838, 32
      %v5233 = vpop.permute.xlu0 %5232
      %5234 = vrot.lane.b32.xlu0 %v2839, 32
      %v5235 = vpop.permute.xlu0 %5234
      %5236 = vrot.lane.b32.xlu0 %v2840, 32
      %v5237 = vpop.permute.xlu0 %5236
      %5238 = vrot.lane.b32.xlu0 %v2841, 32
      %v5239 = vpop.permute.xlu0 %5238
      %v5242 = vsel %vm835, %v5212, %v5227
      %v5245 = vsel %vm835, %v5213, %v5229
      %v5248 = vsel %vm835, %v5214, %v5231
      %v5251 = vsel %vm835, %v5215, %v5233
      %v5254 = vsel %vm835, %v5216, %v5235
      %v5257 = vsel %vm835, %v5217, %v5237
      %v5260 = vsel %vm835, %v5218, %v5239
      %v5261 = vld [vmem:[%s8] sm:$0xf]
      %v5262 = vld [vmem:[%s8 + $0x4] sm:$0xf]
      %v5263 = vld [vmem:[%s8 + $0x8] sm:$0xf]
      %v5264 = vld [vmem:[%s8 + $0xc] sm:$0xf]
      %v5265 = vld [vmem:[%s8 + $0x10] sm:$0xf]
      %v5266 = vld [vmem:[%s8 + $0x14] sm:$0xf]
      %v5267 = vld [vmem:[%s8 + $0x18] sm:$0xf]
      %v5268 = vld [vmem:[%s8 + $0x1c] sm:$0xf]
      %v5269 = vld [vmem:[%s9] sm:$0x1]
      %v5271 = vlaneseq
      %v5272 = vshrl.u32 %v5271, 7
      %v5273 = vsub.s32 0, %v5272
      %v5274 = vrot.slane %v5269, %v5273
      %v5284 = vunpack.c.l.b16 %v5261
      %v5285 = vunpack.c.l.b16 %v5262
      %v5286 = vunpack.c.l.b16 %v5263
      %v5287 = vunpack.c.l.b16 %v5264
      %v5288 = vunpack.c.l.b16 %v5265
      %v5289 = vunpack.c.l.b16 %v5266
      %v5290 = vunpack.c.l.b16 %v5267
      %v5291 = vunpack.c.l.b16 %v5268
      %v5292 = vpack.c.b16 %v5285, %v5284
      %v5293 = vpack.c.b16 %v5287, %v5286
      %v5294 = vpack.c.b16 %v5289, %v5288
      %v5295 = vpack.c.b16 %v5291, %v5290
      %v5300 = vsel %vm851, %v5242, 0
      %v5302 = vsel %vm851, %v5245, 0
      %v5304 = vsel %vm851, %v5248, 0
      %v5306 = vsel %vm851, %v5251, 0
      %v5308 = vsel %vm851, %v5254, 0
      %v5310 = vsel %vm851, %v5257, 0
      %v5312 = vsel %vm851, %v5260, 0
      %5314 = vmatprep.subr.bf16.mxu0 0
      %5315 = vmatpush1.bf16.msra.mxu0 0
      %5316 = vmatprep.subr.bf16.mxu0 0
      %5317 = vmatpush1.bf16.msra.mxu0 0
      %5318 = vmatprep.subr.bf16.mxu0 0
      %5319 = vmatpush1.bf16.msra.mxu0 0
      %5320 = vmatprep.subr.bf16.mxu0 0
      %5321 = vmatpush1.bf16.msra.mxu0 0
      %5322 = vmatprep.subr.bf16.mxu0 0
      %5323 = vmatpush1.bf16.msra.mxu0 %v5295
      %5324 = vmatprep.subr.bf16.mxu0 0
      %5325 = vmatpush1.bf16.msra.mxu0 %v5294
      %5326 = vmatprep.subr.bf16.mxu0 0
      %5327 = vmatpush1.bf16.msra.mxu0 %v5293
      %5328 = vmatprep.subr.bf16.mxu0 0
      %5329 = vmatpush1.bf16.msra.mxu0 %v5292
      %5330 = vmatprep.subr.bf16.mxu0 0
      %5331 = vmatpush2.bf16.msra.mxu0 0
      %5332 = vmatprep.subr.bf16.mxu0 0
      %5333 = vmatpush2.bf16.msra.mxu0 0
      %5334 = vmatprep.subr.bf16.mxu0 0
      %5335 = vmatpush2.bf16.msra.mxu0 0
      %5336 = vmatprep.subr.bf16.mxu0 0
      %5337 = vmatpush2.bf16.msra.mxu0 0
      %5338 = vmatprep.subr.bf16.mxu0 0
      %5339 = vmatpush2.bf16.msra.mxu0 0
      %5340 = vmatprep.subr.bf16.mxu0 0
      %5341 = vmatpush2.bf16.msra.mxu0 0
      %5342 = vmatprep.subr.bf16.mxu0 0
      %5343 = vmatpush2.bf16.msra.mxu0 0
      %5344 = vmatprep.subr.bf16.mxu0 0
      %5345 = vmatpush2.bf16.msra.mxu0 0
      %5346 = vmatprep.mubr.bf16.mxu0 0
      %5347 = vmatmul.mubr.bf16.gmra.mxu0 %v5300
      %v5348 = vpop.f32.mrf.mxu0
      %v5349 = vadd.f32 %v5274, %v5348
      %v5350 = vpop.f32.mrf.mxu0
      %v5351 = vpop.f32.mrf.mxu0
      %v5352 = vadd.f32 %v5274, %v5351
      %v5353 = vpop.f32.mrf.mxu0
      %5354 = vmatprep.mubr.bf16.mxu0 0
      %5355 = vmatmul.mubr.bf16.gmra.mxu0 %v5302
      %v5356 = vpop.f32.mrf.mxu0
      %v5357 = vadd.f32 %v5274, %v5356
      %v5358 = vpop.f32.mrf.mxu0
      %v5359 = vpop.f32.mrf.mxu0
      %v5360 = vadd.f32 %v5274, %v5359
      %v5361 = vpop.f32.mrf.mxu0
      %5362 = vmatprep.mubr.bf16.mxu0 0
      %5363 = vmatmul.mubr.bf16.gmra.mxu0 %v5304
      %v5364 = vpop.f32.mrf.mxu0
      %v5365 = vadd.f32 %v5274, %v5364
      %v5366 = vpop.f32.mrf.mxu0
      %v5367 = vpop.f32.mrf.mxu0
      %v5368 = vadd.f32 %v5274, %v5367
      %v5369 = vpop.f32.mrf.mxu0
      %5370 = vmatprep.mubr.bf16.mxu0 0
      %5371 = vmatmul.mubr.bf16.gmra.mxu0 %v5306
      %v5372 = vpop.f32.mrf.mxu0
      %v5373 = vadd.f32 %v5274, %v5372
      %v5374 = vpop.f32.mrf.mxu0
      %v5375 = vpop.f32.mrf.mxu0
      %v5376 = vadd.f32 %v5274, %v5375
      %v5377 = vpop.f32.mrf.mxu0
      %5378 = vmatprep.mubr.bf16.mxu0 0
      %5379 = vmatmul.mubr.bf16.gmra.mxu0 %v5308
      %v5380 = vpop.f32.mrf.mxu0
      %v5381 = vadd.f32 %v5274, %v5380
      %v5382 = vpop.f32.mrf.mxu0
      %v5383 = vpop.f32.mrf.mxu0
      %v5384 = vadd.f32 %v5274, %v5383
      %v5385 = vpop.f32.mrf.mxu0
      %5386 = vmatprep.mubr.bf16.mxu0 0
      %5387 = vmatmul.mubr.bf16.gmra.mxu0 %v5310
      %v5388 = vpop.f32.mrf.mxu0
      %v5389 = vadd.f32 %v5274, %v5388
      %v5390 = vpop.f32.mrf.mxu0
      %v5391 = vpop.f32.mrf.mxu0
      %v5392 = vadd.f32 %v5274, %v5391
      %v5393 = vpop.f32.mrf.mxu0
      %5394 = vmatprep.mubr.bf16.mxu0 0
      %5395 = vmatmul.mubr.bf16.gmra.mxu0 %v5312
      %v5396 = vpop.f32.mrf.mxu0
      %v5397 = vadd.f32 %v5274, %v5396
      %v5398 = vpop.f32.mrf.mxu0
      %v5399 = vpop.f32.mrf.mxu0
      %v5400 = vpop.f32.mrf.mxu0
      %5401 = vdwg.mxu0
      %vm5402 = vcmask 236544
      %5403 = vst.msk [vmem:[%s359] sm:$0xff] %vm5402, %v5349
      %5404 = vst.msk [vmem:[%s359 + $0x8] sm:$0xff] %vm5402, %v5352
      %5405 = vst.msk [vmem:[%s359 + $0x10] sm:$0xff] %vm5402, %v5357
      %5406 = vst.msk [vmem:[%s359 + $0x18] sm:$0xff] %vm5402, %v5360
      %5407 = vst.msk [vmem:[%s359 + $0x20] sm:$0xff] %vm5402, %v5365
      %5408 = vst.msk [vmem:[%s359 + $0x28] sm:$0xff] %vm5402, %v5368
      %5409 = vst.msk [vmem:[%s359 + $0x30] sm:$0xff] %vm5402, %v5373
      %5410 = vst.msk [vmem:[%s359 + $0x38] sm:$0xff] %vm5402, %v5376
      %5411 = vst.msk [vmem:[%s359 + $0x40] sm:$0xff] %vm5402, %v5381
      %5412 = vst.msk [vmem:[%s359 + $0x48] sm:$0xff] %vm5402, %v5384
      %5413 = vst.msk [vmem:[%s359 + $0x50] sm:$0xff] %vm5402, %v5389
      %5414 = vst.msk [vmem:[%s359 + $0x58] sm:$0xff] %vm5402, %v5392
      %vm5415 = vcmask 232448
      %5416 = vst.msk [vmem:[%s359 + $0x60] sm:$0xf] %vm5415, %v5397
      %p5417 = scmp.lt.s32.totalorder %s21, 1
      %s5418 = scalar_select %p5417, %s21, 1
      %s5419 = smul.addr %s5418, 13
      %s5420 = smul.addr %s5419, 8
      %s5421 = scalar_lea.vmem %s10, %s5420
      // Predicated region
      $region61: #{tpu_custom_call.1} parent=59 // pred_check
        %p5422 = pneg %p254
      $region62: #{tpu_custom_call.1} parent=59 // pred_check_branch
        %5424 = sbr.rel (%p5422) target = $region64
      $region63: #{tpu_custom_call.1} parent=59 // pred_region
        _
      $region64: #{tpu_custom_call.1} parent=59 // pred_fallthru
        _
    $region60: #{tpu_custom_call.1} parent=5 // pred_fallthru
      _
    %p5425 = scmp.le.s32.totalorder 2, %s16
    // Predicated region
    $region65: #{tpu_custom_call.1} parent=5 // pred_check
      %p5426 = pneg %p5425
    $region66: #{tpu_custom_call.1} parent=5 // pred_check_branch
      %5428 = sbr.rel (%p5426) target = $region68
    $region67: #{tpu_custom_call.1} parent=5 // pred_region
      %s5429 = ssub.s32 %s16, 2
      // Predicated region
      $region69: #{tpu_custom_call.1} parent=67 // pred_check
        %p5430 = pneg %p260
      $region70: #{tpu_custom_call.1} parent=67 // pred_check_branch
        %5432 = sbr.rel (%p5430) target = $region72
      $region71: #{tpu_custom_call.1} parent=67 // pred_region
        %p5433 = scmp.lt.s32.totalorder %s22, 1
        %s5434 = scalar_select %p5433, %s22, 1
        %s5435 = smul.addr %s5434, 13
        %s5436 = smul.addr %s5435, 8
        %s5437 = scalar_lea.vmem %s10, %s5436
      $region72: #{tpu_custom_call.1} parent=67 // pred_fallthru
        _
    $region68: #{tpu_custom_call.1} parent=5 // pred_fallthru
      _
  $region6: #{tpu_custom_call.1} parent=0 // loop_footer
    %s20 = sadd.s32 1, %s16
  $region7: #{tpu_custom_call.1} parent=0 // loop_footer_branch
    %15 = sbr.rel target = $region3
  $region8: #{tpu_custom_call.1} parent=0 // loop_exit
    _

</llo_original>
